<compile_context>
chip_gen: v6e
topology: v6e:2x2x1
jax: 0.10.0
libtpu: 0.0.40
codegen_flags: <defaults>
</compile_context>

<pallas_src>
import functools

import jax
import jax.numpy as jnp
from jax.experimental import pallas as pl
from jax.experimental.pallas import tpu as pltpu

FEATURE_INPUT_DIM = 32
FEATURE_LATENT_DIM = 24
IMG_INPUT_DIM = 32
IMG_LATENT_DIM = 8
ENC_IN = FEATURE_INPUT_DIM + IMG_INPUT_DIM        # 64
ENC_OUT = FEATURE_LATENT_DIM + IMG_LATENT_DIM     # 32
GNN_LATENT_DIM = 32
OUT_DIM = 20
OUT_PAD = 128          # lane-dense final projection width (unmasked vst path)
TK_MAX = 2048          # adjacency-column (contraction) tile


# ---------------------------------------------------------------------------
# Layout helpers
# ---------------------------------------------------------------------------
def _vmem_limit_bytes():
    # ~85% of physical VMEM (~110 MiB on v5e/v6e, ~54 MiB on v7x); fall back to
    # a value that is safe on every generation if the query is unavailable.
    try:
        return int(pltpu.get_tpu_info().vmem_capacity_bytes * 0.85)
    except Exception:
        return 48 * 1024 * 1024


def _pick_tile_m(n):
    # Prefer big row tiles (fewer grid steps, bigger DMAs) but keep >= 2 row
    # tiles so the "parallel" grid axis can feed both v7x TensorCores.
    for tm in (512, 256, 128):
        if pl.cdiv(n, tm) >= 2:
            return tm
    return 128


def graph_layout(n, tile_m=None):
    """Static layout decisions shared by prepare_adjacency and the forward."""
    if tile_m is None:
        tile_m = _pick_tile_m(n)
    n_pad = pl.cdiv(n, tile_m) * tile_m
    if n_pad > TK_MAX:
        n_pad = pl.cdiv(n_pad, TK_MAX) * TK_MAX   # make TK_MAX divide n_pad
        tk = TK_MAX
    else:
        tk = n_pad
    return tile_m, n_pad, tk


def prepare_adjacency(adj_norm, n_pad):
    """One-time per graph (hoisted out of the forward): cast to bf16 BEFORE
    padding (halves the pad traffic), then zero-pad rows AND columns.

    NOTE: the zero-padded COLUMNS are what keep padded catx rows (which become
    non-zero after the encoder bias) from leaking into real outputs — do not
    change this padding scheme."""
    n = adj_norm.shape[0]
    a = adj_norm.astype(jnp.bfloat16)
    if n != n_pad:
        a = jnp.pad(a, ((0, n_pad - n), (0, n_pad - n)))
    return a


# ---------------------------------------------------------------------------
# Kernels
# ---------------------------------------------------------------------------
def encode_kernel(catx_ref, wenc_ref, benc_ref, w1_ref, y1_ref):
    """Row-local: y1 = relu(cat(feature,img) @ W_enc_blockdiag + b_enc) @ W1."""
    h = jnp.dot(catx_ref[...], wenc_ref[...], preferred_element_type=jnp.float32)
    h = jnp.maximum(h + benc_ref[...], 0.0)                       # f32 elementwise
    y1 = jnp.dot(h.astype(jnp.bfloat16), w1_ref[...],
                 preferred_element_type=jnp.float32)
    y1_ref[...] = y1.astype(y1_ref.dtype)                         # store bf16


def gcn1_kernel(adj_ref, y1_ref, b1_ref, emb_ref, acc_ref):
    """emb = relu(A_hat @ y1 + b1); contraction tiled over adjacency columns."""
    k = pl.program_id(1)

    @pl.when(k == 0)
    def _():
        acc_ref[...] = jnp.zeros_like(acc_ref)

    acc_ref[...] += jnp.dot(adj_ref[...], y1_ref[...],
                            preferred_element_type=jnp.float32)

    @pl.when(k == pl.num_programs(1) - 1)
    def _():
        emb_ref[...] = jnp.maximum(acc_ref[...] + b1_ref[...],
                                   0.0).astype(emb_ref.dtype)


def gcn2_kernel(adj_ref, emb_ref, w2_ref, b2_ref, out_ref, acc_ref):
    """out = (A_hat @ emb) @ W2_pad + b2_pad (W2 applied once, on the finalize)."""
    k = pl.program_id(1)

    @pl.when(k == 0)
    def _():
        acc_ref[...] = jnp.zeros_like(acc_ref)

    acc_ref[...] += jnp.dot(adj_ref[...], emb_ref[...],
                            preferred_element_type=jnp.float32)

    @pl.when(k == pl.num_programs(1) - 1)
    def _():
        y = jnp.dot(acc_ref[...].astype(jnp.bfloat16), w2_ref[...],
                    preferred_element_type=jnp.float32)
        out_ref[...] = (y + b2_ref[...]).astype(out_ref.dtype)


# ---------------------------------------------------------------------------
# Wrapper
# ---------------------------------------------------------------------------
def convgcn_forward(feature, img, adj_bf, params, *, tile_m, tk):
    n = feature.shape[0]
    n_pad = adj_bf.shape[0]
    assert adj_bf.shape == (n_pad, n_pad) and adj_bf.dtype == jnp.bfloat16
    assert n_pad % tile_m == 0 and n_pad % tk == 0 and n_pad >= n
    n_rows = n_pad // tile_m
    n_k = n_pad // tk

    vmem_limit = _vmem_limit_bytes()
    cp_rows = pltpu.CompilerParams(
        dimension_semantics=("parallel",), vmem_limit_bytes=vmem_limit)
    cp_rows_k = pltpu.CompilerParams(
        dimension_semantics=("parallel", "arbitrary"), vmem_limit_bytes=vmem_limit)
    const = dict(pipeline_mode=pl.Buffered(1))   # single-buffer constant blocks

    # --- tiny one-time weight packing (matmul operands in bf16) -------------
    # Block-diagonal encoder weight: one MXU dot yields cat(h_feat, h_img).
    wenc = jnp.zeros((ENC_IN, ENC_OUT), jnp.float32)
    wenc = wenc.at[:FEATURE_INPUT_DIM, :FEATURE_LATENT_DIM].set(params["wf"])
    wenc = wenc.at[FEATURE_INPUT_DIM:, FEATURE_LATENT_DIM:].set(params["wi"])
    wenc = wenc.astype(jnp.bfloat16)
    benc = jnp.concatenate([params["bf"], params["bi"]], axis=1)   # (1,32) f32
    w1 = params["w1"].astype(jnp.bfloat16)

    # Lane-dense (128-wide) final projection: zero-padded columns are free.
    w2_pad = jnp.zeros((GNN_LATENT_DIM, OUT_PAD), jnp.float32)
    w2_pad = w2_pad.at[:, :OUT_DIM].set(params["w2"]).astype(jnp.bfloat16)
    b2_pad = jnp.zeros((1, OUT_PAD), jnp.float32).at[:, :OUT_DIM].set(params["b2"])

    catx = jnp.concatenate([feature, img], axis=1).astype(jnp.bfloat16)
    if n != n_pad:
        catx = jnp.pad(catx, ((0, n_pad - n), (0, 0)))

    # --- pass A: encoders + W1 (row-local) ----------------------------------
    y1 = pl.pallas_call(
        encode_kernel,
        out_shape=jax.ShapeDtypeStruct((n_pad, GNN_LATENT_DIM), jnp.bfloat16),
        grid_spec=pltpu.PrefetchScalarGridSpec(
            num_scalar_prefetch=0, grid=(n_rows,),
            in_specs=[
                pl.BlockSpec((tile_m, ENC_IN), lambda i: (i, 0)),
                pl.BlockSpec((ENC_IN, ENC_OUT), lambda i: (0, 0), **const),
                pl.BlockSpec((1, ENC_OUT), lambda i: (0, 0), **const),
                pl.BlockSpec((ENC_OUT, GNN_LATENT_DIM), lambda i: (0, 0), **const),
            ],
            out_specs=pl.BlockSpec((tile_m, GNN_LATENT_DIM), lambda i: (i, 0))),
        compiler_params=cp_rows,
    )(catx, wenc, benc, w1)

    # --- pass B: GCNConv1 aggregation + bias + ReLU --------------------------
    emb = pl.pallas_call(
        gcn1_kernel,
        out_shape=jax.ShapeDtypeStruct((n_pad, GNN_LATENT_DIM), jnp.bfloat16),
        grid_spec=pltpu.PrefetchScalarGridSpec(
            num_scalar_prefetch=0, grid=(n_rows, n_k),
            in_specs=[
                pl.BlockSpec((tile_m, tk), lambda i, k: (i, k)),
                pl.BlockSpec((tk, GNN_LATENT_DIM), lambda i, k: (k, 0)),
                pl.BlockSpec((1, GNN_LATENT_DIM), lambda i, k: (0, 0), **const),
            ],
            out_specs=pl.BlockSpec((tile_m, GNN_LATENT_DIM), lambda i, k: (i, 0)),
            scratch_shapes=[pltpu.VMEM((tile_m, GNN_LATENT_DIM), jnp.float32)]),
        compiler_params=cp_rows_k,
    )(adj_bf, y1, params["b1"])

    # --- pass C: GCNConv2 aggregation, then W2 + bias on the finalize --------
    out_pad = pl.pallas_call(
        gcn2_kernel,
        out_shape=jax.ShapeDtypeStruct((n_pad, OUT_PAD), jnp.bfloat16),
        grid_spec=pltpu.PrefetchScalarGridSpec(
            num_scalar_prefetch=0, grid=(n_rows, n_k),
            in_specs=[
                pl.BlockSpec((tile_m, tk), lambda i, k: (i, k)),
                pl.BlockSpec((tk, GNN_LATENT_DIM), lambda i, k: (k, 0)),
                pl.BlockSpec((GNN_LATENT_DIM, OUT_PAD), lambda i, k: (0, 0), **const),
                pl.BlockSpec((1, OUT_PAD), lambda i, k: (0, 0), **const),
            ],
            out_specs=pl.BlockSpec((tile_m, OUT_PAD), lambda i, k: (i, 0)),
            scratch_shapes=[pltpu.VMEM((tile_m, GNN_LATENT_DIM), jnp.float32)]),
        compiler_params=cp_rows_k,
    )(adj_bf, emb, w2_pad, b2_pad)

    return out_pad[:n, :OUT_DIM].astype(jnp.float32)


# ---------------------------------------------------------------------------
# Graph + params + reference
# ---------------------------------------------------------------------------
def build_gcn_adj(edge_index, num_nodes):
    """Dense D^-1/2 (A + I) D^-1/2 matching PyG GCNConv defaults."""
    src, dst = edge_index[0], edge_index[1]
    a = jnp.zeros((num_nodes, num_nodes), jnp.float32)
    a = a.at[dst, src].set(1.0)
    idx = jnp.arange(num_nodes)
    a = a.at[idx, idx].set(1.0)          # self loops
    deg = a.sum(axis=1)
    dinv = jnp.where(deg > 0.0, 1.0 / jnp.sqrt(deg), 0.0)
    return dinv[:, None] * a * dinv[None, :]


def init_params(key):
    ks = jax.random.split(key, 8)

    def lin(k, fan_in, fan_out):
        return jax.random.normal(k, (fan_in, fan_out), jnp.float32) / jnp.sqrt(fan_in)

    return {
        "wf": lin(ks[0], FEATURE_INPUT_DIM, FEATURE_LATENT_DIM),
        "bf": jax.random.normal(ks[1], (1, FEATURE_LATENT_DIM), jnp.float32) * 0.01,
        "wi": lin(ks[2], IMG_INPUT_DIM, IMG_LATENT_DIM),
        "bi": jax.random.normal(ks[3], (1, IMG_LATENT_DIM), jnp.float32) * 0.01,
        "w1": lin(ks[4], ENC_OUT, GNN_LATENT_DIM),
        "b1": jax.random.normal(ks[5], (1, GNN_LATENT_DIM), jnp.float32) * 0.01,
        "w2": lin(ks[6], GNN_LATENT_DIM, OUT_DIM),
        "b2": jax.random.normal(ks[7], (1, OUT_DIM), jnp.float32) * 0.01,
    }


def reference_forward(feature, img, adj_norm, params):
    """Pure-JAX f32 reference mirroring the PyTorch module semantics."""
    h_f = jax.nn.relu(feature @ params["wf"] + params["bf"])
    h_i = jax.nn.relu(img @ params["wi"] + params["bi"])
    x = jnp.concatenate([h_f, h_i], axis=1)
    emb = adj_norm @ (x @ params["w1"]) + params["b1"]
    emb = jax.nn.relu(emb)
    return adj_norm @ (emb @ params["w2"]) + params["b2"]


if __name__ == "__main__":
    key = jax.random.PRNGKey(0)
    k_feat, k_img, k_params = jax.random.split(key, 3)

    N = 300  # not a multiple of the row tile -> exercises the padded rows/cols
    feature = jax.random.normal(k_feat, (N, FEATURE_INPUT_DIM), jnp.float32)
    img = jax.random.normal(k_img, (N, IMG_INPUT_DIM), jnp.float32)

    # deterministic bidirectional ring graph
    idx = jnp.arange(N)
    src = jnp.concatenate([idx, (idx + 1) % N])
    dst = jnp.concatenate([(idx + 1) % N, idx])
    edge_index = jnp.stack([src, dst], axis=0)
    adj_norm = build_gcn_adj(edge_index, N)

    params = init_params(k_params)

    # Hoisted one-time-per-graph adjacency prep (bf16 cast before pad).
    tile_m, n_pad, tk = graph_layout(N)
    adj_bf = prepare_adjacency(adj_norm, n_pad)

    fwd = jax.jit(functools.partial(convgcn_forward, tile_m=tile_m, tk=tk))
    out = jax.block_until_ready(fwd(feature, img, adj_bf, params))

    ref = reference_forward(feature, img, adj_norm, params)
    assert out.shape == (N, OUT_DIM)
    # bf16 adjacency / activations / weights (f32 MXU accumulate) vs f32 ref.
    assert jnp.allclose(out, ref, atol=1e-1, rtol=5e-2), "mismatch vs JAX reference"

    print("KERNEL_OK")
</pallas_src>

<mosaic_0001>
module attributes {stable_mosaic.version = 11 : i64} {
  func.func @encode_kernel(%arg0: i32, %arg1: memref<256x64xbf16, #tpu.memory_space<vmem>>, %arg2: memref<64x32xbf16, #tpu.memory_space<vmem>>, %arg3: memref<1x32xf32, #tpu.memory_space<vmem>>, %arg4: memref<32x32xbf16, #tpu.memory_space<vmem>>, %arg5: memref<256x32xbf16, #tpu.memory_space<vmem>>) attributes {dimension_semantics = [#tpu.dimension_semantics<parallel>], iteration_bounds = array<i64: 2>, scalar_prefetch = 0 : i64, scratch_operands = 0 : i64, tpu.core_type = #tpu.core_type<tc>, window_params = [{transform_indices = @transform_0, window_bounds = array<i64: 256, 64>}, {pipeline_mode = #tpu.pipeline_mode<synchronous>, transform_indices = @transform_1, window_bounds = array<i64: 64, 32>}, {pipeline_mode = #tpu.pipeline_mode<synchronous>, transform_indices = @transform_2, window_bounds = array<i64: 1, 32>}, {pipeline_mode = #tpu.pipeline_mode<synchronous>, transform_indices = @transform_3, window_bounds = array<i64: 32, 32>}, {transform_indices = @transform_4, window_bounds = array<i64: 256, 32>}]} {
    %c0 = arith.constant 0 : index
    %c0_0 = arith.constant 0 : index
    %0 = vector.load %arg1[%c0, %c0_0] : memref<256x64xbf16, #tpu.memory_space<vmem>>, vector<256x64xbf16>
    %c0_1 = arith.constant 0 : index
    %c0_2 = arith.constant 0 : index
    %1 = vector.load %arg2[%c0_1, %c0_2] : memref<64x32xbf16, #tpu.memory_space<vmem>>, vector<64x32xbf16>
    %cst = arith.constant dense<0.000000e+00> : vector<256x32xf32>
    %2 = tpu.matmul %0, %1, %cst {dimension_numbers = #tpu.dot_dimension_numbers<[1], [0], [0], [1], [0, 0, 1, 1], [], []>} : vector<256x64xbf16>, vector<64x32xbf16>, vector<256x32xf32> -> vector<256x32xf32>
    %c0_3 = arith.constant 0 : index
    %c0_4 = arith.constant 0 : index
    %3 = vector.load %arg3[%c0_3, %c0_4] : memref<1x32xf32, #tpu.memory_space<vmem>>, vector<1x32xf32>
    %4 = vector.broadcast %3 : vector<1x32xf32> to vector<256x32xf32>
    %5 = arith.addf %2, %4 : vector<256x32xf32>
    %cst_5 = arith.constant 0.000000e+00 : f32
    %6 = vector.broadcast %cst_5 : f32 to vector<256x32xf32>
    %7 = arith.maximumf %5, %6 : vector<256x32xf32>
    %8 = arith.truncf %7 : vector<256x32xf32> to vector<256x32xbf16>
    %c0_6 = arith.constant 0 : index
    %c0_7 = arith.constant 0 : index
    %9 = vector.load %arg4[%c0_6, %c0_7] : memref<32x32xbf16, #tpu.memory_space<vmem>>, vector<32x32xbf16>
    %cst_8 = arith.constant dense<0.000000e+00> : vector<256x32xf32>
    %10 = tpu.matmul %8, %9, %cst_8 {dimension_numbers = #tpu.dot_dimension_numbers<[1], [0], [0], [1], [0, 0, 1, 1], [], []>} : vector<256x32xbf16>, vector<32x32xbf16>, vector<256x32xf32> -> vector<256x32xf32>
    %11 = arith.truncf %10 : vector<256x32xf32> to vector<256x32xbf16>
    %c0_9 = arith.constant 0 : index
    %c0_10 = arith.constant 0 : index
    %12 = vector.load %arg5[%c0_9, %c0_10] : memref<256x32xbf16, #tpu.memory_space<vmem>>, vector<256x32xbf16>
    tpu.vector_store %arg5[%c0_9, %c0_10], %11 {strides = array<i32>} : memref<256x32xbf16, #tpu.memory_space<vmem>>, vector<256x32xbf16>,
    return
  }
  func.func @transform_0(%arg0: i32) -> (i32, i32) {
    %c0_i32 = arith.constant 0 : i32
    %c0_i32_0 = arith.constant 0 : i32
    return %arg0, %c0_i32 : i32, i32
  }
  func.func @transform_1(%arg0: i32) -> (i32, i32) {
    %c0_i32 = arith.constant 0 : i32
    %c0_i32_0 = arith.constant 0 : i32
    %c0_i32_1 = arith.constant 0 : i32
    return %c0_i32, %c0_i32_0 : i32, i32
  }
  func.func @transform_2(%arg0: i32) -> (i32, i32) {
    %c0_i32 = arith.constant 0 : i32
    %c0_i32_0 = arith.constant 0 : i32
    %c0_i32_1 = arith.constant 0 : i32
    return %c0_i32, %c0_i32_0 : i32, i32
  }
  func.func @transform_3(%arg0: i32) -> (i32, i32) {
    %c0_i32 = arith.constant 0 : i32
    %c0_i32_0 = arith.constant 0 : i32
    %c0_i32_1 = arith.constant 0 : i32
    return %c0_i32, %c0_i32_0 : i32, i32
  }
  func.func @transform_4(%arg0: i32) -> (i32, i32) {
    %c0_i32 = arith.constant 0 : i32
    %c0_i32_0 = arith.constant 0 : i32
    return %arg0, %c0_i32 : i32, i32
  }
}

module attributes {stable_mosaic.version = 11 : i64} {
  func.func @gcn1_kernel(%arg0: i32, %arg1: i32, %arg2: memref<256x512xbf16, #tpu.memory_space<vmem>>, %arg3: memref<512x32xbf16, #tpu.memory_space<vmem>>, %arg4: memref<1x32xf32, #tpu.memory_space<vmem>>, %arg5: memref<256x32xbf16, #tpu.memory_space<vmem>>, %arg6: memref<256x32xf32, #tpu.memory_space<vmem>>) attributes {dimension_semantics = [#tpu.dimension_semantics<parallel>, #tpu.dimension_semantics<arbitrary>], iteration_bounds = array<i64: 2, 1>, scalar_prefetch = 0 : i64, scratch_operands = 1 : i64, tpu.core_type = #tpu.core_type<tc>, window_params = [{transform_indices = @transform_0, window_bounds = array<i64: 256, 512>}, {transform_indices = @transform_1, window_bounds = array<i64: 512, 32>}, {pipeline_mode = #tpu.pipeline_mode<synchronous>, transform_indices = @transform_2, window_bounds = array<i64: 1, 32>}, {transform_indices = @transform_3, window_bounds = array<i64: 256, 32>}]} {
    %c0_i32 = arith.constant 0 : i32
    %0 = arith.cmpi eq, %arg1, %c0_i32 : i32
    %1 = arith.extui %0 : i1 to i32
    %c0_i32_0 = arith.constant 0 : i32
    %2 = arith.cmpi ne, %1, %c0_i32_0 : i32
    scf.if %2 {
      %cst_10 = arith.constant 0.000000e+00 : f32
      %12 = vector.broadcast %cst_10 : f32 to vector<256x32xf32>
      %c0_11 = arith.constant 0 : index
      %c0_12 = arith.constant 0 : index
      %13 = vector.load %arg6[%c0_11, %c0_12] : memref<256x32xf32, #tpu.memory_space<vmem>>, vector<256x32xf32>
      tpu.vector_store %arg6[%c0_11, %c0_12], %12 {strides = array<i32>} : memref<256x32xf32, #tpu.memory_space<vmem>>, vector<256x32xf32>,
    } else {
    }
    %c0 = arith.constant 0 : index
    %c0_1 = arith.constant 0 : index
    %3 = vector.load %arg6[%c0, %c0_1] : memref<256x32xf32, #tpu.memory_space<vmem>>, vector<256x32xf32>
    %c0_2 = arith.constant 0 : index
    %c0_3 = arith.constant 0 : index
    %4 = vector.load %arg2[%c0_2, %c0_3] : memref<256x512xbf16, #tpu.memory_space<vmem>>, vector<256x512xbf16>
    %c0_4 = arith.constant 0 : index
    %c0_5 = arith.constant 0 : index
    %5 = vector.load %arg3[%c0_4, %c0_5] : memref<512x32xbf16, #tpu.memory_space<vmem>>, vector<512x32xbf16>
    %cst = arith.constant dense<0.000000e+00> : vector<256x32xf32>
    %6 = tpu.matmul %4, %5, %cst {dimension_numbers = #tpu.dot_dimension_numbers<[1], [0], [0], [1], [0, 0, 1, 1], [], []>} : vector<256x512xbf16>, vector<512x32xbf16>, vector<256x32xf32> -> vector<256x32xf32>
    %7 = arith.addf %3, %6 : vector<256x32xf32>
    %c0_6 = arith.constant 0 : index
    %c0_7 = arith.constant 0 : index
    %8 = vector.load %arg6[%c0_6, %c0_7] : memref<256x32xf32, #tpu.memory_space<vmem>>, vector<256x32xf32>
    tpu.vector_store %arg6[%c0_6, %c0_7], %7 {strides = array<i32>} : memref<256x32xf32, #tpu.memory_space<vmem>>, vector<256x32xf32>,
    %c0_i32_8 = arith.constant 0 : i32
    %9 = arith.cmpi eq, %arg1, %c0_i32_8 : i32
    %10 = arith.extui %9 : i1 to i32
    %c0_i32_9 = arith.constant 0 : i32
    %11 = arith.cmpi ne, %10, %c0_i32_9 : i32
    scf.if %11 {
      %c0_10 = arith.constant 0 : index
      %c0_11 = arith.constant 0 : index
      %12 = vector.load %arg6[%c0_10, %c0_11] : memref<256x32xf32, #tpu.memory_space<vmem>>, vector<256x32xf32>
      %c0_12 = arith.constant 0 : index
      %c0_13 = arith.constant 0 : index
      %13 = vector.load %arg4[%c0_12, %c0_13] : memref<1x32xf32, #tpu.memory_space<vmem>>, vector<1x32xf32>
      %14 = vector.broadcast %13 : vector<1x32xf32> to vector<256x32xf32>
      %15 = arith.addf %12, %14 : vector<256x32xf32>
      %cst_14 = arith.constant 0.000000e+00 : f32
      %16 = vector.broadcast %cst_14 : f32 to vector<256x32xf32>
      %17 = arith.maximumf %15, %16 : vector<256x32xf32>
      %18 = arith.truncf %17 : vector<256x32xf32> to vector<256x32xbf16>
      %c0_15 = arith.constant 0 : index
      %c0_16 = arith.constant 0 : index
      %19 = vector.load %arg5[%c0_15, %c0_16] : memref<256x32xbf16, #tpu.memory_space<vmem>>, vector<256x32xbf16>
      tpu.vector_store %arg5[%c0_15, %c0_16], %18 {strides = array<i32>} : memref<256x32xbf16, #tpu.memory_space<vmem>>, vector<256x32xbf16>,
    } else {
    }
    return
  }
  func.func @transform_0(%arg0: i32, %arg1: i32) -> (i32, i32) {
    %c0_i32 = arith.constant 0 : i32
    return %arg0, %arg1 : i32, i32
  }
  func.func @transform_1(%arg0: i32, %arg1: i32) -> (i32, i32) {
    %c0_i32 = arith.constant 0 : i32
    %c0_i32_0 = arith.constant 0 : i32
    return %arg1, %c0_i32 : i32, i32
  }
  func.func @transform_2(%arg0: i32, %arg1: i32) -> (i32, i32) {
    %c0_i32 = arith.constant 0 : i32
    %c0_i32_0 = arith.constant 0 : i32
    %c0_i32_1 = arith.constant 0 : i32
    return %c0_i32, %c0_i32_0 : i32, i32
  }
  func.func @transform_3(%arg0: i32, %arg1: i32) -> (i32, i32) {
    %c0_i32 = arith.constant 0 : i32
    %c0_i32_0 = arith.constant 0 : i32
    return %arg0, %c0_i32 : i32, i32
  }
}

module attributes {stable_mosaic.version = 11 : i64} {
  func.func @gcn2_kernel(%arg0: i32, %arg1: i32, %arg2: memref<256x512xbf16, #tpu.memory_space<vmem>>, %arg3: memref<512x32xbf16, #tpu.memory_space<vmem>>, %arg4: memref<32x128xbf16, #tpu.memory_space<vmem>>, %arg5: memref<1x128xf32, #tpu.memory_space<vmem>>, %arg6: memref<256x128xbf16, #tpu.memory_space<vmem>>, %arg7: memref<256x32xf32, #tpu.memory_space<vmem>>) attributes {dimension_semantics = [#tpu.dimension_semantics<parallel>, #tpu.dimension_semantics<arbitrary>], iteration_bounds = array<i64: 2, 1>, scalar_prefetch = 0 : i64, scratch_operands = 1 : i64, tpu.core_type = #tpu.core_type<tc>, window_params = [{transform_indices = @transform_0, window_bounds = array<i64: 256, 512>}, {transform_indices = @transform_1, window_bounds = array<i64: 512, 32>}, {pipeline_mode = #tpu.pipeline_mode<synchronous>, transform_indices = @transform_2, window_bounds = array<i64: 32, 128>}, {pipeline_mode = #tpu.pipeline_mode<synchronous>, transform_indices = @transform_3, window_bounds = array<i64: 1, 128>}, {transform_indices = @transform_4, window_bounds = array<i64: 256, 128>}]} {
    %c0_i32 = arith.constant 0 : i32
    %0 = arith.cmpi eq, %arg1, %c0_i32 : i32
    %1 = arith.extui %0 : i1 to i32
    %c0_i32_0 = arith.constant 0 : i32
    %2 = arith.cmpi ne, %1, %c0_i32_0 : i32
    scf.if %2 {
      %cst_10 = arith.constant 0.000000e+00 : f32
      %12 = vector.broadcast %cst_10 : f32 to vector<256x32xf32>
      %c0_11 = arith.constant 0 : index
      %c0_12 = arith.constant 0 : index
      %13 = vector.load %arg7[%c0_11, %c0_12] : memref<256x32xf32, #tpu.memory_space<vmem>>, vector<256x32xf32>
      tpu.vector_store %arg7[%c0_11, %c0_12], %12 {strides = array<i32>} : memref<256x32xf32, #tpu.memory_space<vmem>>, vector<256x32xf32>,
    } else {
    }
    %c0 = arith.constant 0 : index
    %c0_1 = arith.constant 0 : index
    %3 = vector.load %arg7[%c0, %c0_1] : memref<256x32xf32, #tpu.memory_space<vmem>>, vector<256x32xf32>
    %c0_2 = arith.constant 0 : index
    %c0_3 = arith.constant 0 : index
    %4 = vector.load %arg2[%c0_2, %c0_3] : memref<256x512xbf16, #tpu.memory_space<vmem>>, vector<256x512xbf16>
    %c0_4 = arith.constant 0 : index
    %c0_5 = arith.constant 0 : index
    %5 = vector.load %arg3[%c0_4, %c0_5] : memref<512x32xbf16, #tpu.memory_space<vmem>>, vector<512x32xbf16>
    %cst = arith.constant dense<0.000000e+00> : vector<256x32xf32>
    %6 = tpu.matmul %4, %5, %cst {dimension_numbers = #tpu.dot_dimension_numbers<[1], [0], [0], [1], [0, 0, 1, 1], [], []>} : vector<256x512xbf16>, vector<512x32xbf16>, vector<256x32xf32> -> vector<256x32xf32>
    %7 = arith.addf %3, %6 : vector<256x32xf32>
    %c0_6 = arith.constant 0 : index
    %c0_7 = arith.constant 0 : index
    %8 = vector.load %arg7[%c0_6, %c0_7] : memref<256x32xf32, #tpu.memory_space<vmem>>, vector<256x32xf32>
    tpu.vector_store %arg7[%c0_6, %c0_7], %7 {strides = array<i32>} : memref<256x32xf32, #tpu.memory_space<vmem>>, vector<256x32xf32>,
    %c0_i32_8 = arith.constant 0 : i32
    %9 = arith.cmpi eq, %arg1, %c0_i32_8 : i32
    %10 = arith.extui %9 : i1 to i32
    %c0_i32_9 = arith.constant 0 : i32
    %11 = arith.cmpi ne, %10, %c0_i32_9 : i32
    scf.if %11 {
      %c0_10 = arith.constant 0 : index
      %c0_11 = arith.constant 0 : index
      %12 = vector.load %arg7[%c0_10, %c0_11] : memref<256x32xf32, #tpu.memory_space<vmem>>, vector<256x32xf32>
      %13 = arith.truncf %12 : vector<256x32xf32> to vector<256x32xbf16>
      %c0_12 = arith.constant 0 : index
      %c0_13 = arith.constant 0 : index
      %14 = vector.load %arg4[%c0_12, %c0_13] : memref<32x128xbf16, #tpu.memory_space<vmem>>, vector<32x128xbf16>
      %cst_14 = arith.constant dense<0.000000e+00> : vector<256x128xf32>
      %15 = tpu.matmul %13, %14, %cst_14 {dimension_numbers = #tpu.dot_dimension_numbers<[1], [0], [0], [1], [0, 0, 1, 1], [], []>} : vector<256x32xbf16>, vector<32x128xbf16>, vector<256x128xf32> -> vector<256x128xf32>
      %c0_15 = arith.constant 0 : index
      %c0_16 = arith.constant 0 : index
      %16 = vector.load %arg5[%c0_15, %c0_16] : memref<1x128xf32, #tpu.memory_space<vmem>>, vector<1x128xf32>
      %17 = vector.broadcast %16 : vector<1x128xf32> to vector<256x128xf32>
      %18 = arith.addf %15, %17 : vector<256x128xf32>
      %19 = arith.truncf %18 : vector<256x128xf32> to vector<256x128xbf16>
      %c0_17 = arith.constant 0 : index
      %c0_18 = arith.constant 0 : index
      %20 = vector.load %arg6[%c0_17, %c0_18] : memref<256x128xbf16, #tpu.memory_space<vmem>>, vector<256x128xbf16>
      tpu.vector_store %arg6[%c0_17, %c0_18], %19 {strides = array<i32>} : memref<256x128xbf16, #tpu.memory_space<vmem>>, vector<256x128xbf16>,
    } else {
    }
    return
  }
  func.func @transform_0(%arg0: i32, %arg1: i32) -> (i32, i32) {
    %c0_i32 = arith.constant 0 : i32
    return %arg0, %arg1 : i32, i32
  }
  func.func @transform_1(%arg0: i32, %arg1: i32) -> (i32, i32) {
    %c0_i32 = arith.constant 0 : i32
    %c0_i32_0 = arith.constant 0 : i32
    return %arg1, %c0_i32 : i32, i32
  }
  func.func @transform_2(%arg0: i32, %arg1: i32) -> (i32, i32) {
    %c0_i32 = arith.constant 0 : i32
    %c0_i32_0 = arith.constant 0 : i32
    %c0_i32_1 = arith.constant 0 : i32
    return %c0_i32, %c0_i32_0 : i32, i32
  }
  func.func @transform_3(%arg0: i32, %arg1: i32) -> (i32, i32) {
    %c0_i32 = arith.constant 0 : i32
    %c0_i32_0 = arith.constant 0 : i32
    %c0_i32_1 = arith.constant 0 : i32
    return %c0_i32, %c0_i32_0 : i32, i32
  }
  func.func @transform_4(%arg0: i32, %arg1: i32) -> (i32, i32) {
    %c0_i32 = arith.constant 0 : i32
    %c0_i32_0 = arith.constant 0 : i32
    return %arg0, %c0_i32 : i32, i32
  }
}

</mosaic_0001>

<llo_original>
// kernel: convgcn_forward.3
$region0: #{convgcn_forward.3}
  #allocation0 [shape = 'u32[]', space=smem, size = 0x4, offset = 0x4, fixed_abs, tag = 'smem constant byte address 0x4 - core index']
  #allocation1 [shape = 'u32[144,128]{1,0:T(1,128)}', space=vmem, size = 0x12000, scoped, tag = 'internal scratch']
  %s0 = inlined_call_operand.vmem [shape: bf16[512,64], index: 0, kind: input, shape index: {}]
  %s1 = inlined_call_operand.vmem [shape: bf16[64,32], index: 1, kind: input, shape index: {}]
  %s2 = inlined_call_operand.vmem [shape: f32[1,32], index: 2, kind: input, shape index: {}]
  %s3 = inlined_call_operand.vmem [shape: bf16[32,32], index: 3, kind: input, shape index: {}]
  %s4 = inlined_call_operand.vmem [shape: bf16[512,32], index: 4, kind: output, shape index: {}]
  %s5 = sld [smem:[#allocation0]]
  $region49: #{convgcn_forward.3} parent=0
    _
  %s7 = ssub.s32 1, %s5
  %s8 = scalar_select 0, %s7, %s5
  loop: start=0, step=1, limit=4
  $region2: #{convgcn_forward.3} parent=0 // loop_pre_header
    _
  $region3: #{convgcn_forward.3} parent=0 // loop_header
    %s10 = sphi 0, %s14
    %p11 = scmp.ge.s32.totalorder %s10, 4
    %s20 = sphi 0, %s22
    %s23 = sphi 0, %s20
    %s24 = sphi 0, %s23
    %s40 = sphi 0, %s24
    %s44 = sphi 0, %s44
    %s46 = sphi 0, %s44
    %s47 = sphi 0, %s46
    %s61 = sphi 0, %s47
    %s65 = sphi 0, %s65
    %s67 = sphi 0, %s65
    %s68 = sphi 0, %s67
    %s82 = sphi 0, %s68
    %s86 = sphi 0, %s86
    %s88 = sphi 0, %s86
    %s89 = sphi 0, %s88
    %s103 = sphi 0, %s89
    %s109 = sphi 0, %s111
    %s112 = sphi 0, %s109
    %s113 = sphi 0, %s112
    %s129 = sphi 0, %s113
  $region4: #{convgcn_forward.3} parent=0 // loop_header_branch
    %13 = sbr.rel (%p11) target = $region8
  $region5: #{convgcn_forward.3} parent=0 // loop_body
    %s15 = ssub.s32 %s10, 1
    %s16 = ssub.s32 %s10, 2
    %s17 = sadd.s32 %s10, 1
    %s18 = ssub.s32 %s10, %s17
    %p19 = scmp.eq.s32.totalorder %s18, 0
    %s21 = sadd.s32 %s20, 1
    %s22 = scalar_select %p19, %s20, %s21
    %p25 = pneg %p19
    %p26 = scmp.eq.s32.totalorder %s10, 1
    %p27 = por %p25, %p26
    %p28 = scmp.ne.s32.totalorder %s20, %s23
    %p29 = scmp.eq.s32.totalorder %s10, 0
    %p30 = por %p28, %p29
    %p31 = scmp.ne.s32.totalorder %s20, %s23
    %p32 = scmp.eq.s32.totalorder %s15, 1
    %p33 = por %p31, %p32
    %p34 = scmp.ne.s32.totalorder %s23, %s24
    %p35 = scmp.eq.s32.totalorder %s15, 0
    %p36 = por %p34, %p35
    %p37 = scmp.ne.s32.totalorder %s23, %s24
    %p38 = scmp.eq.s32.totalorder %s16, 1
    %p39 = por %p37, %p38
    %p41 = scmp.ne.s32.totalorder %s24, %s40
    %p42 = scmp.eq.s32.totalorder %s16, 0
    %p43 = por %p41, %p42
    %s45 = sadd.s32 %s44, 1
    %p48 = scmp.eq.s32.totalorder %s10, 1
    %p49 = scmp.ne.s32.totalorder %s44, %s46
    %p50 = scmp.eq.s32.totalorder %s10, 0
    %p51 = por %p49, %p50
    %p52 = scmp.ne.s32.totalorder %s44, %s46
    %p53 = scmp.eq.s32.totalorder %s15, 1
    %p54 = por %p52, %p53
    %p55 = scmp.ne.s32.totalorder %s46, %s47
    %p56 = scmp.eq.s32.totalorder %s15, 0
    %p57 = por %p55, %p56
    %p58 = scmp.ne.s32.totalorder %s46, %s47
    %p59 = scmp.eq.s32.totalorder %s16, 1
    %p60 = por %p58, %p59
    %p62 = scmp.ne.s32.totalorder %s47, %s61
    %p63 = scmp.eq.s32.totalorder %s16, 0
    %p64 = por %p62, %p63
    %s66 = sadd.s32 %s65, 1
    %p69 = scmp.eq.s32.totalorder %s10, 1
    %p70 = scmp.ne.s32.totalorder %s65, %s67
    %p71 = scmp.eq.s32.totalorder %s10, 0
    %p72 = por %p70, %p71
    %p73 = scmp.ne.s32.totalorder %s65, %s67
    %p74 = scmp.eq.s32.totalorder %s15, 1
    %p75 = por %p73, %p74
    %p76 = scmp.ne.s32.totalorder %s67, %s68
    %p77 = scmp.eq.s32.totalorder %s15, 0
    %p78 = por %p76, %p77
    %p79 = scmp.ne.s32.totalorder %s67, %s68
    %p80 = scmp.eq.s32.totalorder %s16, 1
    %p81 = por %p79, %p80
    %p83 = scmp.ne.s32.totalorder %s68, %s82
    %p84 = scmp.eq.s32.totalorder %s16, 0
    %p85 = por %p83, %p84
    %s87 = sadd.s32 %s86, 1
    %p90 = scmp.eq.s32.totalorder %s10, 1
    %p91 = scmp.ne.s32.totalorder %s86, %s88
    %p92 = scmp.eq.s32.totalorder %s10, 0
    %p93 = por %p91, %p92
    %p94 = scmp.ne.s32.totalorder %s86, %s88
    %p95 = scmp.eq.s32.totalorder %s15, 1
    %p96 = por %p94, %p95
    %p97 = scmp.ne.s32.totalorder %s88, %s89
    %p98 = scmp.eq.s32.totalorder %s15, 0
    %p99 = por %p97, %p98
    %p100 = scmp.ne.s32.totalorder %s88, %s89
    %p101 = scmp.eq.s32.totalorder %s16, 1
    %p102 = por %p100, %p101
    %p104 = scmp.ne.s32.totalorder %s89, %s103
    %p105 = scmp.eq.s32.totalorder %s16, 0
    %p106 = por %p104, %p105
    %s107 = ssub.s32 %s10, %s17
    %p108 = scmp.eq.s32.totalorder %s107, 0
    %s110 = sadd.s32 %s109, 1
    %s111 = scalar_select %p108, %s109, %s110
    %p114 = pneg %p108
    %p115 = scmp.eq.s32.totalorder %s10, 1
    %p116 = por %p114, %p115
    %p117 = scmp.ne.s32.totalorder %s109, %s112
    %p118 = scmp.eq.s32.totalorder %s10, 0
    %p119 = por %p117, %p118
    %p120 = scmp.ne.s32.totalorder %s109, %s112
    %p121 = scmp.eq.s32.totalorder %s15, 1
    %p122 = por %p120, %p121
    %p123 = scmp.ne.s32.totalorder %s112, %s113
    %p124 = scmp.eq.s32.totalorder %s15, 0
    %p125 = por %p123, %p124
    %p126 = scmp.ne.s32.totalorder %s112, %s113
    %p127 = scmp.eq.s32.totalorder %s16, 1
    %p128 = por %p126, %p127
    %p130 = scmp.ne.s32.totalorder %s113, %s129
    %p131 = scmp.eq.s32.totalorder %s16, 0
    %p132 = por %p130, %p131
    %p133 = scmp.le.s32.totalorder 1, %s10
    %p134 = scmp.lt.s32.totalorder %s10, 3
    %p135 = pnand %p133, %p134
    %p136 = pneg %p135
    // Predicated region
    $region9: #{convgcn_forward.3} parent=5 // pred_check
      _
    $region10: #{convgcn_forward.3} parent=5 // pred_check_branch
      %138 = sbr.rel (%p135) target = $region12
    $region11: #{convgcn_forward.3} parent=5 // pred_region
      %s139 = ssub.s32 %s10, 1
      // Predicated region
      $region13: #{convgcn_forward.3} parent=11 // pred_check
        %p140 = pneg %p57
      $region14: #{convgcn_forward.3} parent=11 // pred_check_branch
        %142 = sbr.rel (%p140) target = $region16
      $region15: #{convgcn_forward.3} parent=11 // pred_region
        _
      $region16: #{convgcn_forward.3} parent=11 // pred_fallthru
        _
      // Predicated region
      $region17: #{convgcn_forward.3} parent=11 // pred_check
        %p143 = pneg %p78
      $region18: #{convgcn_forward.3} parent=11 // pred_check_branch
        %145 = sbr.rel (%p143) target = $region20
      $region19: #{convgcn_forward.3} parent=11 // pred_region
        _
      $region20: #{convgcn_forward.3} parent=11 // pred_fallthru
        _
      // Predicated region
      $region21: #{convgcn_forward.3} parent=11 // pred_check
        %p146 = pneg %p99
      $region22: #{convgcn_forward.3} parent=11 // pred_check_branch
        %148 = sbr.rel (%p146) target = $region24
      $region23: #{convgcn_forward.3} parent=11 // pred_region
        _
      $region24: #{convgcn_forward.3} parent=11 // pred_fallthru
        _
    $region12: #{convgcn_forward.3} parent=5 // pred_fallthru
      _
    %p149 = scmp.lt.s32.totalorder %s10, 2
    // Predicated region
    $region25: #{convgcn_forward.3} parent=5 // pred_check
      %p150 = pneg %p149
    $region26: #{convgcn_forward.3} parent=5 // pred_check_branch
      %152 = sbr.rel (%p150) target = $region28
    $region27: #{convgcn_forward.3} parent=5 // pred_region
      // Predicated region
      $region29: #{convgcn_forward.3} parent=27 // pred_check
        %p153 = pneg %p30
      $region30: #{convgcn_forward.3} parent=27 // pred_check_branch
        %155 = sbr.rel (%p153) target = $region32
      $region31: #{convgcn_forward.3} parent=27 // pred_region
        %s156 = smul.u32 32, %s10
        %p157 = scmp.lt.s32.totalorder %s156, 63
        %s158 = scalar_select %p157, %s156, 63
        %s159 = smul.addr %s158, 4
        %s160 = scalar_lea.vmem %s0, %s159
        %s161 = smul.u32 32, %s10
      $region32: #{convgcn_forward.3} parent=27 // pred_fallthru
        _
    $region28: #{convgcn_forward.3} parent=5 // pred_fallthru
      _
    %p162 = scmp.le.s32.totalorder 1, %s10
    %p163 = scmp.lt.s32.totalorder %s10, 3
    %p164 = pnand %p162, %p163
    %p165 = pneg %p164
    // Predicated region
    $region33: #{convgcn_forward.3} parent=5 // pred_check
      _
    $region34: #{convgcn_forward.3} parent=5 // pred_check_branch
      %167 = sbr.rel (%p164) target = $region36
    $region35: #{convgcn_forward.3} parent=5 // pred_region
      %s168 = ssub.s32 %s10, 1
      %s169 = smul.u32 32, %s15
      %p170 = scmp.lt.s32.totalorder %s169, 63
      %s171 = scalar_select %p170, %s169, 63
      %s172 = smul.addr %s171, 4
      %s173 = scalar_lea.vmem %s0, %s172
      %p174 = pneg %p36
      %p175 = pneg %p33
      %p176 = pneg %p57
      %p177 = pneg %p54
      %p178 = pneg %p78
      %p179 = pneg %p75
      %p180 = pneg %p99
      %p181 = pneg %p96
      %p182 = pneg %p125
      %p183 = pneg %p122
      %s184 = smul.u32 32, %s15
      %p185 = scmp.lt.s32.totalorder %s184, 63
      %s186 = scalar_select %p185, %s184, 63
      %s187 = smul.addr %s186, 4
      %s188 = scalar_lea.vmem %s4, %s187
      %s189 = smul.u32 32, %s15
      %p190 = scmp.lt.s32.totalorder %s189, 63
      %s191 = scalar_select %p190, %s189, 63
      %s192 = smul.addr %s191, 4
      %s193 = scalar_lea.vmem %s0, %s192
      %s194 = smul.u32 32, %s15
      %s195 = smul.u32 32, %s15
      %p196 = scmp.lt.s32.totalorder %s195, 63
      %s197 = scalar_select %p196, %s195, 63
      %s198 = smul.addr %s197, 4
      %s199 = scalar_lea.vmem %s4, %s198
      %s200 = smul.u32 32, %s15
      %v202 = vld [vmem:[%s193] sm:$0xf]
      %v203 = vld [vmem:[%s193 + $0x4] sm:$0xf]
      %v204 = vld [vmem:[%s193 + $0x8] sm:$0xf]
      %v205 = vld [vmem:[%s193 + $0xc] sm:$0xf]
      %v206 = vld [vmem:[%s193 + $0x10] sm:$0xf]
      %v207 = vld [vmem:[%s193 + $0x14] sm:$0xf]
      %v208 = vld [vmem:[%s193 + $0x18] sm:$0xf]
      %v209 = vld [vmem:[%s193 + $0x1c] sm:$0xf]
      %v210 = vld [vmem:[%s193 + $0x20] sm:$0xf]
      %v211 = vld [vmem:[%s193 + $0x24] sm:$0xf]
      %v212 = vld [vmem:[%s193 + $0x28] sm:$0xf]
      %v213 = vld [vmem:[%s193 + $0x2c] sm:$0xf]
      %v214 = vld [vmem:[%s193 + $0x30] sm:$0xf]
      %v215 = vld [vmem:[%s193 + $0x34] sm:$0xf]
      %v216 = vld [vmem:[%s193 + $0x38] sm:$0xf]
      %v217 = vld [vmem:[%s193 + $0x3c] sm:$0xf]
      %v218 = vld [vmem:[%s193 + $0x40] sm:$0xf]
      %v219 = vld [vmem:[%s193 + $0x44] sm:$0xf]
      %v220 = vld [vmem:[%s193 + $0x48] sm:$0xf]
      %v221 = vld [vmem:[%s193 + $0x4c] sm:$0xf]
      %v222 = vld [vmem:[%s193 + $0x50] sm:$0xf]
      %v223 = vld [vmem:[%s193 + $0x54] sm:$0xf]
      %v224 = vld [vmem:[%s193 + $0x58] sm:$0xf]
      %v225 = vld [vmem:[%s193 + $0x5c] sm:$0xf]
      %v226 = vld [vmem:[%s193 + $0x60] sm:$0xf]
      %v227 = vld [vmem:[%s193 + $0x64] sm:$0xf]
      %v228 = vld [vmem:[%s193 + $0x68] sm:$0xf]
      %v229 = vld [vmem:[%s193 + $0x6c] sm:$0xf]
      %v230 = vld [vmem:[%s193 + $0x70] sm:$0xf]
      %v231 = vld [vmem:[%s193 + $0x74] sm:$0xf]
      %v232 = vld [vmem:[%s193 + $0x78] sm:$0xf]
      %v233 = vld [vmem:[%s193 + $0x7c] sm:$0xf]
      %v234 = vld [vmem:[%s1] sm:$0xf]
      %v235 = vld [vmem:[%s1 + $0x4] sm:$0xf]
      %v236 = vld [vmem:[%s1 + $0x8] sm:$0xf]
      %v237 = vld [vmem:[%s1 + $0xc] sm:$0xf]
      %v238 = vld [vmem:[%s1 + $0x10] sm:$0xf]
      %v239 = vld [vmem:[%s1 + $0x14] sm:$0xf]
      %v240 = vld [vmem:[%s1 + $0x18] sm:$0xf]
      %v241 = vld [vmem:[%s1 + $0x1c] sm:$0xf]
      %v242 = vld [vmem:[%s2] sm:$0x1]
      %v244 = vlaneseq
      %v245 = vshrl.u32 %v244, 7
      %v246 = vsub.s32 0, %v245
      %v247 = vrot.slane %v242, %v246
      %v281 = vunpack.c.l.b16 %v202
      %v282 = vunpack.c.l.b16 %v203
      %v283 = vunpack.c.l.b16 %v204
      %v284 = vunpack.c.l.b16 %v205
      %v285 = vunpack.c.l.b16 %v206
      %v286 = vunpack.c.l.b16 %v207
      %v287 = vunpack.c.l.b16 %v208
      %v288 = vunpack.c.l.b16 %v209
      %v289 = vunpack.c.l.b16 %v210
      %v290 = vunpack.c.l.b16 %v211
      %v291 = vunpack.c.l.b16 %v212
      %v292 = vunpack.c.l.b16 %v213
      %v293 = vunpack.c.l.b16 %v214
      %v294 = vunpack.c.l.b16 %v215
      %v295 = vunpack.c.l.b16 %v216
      %v296 = vunpack.c.l.b16 %v217
      %v297 = vunpack.c.l.b16 %v218
      %v298 = vunpack.c.l.b16 %v219
      %v299 = vunpack.c.l.b16 %v220
      %v300 = vunpack.c.l.b16 %v221
      %v301 = vunpack.c.l.b16 %v222
      %v302 = vunpack.c.l.b16 %v223
      %v303 = vunpack.c.l.b16 %v224
      %v304 = vunpack.c.l.b16 %v225
      %v305 = vunpack.c.l.b16 %v226
      %v306 = vunpack.c.l.b16 %v227
      %v307 = vunpack.c.l.b16 %v228
      %v308 = vunpack.c.l.b16 %v229
      %v309 = vunpack.c.l.b16 %v230
      %v310 = vunpack.c.l.b16 %v231
      %v311 = vunpack.c.l.b16 %v232
      %v312 = vunpack.c.l.b16 %v233
      %v313 = vpack.c.b16 %v282, %v281
      %v314 = vpack.c.b16 %v284, %v283
      %v315 = vpack.c.b16 %v286, %v285
      %v316 = vpack.c.b16 %v288, %v287
      %v317 = vpack.c.b16 %v290, %v289
      %v318 = vpack.c.b16 %v292, %v291
      %v319 = vpack.c.b16 %v294, %v293
      %v320 = vpack.c.b16 %v296, %v295
      %v321 = vpack.c.b16 %v298, %v297
      %v322 = vpack.c.b16 %v300, %v299
      %v323 = vpack.c.b16 %v302, %v301
      %v324 = vpack.c.b16 %v304, %v303
      %v325 = vpack.c.b16 %v306, %v305
      %v326 = vpack.c.b16 %v308, %v307
      %v327 = vpack.c.b16 %v310, %v309
      %v328 = vpack.c.b16 %v312, %v311
      %v337 = vunpack.c.l.b16 %v234
      %v338 = vunpack.c.l.b16 %v235
      %v339 = vunpack.c.l.b16 %v236
      %v340 = vunpack.c.l.b16 %v237
      %v341 = vunpack.c.l.b16 %v238
      %v342 = vunpack.c.l.b16 %v239
      %v343 = vunpack.c.l.b16 %v240
      %v344 = vunpack.c.l.b16 %v241
      %v345 = vpack.c.b16 %v338, %v337
      %v346 = vpack.c.b16 %v340, %v339
      %v347 = vpack.c.b16 %v342, %v341
      %v348 = vpack.c.b16 %v344, %v343
      %vm353 = vcmask 523264
      %v355 = vsel %vm353, %v313, 0
      %v358 = vsel %vm353, %v314, 0
      %v361 = vsel %vm353, %v315, 0
      %v364 = vsel %vm353, %v316, 0
      %v367 = vsel %vm353, %v317, 0
      %v370 = vsel %vm353, %v318, 0
      %v373 = vsel %vm353, %v319, 0
      %v376 = vsel %vm353, %v320, 0
      %v379 = vsel %vm353, %v321, 0
      %v382 = vsel %vm353, %v322, 0
      %v385 = vsel %vm353, %v323, 0
      %v388 = vsel %vm353, %v324, 0
      %v391 = vsel %vm353, %v325, 0
      %v394 = vsel %vm353, %v326, 0
      %v397 = vsel %vm353, %v327, 0
      %v400 = vsel %vm353, %v328, 0
      %402 = vmatprep.subr.bf16.mxu0 0
      %403 = vmatpush1.bf16.msra.mxu0 0
      %404 = vmatprep.subr.bf16.mxu0 0
      %405 = vmatpush1.bf16.msra.mxu0 0
      %406 = vmatprep.subr.bf16.mxu0 0
      %407 = vmatpush1.bf16.msra.mxu0 0
      %408 = vmatprep.subr.bf16.mxu0 0
      %409 = vmatpush1.bf16.msra.mxu0 0
      %410 = vmatprep.subr.bf16.mxu0 0
      %411 = vmatpush1.bf16.msra.mxu0 %v348
      %412 = vmatprep.subr.bf16.mxu0 0
      %413 = vmatpush1.bf16.msra.mxu0 %v347
      %414 = vmatprep.subr.bf16.mxu0 0
      %415 = vmatpush1.bf16.msra.mxu0 %v346
      %416 = vmatprep.subr.bf16.mxu0 0
      %417 = vmatpush1.bf16.msra.mxu0 %v345
      %418 = vmatprep.subr.bf16.mxu0 0
      %419 = vmatpush2.bf16.msra.mxu0 0
      %420 = vmatprep.subr.bf16.mxu0 0
      %421 = vmatpush2.bf16.msra.mxu0 0
      %422 = vmatprep.subr.bf16.mxu0 0
      %423 = vmatpush2.bf16.msra.mxu0 0
      %424 = vmatprep.subr.bf16.mxu0 0
      %425 = vmatpush2.bf16.msra.mxu0 0
      %426 = vmatprep.subr.bf16.mxu0 0
      %427 = vmatpush2.bf16.msra.mxu0 0
      %428 = vmatprep.subr.bf16.mxu0 0
      %429 = vmatpush2.bf16.msra.mxu0 0
      %430 = vmatprep.subr.bf16.mxu0 0
      %431 = vmatpush2.bf16.msra.mxu0 0
      %432 = vmatprep.subr.bf16.mxu0 0
      %433 = vmatpush2.bf16.msra.mxu0 0
      %434 = vmatprep.mubr.bf16.mxu0 0
      %435 = vmatmul.mubr.bf16.gmra.mxu0 %v355
      %v436 = vpop.f32.mrf.mxu0
      %v437 = vadd.f32 %v247, %v436
      %v438 = vpop.f32.mrf.mxu0
      %v439 = vpop.f32.mrf.mxu0
      %v440 = vadd.f32 %v247, %v439
      %v441 = vpop.f32.mrf.mxu0
      %442 = vmatprep.mubr.bf16.mxu0 0
      %443 = vmatmul.mubr.bf16.gmra.mxu0 %v358
      %v444 = vpop.f32.mrf.mxu0
      %v445 = vadd.f32 %v247, %v444
      %v446 = vpop.f32.mrf.mxu0
      %v447 = vpop.f32.mrf.mxu0
      %v448 = vadd.f32 %v247, %v447
      %v449 = vpop.f32.mrf.mxu0
      %450 = vmatprep.mubr.bf16.mxu0 0
      %451 = vmatmul.mubr.bf16.gmra.mxu0 %v361
      %v452 = vpop.f32.mrf.mxu0
      %v453 = vadd.f32 %v247, %v452
      %v454 = vpop.f32.mrf.mxu0
      %v455 = vpop.f32.mrf.mxu0
      %v456 = vadd.f32 %v247, %v455
      %v457 = vpop.f32.mrf.mxu0
      %458 = vmatprep.mubr.bf16.mxu0 0
      %459 = vmatmul.mubr.bf16.gmra.mxu0 %v364
      %v460 = vpop.f32.mrf.mxu0
      %v461 = vadd.f32 %v247, %v460
      %v462 = vpop.f32.mrf.mxu0
      %v463 = vpop.f32.mrf.mxu0
      %v464 = vadd.f32 %v247, %v463
      %v465 = vpop.f32.mrf.mxu0
      %466 = vmatprep.mubr.bf16.mxu0 0
      %467 = vmatmul.mubr.bf16.gmra.mxu0 %v367
      %v468 = vpop.f32.mrf.mxu0
      %v469 = vadd.f32 %v247, %v468
      %v470 = vpop.f32.mrf.mxu0
      %v471 = vpop.f32.mrf.mxu0
      %v472 = vadd.f32 %v247, %v471
      %v473 = vpop.f32.mrf.mxu0
      %474 = vmatprep.mubr.bf16.mxu0 0
      %475 = vmatmul.mubr.bf16.gmra.mxu0 %v370
      %v476 = vpop.f32.mrf.mxu0
      %v477 = vadd.f32 %v247, %v476
      %v478 = vpop.f32.mrf.mxu0
      %v479 = vpop.f32.mrf.mxu0
      %v480 = vadd.f32 %v247, %v479
      %v481 = vpop.f32.mrf.mxu0
      %482 = vmatprep.mubr.bf16.mxu0 0
      %483 = vmatmul.mubr.bf16.gmra.mxu0 %v373
      %v484 = vpop.f32.mrf.mxu0
      %v485 = vadd.f32 %v247, %v484
      %v486 = vpop.f32.mrf.mxu0
      %v487 = vpop.f32.mrf.mxu0
      %v488 = vadd.f32 %v247, %v487
      %v489 = vpop.f32.mrf.mxu0
      %490 = vmatprep.mubr.bf16.mxu0 0
      %491 = vmatmul.mubr.bf16.gmra.mxu0 %v376
      %v492 = vpop.f32.mrf.mxu0
      %v493 = vadd.f32 %v247, %v492
      %v494 = vpop.f32.mrf.mxu0
      %v495 = vpop.f32.mrf.mxu0
      %v496 = vadd.f32 %v247, %v495
      %v497 = vpop.f32.mrf.mxu0
      %498 = vmatprep.mubr.bf16.mxu0 0
      %499 = vmatmul.mubr.bf16.gmra.mxu0 %v379
      %v500 = vpop.f32.mrf.mxu0
      %v501 = vadd.f32 %v247, %v500
      %v502 = vpop.f32.mrf.mxu0
      %v503 = vpop.f32.mrf.mxu0
      %v504 = vadd.f32 %v247, %v503
      %v505 = vpop.f32.mrf.mxu0
      %506 = vmatprep.mubr.bf16.mxu0 0
      %507 = vmatmul.mubr.bf16.gmra.mxu0 %v382
      %v508 = vpop.f32.mrf.mxu0
      %v509 = vadd.f32 %v247, %v508
      %v510 = vpop.f32.mrf.mxu0
      %v511 = vpop.f32.mrf.mxu0
      %v512 = vadd.f32 %v247, %v511
      %v513 = vpop.f32.mrf.mxu0
      %514 = vmatprep.mubr.bf16.mxu0 0
      %515 = vmatmul.mubr.bf16.gmra.mxu0 %v385
      %v516 = vpop.f32.mrf.mxu0
      %v517 = vadd.f32 %v247, %v516
      %v518 = vpop.f32.mrf.mxu0
      %v519 = vpop.f32.mrf.mxu0
      %v520 = vadd.f32 %v247, %v519
      %v521 = vpop.f32.mrf.mxu0
      %522 = vmatprep.mubr.bf16.mxu0 0
      %523 = vmatmul.mubr.bf16.gmra.mxu0 %v388
      %v524 = vpop.f32.mrf.mxu0
      %v525 = vadd.f32 %v247, %v524
      %v526 = vpop.f32.mrf.mxu0
      %v527 = vpop.f32.mrf.mxu0
      %v528 = vadd.f32 %v247, %v527
      %v529 = vpop.f32.mrf.mxu0
      %530 = vmatprep.mubr.bf16.mxu0 0
      %531 = vmatmul.mubr.bf16.gmra.mxu0 %v391
      %v532 = vpop.f32.mrf.mxu0
      %v533 = vadd.f32 %v247, %v532
      %v534 = vpop.f32.mrf.mxu0
      %v535 = vpop.f32.mrf.mxu0
      %v536 = vadd.f32 %v247, %v535
      %v537 = vpop.f32.mrf.mxu0
      %538 = vmatprep.mubr.bf16.mxu0 0
      %539 = vmatmul.mubr.bf16.gmra.mxu0 %v394
      %v540 = vpop.f32.mrf.mxu0
      %v541 = vadd.f32 %v247, %v540
      %v542 = vpop.f32.mrf.mxu0
      %v543 = vpop.f32.mrf.mxu0
      %v544 = vadd.f32 %v247, %v543
      %v545 = vpop.f32.mrf.mxu0
      %546 = vmatprep.mubr.bf16.mxu0 0
      %547 = vmatmul.mubr.bf16.gmra.mxu0 %v397
      %v548 = vpop.f32.mrf.mxu0
      %v549 = vadd.f32 %v247, %v548
      %v550 = vpop.f32.mrf.mxu0
      %v551 = vpop.f32.mrf.mxu0
      %v552 = vadd.f32 %v247, %v551
      %v553 = vpop.f32.mrf.mxu0
      %554 = vmatprep.mubr.bf16.mxu0 0
      %555 = vmatmul.mubr.bf16.gmra.mxu0 %v400
      %v556 = vpop.f32.mrf.mxu0
      %v557 = vadd.f32 %v247, %v556
      %v558 = vpop.f32.mrf.mxu0
      %v559 = vpop.f32.mrf.mxu0
      %v560 = vadd.f32 %v247, %v559
      %v561 = vpop.f32.mrf.mxu0
      %562 = vdwg.mxu0
      %v563 = vmax.f32 %v437, 0.0
      %v564 = vmax.f32 %v440, 0.0
      %v565 = vmax.f32 %v445, 0.0
      %v566 = vmax.f32 %v448, 0.0
      %v567 = vmax.f32 %v453, 0.0
      %v568 = vmax.f32 %v456, 0.0
      %v569 = vmax.f32 %v461, 0.0
      %v570 = vmax.f32 %v464, 0.0
      %v571 = vmax.f32 %v469, 0.0
      %v572 = vmax.f32 %v472, 0.0
      %v573 = vmax.f32 %v477, 0.0
      %v574 = vmax.f32 %v480, 0.0
      %v575 = vmax.f32 %v485, 0.0
      %v576 = vmax.f32 %v488, 0.0
      %v577 = vmax.f32 %v493, 0.0
      %v578 = vmax.f32 %v496, 0.0
      %v579 = vmax.f32 %v501, 0.0
      %v580 = vmax.f32 %v504, 0.0
      %v581 = vmax.f32 %v509, 0.0
      %v582 = vmax.f32 %v512, 0.0
      %v583 = vmax.f32 %v517, 0.0
      %v584 = vmax.f32 %v520, 0.0
      %v585 = vmax.f32 %v525, 0.0
      %v586 = vmax.f32 %v528, 0.0
      %v587 = vmax.f32 %v533, 0.0
      %v588 = vmax.f32 %v536, 0.0
      %v589 = vmax.f32 %v541, 0.0
      %v590 = vmax.f32 %v544, 0.0
      %v591 = vmax.f32 %v549, 0.0
      %v592 = vmax.f32 %v552, 0.0
      %v593 = vmax.f32 %v557, 0.0
      %v594 = vmax.f32 %v560, 0.0
      %v595 = vpack.c.bf16 %v564, %v563
      %v596 = vpack.c.bf16 %v566, %v565
      %v597 = vpack.c.bf16 %v568, %v567
      %v598 = vpack.c.bf16 %v570, %v569
      %v599 = vpack.c.bf16 %v572, %v571
      %v600 = vpack.c.bf16 %v574, %v573
      %v601 = vpack.c.bf16 %v576, %v575
      %v602 = vpack.c.bf16 %v578, %v577
      %v603 = vpack.c.bf16 %v580, %v579
      %v604 = vpack.c.bf16 %v582, %v581
      %v605 = vpack.c.bf16 %v584, %v583
      %v606 = vpack.c.bf16 %v586, %v585
      %v607 = vpack.c.bf16 %v588, %v587
      %v608 = vpack.c.bf16 %v590, %v589
      %v609 = vpack.c.bf16 %v592, %v591
      %v610 = vpack.c.bf16 %v594, %v593
      %v611 = vld [vmem:[%s3] sm:$0xf]
      %v612 = vld [vmem:[%s3 + $0x4] sm:$0xf]
      %v613 = vld [vmem:[%s3 + $0x8] sm:$0xf]
      %v614 = vld [vmem:[%s3 + $0xc] sm:$0xf]
      %v619 = vunpack.c.l.b16 %v611
      %v620 = vunpack.c.l.b16 %v612
      %v621 = vunpack.c.l.b16 %v613
      %v622 = vunpack.c.l.b16 %v614
      %v623 = vpack.c.b16 %v620, %v619
      %v624 = vpack.c.b16 %v622, %v621
      %vm627 = vcmask 261120
      %v629 = vsel %vm627, %v595, 0
      %v632 = vsel %vm627, %v596, 0
      %v635 = vsel %vm627, %v597, 0
      %v638 = vsel %vm627, %v598, 0
      %v641 = vsel %vm627, %v599, 0
      %v644 = vsel %vm627, %v600, 0
      %v647 = vsel %vm627, %v601, 0
      %v650 = vsel %vm627, %v602, 0
      %v653 = vsel %vm627, %v603, 0
      %v656 = vsel %vm627, %v604, 0
      %v659 = vsel %vm627, %v605, 0
      %v662 = vsel %vm627, %v606, 0
      %v665 = vsel %vm627, %v607, 0
      %v668 = vsel %vm627, %v608, 0
      %v671 = vsel %vm627, %v609, 0
      %v674 = vsel %vm627, %v610, 0
      %676 = vmatprep.subr.bf16.mxu0 0
      %677 = vmatpush1.bf16.msra.mxu0 0
      %678 = vmatprep.subr.bf16.mxu0 0
      %679 = vmatpush1.bf16.msra.mxu0 0
      %680 = vmatprep.subr.bf16.mxu0 0
      %681 = vmatpush1.bf16.msra.mxu0 0
      %682 = vmatprep.subr.bf16.mxu0 0
      %683 = vmatpush1.bf16.msra.mxu0 0
      %684 = vmatprep.subr.bf16.mxu0 0
      %685 = vmatpush1.bf16.msra.mxu0 0
      %686 = vmatprep.subr.bf16.mxu0 0
      %687 = vmatpush1.bf16.msra.mxu0 0
      %688 = vmatprep.subr.bf16.mxu0 0
      %689 = vmatpush1.bf16.msra.mxu0 %v624
      %690 = vmatprep.subr.bf16.mxu0 0
      %691 = vmatpush1.bf16.msra.mxu0 %v623
      %692 = vmatprep.subr.bf16.mxu0 0
      %693 = vmatpush2.bf16.msra.mxu0 0
      %694 = vmatprep.subr.bf16.mxu0 0
      %695 = vmatpush2.bf16.msra.mxu0 0
      %696 = vmatprep.subr.bf16.mxu0 0
      %697 = vmatpush2.bf16.msra.mxu0 0
      %698 = vmatprep.subr.bf16.mxu0 0
      %699 = vmatpush2.bf16.msra.mxu0 0
      %700 = vmatprep.subr.bf16.mxu0 0
      %701 = vmatpush2.bf16.msra.mxu0 0
      %702 = vmatprep.subr.bf16.mxu0 0
      %703 = vmatpush2.bf16.msra.mxu0 0
      %704 = vmatprep.subr.bf16.mxu0 0
      %705 = vmatpush2.bf16.msra.mxu0 0
      %706 = vmatprep.subr.bf16.mxu0 0
      %707 = vmatpush2.bf16.msra.mxu0 0
      %708 = vmatprep.mubr.bf16.mxu0 0
      %709 = vmatmul.mubr.bf16.gmra.mxu0 %v629
      %v710 = vpop.f32.mrf.mxu0
      %v711 = vadd.f32 0.0, %v710
      %v712 = vpop.f32.mrf.mxu0
      %v713 = vpop.f32.mrf.mxu0
      %v714 = vadd.f32 0.0, %v713
      %v715 = vpop.f32.mrf.mxu0
      %716 = vmatprep.mubr.bf16.mxu0 0
      %717 = vmatmul.mubr.bf16.gmra.mxu0 %v632
      %v718 = vpop.f32.mrf.mxu0
      %v719 = vadd.f32 0.0, %v718
      %v720 = vpop.f32.mrf.mxu0
      %v721 = vpop.f32.mrf.mxu0
      %v722 = vadd.f32 0.0, %v721
      %v723 = vpop.f32.mrf.mxu0
      %724 = vmatprep.mubr.bf16.mxu0 0
      %725 = vmatmul.mubr.bf16.gmra.mxu0 %v635
      %v726 = vpop.f32.mrf.mxu0
      %v727 = vadd.f32 0.0, %v726
      %v728 = vpop.f32.mrf.mxu0
      %v729 = vpop.f32.mrf.mxu0
      %v730 = vadd.f32 0.0, %v729
      %v731 = vpop.f32.mrf.mxu0
      %732 = vmatprep.mubr.bf16.mxu0 0
      %733 = vmatmul.mubr.bf16.gmra.mxu0 %v638
      %v734 = vpop.f32.mrf.mxu0
      %v735 = vadd.f32 0.0, %v734
      %v736 = vpop.f32.mrf.mxu0
      %v737 = vpop.f32.mrf.mxu0
      %v738 = vadd.f32 0.0, %v737
      %v739 = vpop.f32.mrf.mxu0
      %740 = vmatprep.mubr.bf16.mxu0 0
      %741 = vmatmul.mubr.bf16.gmra.mxu0 %v641
      %v742 = vpop.f32.mrf.mxu0
      %v743 = vadd.f32 0.0, %v742
      %v744 = vpop.f32.mrf.mxu0
      %v745 = vpop.f32.mrf.mxu0
      %v746 = vadd.f32 0.0, %v745
      %v747 = vpop.f32.mrf.mxu0
      %748 = vmatprep.mubr.bf16.mxu0 0
      %749 = vmatmul.mubr.bf16.gmra.mxu0 %v644
      %v750 = vpop.f32.mrf.mxu0
      %v751 = vadd.f32 0.0, %v750
      %v752 = vpop.f32.mrf.mxu0
      %v753 = vpop.f32.mrf.mxu0
      %v754 = vadd.f32 0.0, %v753
      %v755 = vpop.f32.mrf.mxu0
      %756 = vmatprep.mubr.bf16.mxu0 0
      %757 = vmatmul.mubr.bf16.gmra.mxu0 %v647
      %v758 = vpop.f32.mrf.mxu0
      %v759 = vadd.f32 0.0, %v758
      %v760 = vpop.f32.mrf.mxu0
      %v761 = vpop.f32.mrf.mxu0
      %v762 = vadd.f32 0.0, %v761
      %v763 = vpop.f32.mrf.mxu0
      %764 = vmatprep.mubr.bf16.mxu0 0
      %765 = vmatmul.mubr.bf16.gmra.mxu0 %v650
      %v766 = vpop.f32.mrf.mxu0
      %v767 = vadd.f32 0.0, %v766
      %v768 = vpop.f32.mrf.mxu0
      %v769 = vpop.f32.mrf.mxu0
      %v770 = vadd.f32 0.0, %v769
      %v771 = vpop.f32.mrf.mxu0
      %772 = vmatprep.mubr.bf16.mxu0 0
      %773 = vmatmul.mubr.bf16.gmra.mxu0 %v653
      %v774 = vpop.f32.mrf.mxu0
      %v775 = vadd.f32 0.0, %v774
      %v776 = vpop.f32.mrf.mxu0
      %v777 = vpop.f32.mrf.mxu0
      %v778 = vadd.f32 0.0, %v777
      %v779 = vpop.f32.mrf.mxu0
      %780 = vmatprep.mubr.bf16.mxu0 0
      %781 = vmatmul.mubr.bf16.gmra.mxu0 %v656
      %v782 = vpop.f32.mrf.mxu0
      %v783 = vadd.f32 0.0, %v782
      %v784 = vpop.f32.mrf.mxu0
      %v785 = vpop.f32.mrf.mxu0
      %v786 = vadd.f32 0.0, %v785
      %v787 = vpop.f32.mrf.mxu0
      %788 = vmatprep.mubr.bf16.mxu0 0
      %789 = vmatmul.mubr.bf16.gmra.mxu0 %v659
      %v790 = vpop.f32.mrf.mxu0
      %v791 = vadd.f32 0.0, %v790
      %v792 = vpop.f32.mrf.mxu0
      %v793 = vpop.f32.mrf.mxu0
      %v794 = vadd.f32 0.0, %v793
      %v795 = vpop.f32.mrf.mxu0
      %796 = vmatprep.mubr.bf16.mxu0 0
      %797 = vmatmul.mubr.bf16.gmra.mxu0 %v662
      %v798 = vpop.f32.mrf.mxu0
      %v799 = vadd.f32 0.0, %v798
      %v800 = vpop.f32.mrf.mxu0
      %v801 = vpop.f32.mrf.mxu0
      %v802 = vadd.f32 0.0, %v801
      %v803 = vpop.f32.mrf.mxu0
      %804 = vmatprep.mubr.bf16.mxu0 0
      %805 = vmatmul.mubr.bf16.gmra.mxu0 %v665
      %v806 = vpop.f32.mrf.mxu0
      %v807 = vadd.f32 0.0, %v806
      %v808 = vpop.f32.mrf.mxu0
      %v809 = vpop.f32.mrf.mxu0
      %v810 = vadd.f32 0.0, %v809
      %v811 = vpop.f32.mrf.mxu0
      %812 = vmatprep.mubr.bf16.mxu0 0
      %813 = vmatmul.mubr.bf16.gmra.mxu0 %v668
      %v814 = vpop.f32.mrf.mxu0
      %v815 = vadd.f32 0.0, %v814
      %v816 = vpop.f32.mrf.mxu0
      %v817 = vpop.f32.mrf.mxu0
      %v818 = vadd.f32 0.0, %v817
      %v819 = vpop.f32.mrf.mxu0
      %820 = vmatprep.mubr.bf16.mxu0 0
      %821 = vmatmul.mubr.bf16.gmra.mxu0 %v671
      %v822 = vpop.f32.mrf.mxu0
      %v823 = vadd.f32 0.0, %v822
      %v824 = vpop.f32.mrf.mxu0
      %v825 = vpop.f32.mrf.mxu0
      %v826 = vadd.f32 0.0, %v825
      %v827 = vpop.f32.mrf.mxu0
      %828 = vmatprep.mubr.bf16.mxu0 0
      %829 = vmatmul.mubr.bf16.gmra.mxu0 %v674
      %v830 = vpop.f32.mrf.mxu0
      %v831 = vadd.f32 0.0, %v830
      %v832 = vpop.f32.mrf.mxu0
      %v833 = vpop.f32.mrf.mxu0
      %v834 = vadd.f32 0.0, %v833
      %v835 = vpop.f32.mrf.mxu0
      %836 = vdwg.mxu0
      %v837 = vpack.c.bf16 %v714, %v711
      %v838 = vpack.c.bf16 %v722, %v719
      %v839 = vpack.c.bf16 %v730, %v727
      %v840 = vpack.c.bf16 %v738, %v735
      %v841 = vpack.c.bf16 %v746, %v743
      %v842 = vpack.c.bf16 %v754, %v751
      %v843 = vpack.c.bf16 %v762, %v759
      %v844 = vpack.c.bf16 %v770, %v767
      %v845 = vpack.c.bf16 %v778, %v775
      %v846 = vpack.c.bf16 %v786, %v783
      %v847 = vpack.c.bf16 %v794, %v791
      %v848 = vpack.c.bf16 %v802, %v799
      %v849 = vpack.c.bf16 %v810, %v807
      %v850 = vpack.c.bf16 %v818, %v815
      %v851 = vpack.c.bf16 %v826, %v823
      %v852 = vpack.c.bf16 %v834, %v831
      %v869 = vunpack.c.l.b16 %v837
      %v870 = vunpack.c.h.b16 %v837
      %v871 = vunpack.c.l.b16 %v838
      %v872 = vunpack.c.h.b16 %v838
      %v873 = vunpack.c.l.b16 %v839
      %v874 = vunpack.c.h.b16 %v839
      %v875 = vunpack.c.l.b16 %v840
      %v876 = vunpack.c.h.b16 %v840
      %v877 = vunpack.c.l.b16 %v841
      %v878 = vunpack.c.h.b16 %v841
      %v879 = vunpack.c.l.b16 %v842
      %v880 = vunpack.c.h.b16 %v842
      %v881 = vunpack.c.l.b16 %v843
      %v882 = vunpack.c.h.b16 %v843
      %v883 = vunpack.c.l.b16 %v844
      %v884 = vunpack.c.h.b16 %v844
      %v885 = vunpack.c.l.b16 %v845
      %v886 = vunpack.c.h.b16 %v845
      %v887 = vunpack.c.l.b16 %v846
      %v888 = vunpack.c.h.b16 %v846
      %v889 = vunpack.c.l.b16 %v847
      %v890 = vunpack.c.h.b16 %v847
      %v891 = vunpack.c.l.b16 %v848
      %v892 = vunpack.c.h.b16 %v848
      %v893 = vunpack.c.l.b16 %v849
      %v894 = vunpack.c.h.b16 %v849
      %v895 = vunpack.c.l.b16 %v850
      %v896 = vunpack.c.h.b16 %v850
      %v897 = vunpack.c.l.b16 %v851
      %v898 = vunpack.c.h.b16 %v851
      %v899 = vunpack.c.l.b16 %v852
      %v900 = vunpack.c.h.b16 %v852
      %v901 = vpack.c.b16 %v869, %v869
      %v902 = vpack.c.b16 %v870, %v870
      %v903 = vpack.c.b16 %v871, %v871
      %v904 = vpack.c.b16 %v872, %v872
      %v905 = vpack.c.b16 %v873, %v873
      %v906 = vpack.c.b16 %v874, %v874
      %v907 = vpack.c.b16 %v875, %v875
      %v908 = vpack.c.b16 %v876, %v876
      %v909 = vpack.c.b16 %v877, %v877
      %v910 = vpack.c.b16 %v878, %v878
      %v911 = vpack.c.b16 %v879, %v879
      %v912 = vpack.c.b16 %v880, %v880
      %v913 = vpack.c.b16 %v881, %v881
      %v914 = vpack.c.b16 %v882, %v882
      %v915 = vpack.c.b16 %v883, %v883
      %v916 = vpack.c.b16 %v884, %v884
      %v917 = vpack.c.b16 %v885, %v885
      %v918 = vpack.c.b16 %v886, %v886
      %v919 = vpack.c.b16 %v887, %v887
      %v920 = vpack.c.b16 %v888, %v888
      %v921 = vpack.c.b16 %v889, %v889
      %v922 = vpack.c.b16 %v890, %v890
      %v923 = vpack.c.b16 %v891, %v891
      %v924 = vpack.c.b16 %v892, %v892
      %v925 = vpack.c.b16 %v893, %v893
      %v926 = vpack.c.b16 %v894, %v894
      %v927 = vpack.c.b16 %v895, %v895
      %v928 = vpack.c.b16 %v896, %v896
      %v929 = vpack.c.b16 %v897, %v897
      %v930 = vpack.c.b16 %v898, %v898
      %v931 = vpack.c.b16 %v899, %v899
      %v932 = vpack.c.b16 %v900, %v900
      %vm965 = vcmask 257024
      %966 = vst.msk [vmem:[%s199] sm:$0xf] %vm965, %v901
      %967 = vst.msk [vmem:[%s199 + $0x4] sm:$0xf] %vm965, %v902
      %968 = vst.msk [vmem:[%s199 + $0x8] sm:$0xf] %vm965, %v903
      %969 = vst.msk [vmem:[%s199 + $0xc] sm:$0xf] %vm965, %v904
      %970 = vst.msk [vmem:[%s199 + $0x10] sm:$0xf] %vm965, %v905
      %971 = vst.msk [vmem:[%s199 + $0x14] sm:$0xf] %vm965, %v906
      %972 = vst.msk [vmem:[%s199 + $0x18] sm:$0xf] %vm965, %v907
      %973 = vst.msk [vmem:[%s199 + $0x1c] sm:$0xf] %vm965, %v908
      %974 = vst.msk [vmem:[%s199 + $0x20] sm:$0xf] %vm965, %v909
      %975 = vst.msk [vmem:[%s199 + $0x24] sm:$0xf] %vm965, %v910
      %976 = vst.msk [vmem:[%s199 + $0x28] sm:$0xf] %vm965, %v911
      %977 = vst.msk [vmem:[%s199 + $0x2c] sm:$0xf] %vm965, %v912
      %978 = vst.msk [vmem:[%s199 + $0x30] sm:$0xf] %vm965, %v913
      %979 = vst.msk [vmem:[%s199 + $0x34] sm:$0xf] %vm965, %v914
      %980 = vst.msk [vmem:[%s199 + $0x38] sm:$0xf] %vm965, %v915
      %981 = vst.msk [vmem:[%s199 + $0x3c] sm:$0xf] %vm965, %v916
      %982 = vst.msk [vmem:[%s199 + $0x40] sm:$0xf] %vm965, %v917
      %983 = vst.msk [vmem:[%s199 + $0x44] sm:$0xf] %vm965, %v918
      %984 = vst.msk [vmem:[%s199 + $0x48] sm:$0xf] %vm965, %v919
      %985 = vst.msk [vmem:[%s199 + $0x4c] sm:$0xf] %vm965, %v920
      %986 = vst.msk [vmem:[%s199 + $0x50] sm:$0xf] %vm965, %v921
      %987 = vst.msk [vmem:[%s199 + $0x54] sm:$0xf] %vm965, %v922
      %988 = vst.msk [vmem:[%s199 + $0x58] sm:$0xf] %vm965, %v923
      %989 = vst.msk [vmem:[%s199 + $0x5c] sm:$0xf] %vm965, %v924
      %990 = vst.msk [vmem:[%s199 + $0x60] sm:$0xf] %vm965, %v925
      %991 = vst.msk [vmem:[%s199 + $0x64] sm:$0xf] %vm965, %v926
      %992 = vst.msk [vmem:[%s199 + $0x68] sm:$0xf] %vm965, %v927
      %993 = vst.msk [vmem:[%s199 + $0x6c] sm:$0xf] %vm965, %v928
      %994 = vst.msk [vmem:[%s199 + $0x70] sm:$0xf] %vm965, %v929
      %995 = vst.msk [vmem:[%s199 + $0x74] sm:$0xf] %vm965, %v930
      %996 = vst.msk [vmem:[%s199 + $0x78] sm:$0xf] %vm965, %v931
      %997 = vst.msk [vmem:[%s199 + $0x7c] sm:$0xf] %vm965, %v932
      %s998 = smul.u32 32, %s15
      %p999 = scmp.lt.s32.totalorder %s998, 63
      %s1000 = scalar_select %p999, %s998, 63
      %s1001 = smul.addr %s1000, 4
      %s1002 = scalar_lea.vmem %s4, %s1001
      // Predicated region
      $region37: #{convgcn_forward.3} parent=35 // pred_check
        %p1003 = pneg %p122
      $region38: #{convgcn_forward.3} parent=35 // pred_check_branch
        %1005 = sbr.rel (%p1003) target = $region40
      $region39: #{convgcn_forward.3} parent=35 // pred_region
        %s1006 = smul.u32 32, %s15
      $region40: #{convgcn_forward.3} parent=35 // pred_fallthru
        _
    $region36: #{convgcn_forward.3} parent=5 // pred_fallthru
      _
    %p1007 = scmp.le.s32.totalorder 2, %s10
    // Predicated region
    $region41: #{convgcn_forward.3} parent=5 // pred_check
      %p1008 = pneg %p1007
    $region42: #{convgcn_forward.3} parent=5 // pred_check_branch
      %1010 = sbr.rel (%p1008) target = $region44
    $region43: #{convgcn_forward.3} parent=5 // pred_region
      %s1011 = ssub.s32 %s10, 2
      // Predicated region
      $region45: #{convgcn_forward.3} parent=43 // pred_check
        %p1012 = pneg %p128
      $region46: #{convgcn_forward.3} parent=43 // pred_check_branch
        %1014 = sbr.rel (%p1012) target = $region48
      $region47: #{convgcn_forward.3} parent=43 // pred_region
        %s1015 = smul.u32 32, %s16
        %p1016 = scmp.lt.s32.totalorder %s1015, 63
        %s1017 = scalar_select %p1016, %s1015, 63
        %s1018 = smul.addr %s1017, 4
        %s1019 = scalar_lea.vmem %s4, %s1018
      $region48: #{convgcn_forward.3} parent=43 // pred_fallthru
        _
    $region44: #{convgcn_forward.3} parent=5 // pred_fallthru
      _
  $region6: #{convgcn_forward.3} parent=0 // loop_footer
    %s14 = sadd.s32 1, %s10
  $region7: #{convgcn_forward.3} parent=0 // loop_footer_branch
    %9 = sbr.rel target = $region3
  $region8: #{convgcn_forward.3} parent=0 // loop_exit
    _

// kernel: convgcn_forward.4
$region0: #{convgcn_forward.4}
  #allocation0 [shape = 'u32[]', space=smem, size = 0x4, offset = 0x4, fixed_abs, tag = 'smem constant byte address 0x4 - core index']
  #allocation1 [shape = 'u32[144,128]{1,0:T(1,128)}', space=vmem, size = 0x12000, scoped, tag = 'internal scratch']
  #allocation2 [shape = 'f32[256,32]{1,0:T(8,128)}', space=vmem, size = 0x20000, scoped, tag = 'scratch operand']
  %s0 = inlined_call_operand.vmem [shape: bf16[512,512], index: 0, kind: input, shape index: {}]
  %s1 = inlined_call_operand.vmem [shape: bf16[512,32], index: 1, kind: input, shape index: {}]
  %s2 = inlined_call_operand.vmem [shape: f32[1,32], index: 2, kind: input, shape index: {}]
  %s3 = inlined_call_operand.vmem [shape: bf16[512,32], index: 3, kind: output, shape index: {}]
  %s4 = sld [smem:[#allocation0]]
  $region53: #{convgcn_forward.4} parent=0
    _
  %s6 = ssub.s32 1, %s4
  %s7 = scalar_select 0, %s6, %s4
  loop: start=0, step=1, limit=4
  $region2: #{convgcn_forward.4} parent=0 // loop_pre_header
    _
  $region3: #{convgcn_forward.4} parent=0 // loop_header
    %s9 = sphi 0, %s13
    %p10 = scmp.ge.s32.totalorder %s9, 4
    %s16 = sphi 0, %s28
    %s17 = sphi 0, %s24
    %s18 = sphi 0, %s16
    %s19 = sphi 0, %s17
    %s20 = sphi 0, %s18
    %s21 = sphi 0, %s19
    %s33 = sphi 0, %s35
    %s36 = sphi 0, %s33
    %s37 = sphi 0, %s36
    %s53 = sphi 0, %s37
    %s59 = sphi 0, %s61
    %s62 = sphi 0, %s59
    %s63 = sphi 0, %s62
    %s79 = sphi 0, %s63
    %s83 = sphi 0, %s83
    %s85 = sphi 0, %s83
    %s86 = sphi 0, %s85
    %s100 = sphi 0, %s86
    %s106 = sphi 0, %s108
    %s109 = sphi 0, %s106
    %s110 = sphi 0, %s109
    %s126 = sphi 0, %s110
  $region4: #{convgcn_forward.4} parent=0 // loop_header_branch
    %12 = sbr.rel (%p10) target = $region8
  $region5: #{convgcn_forward.4} parent=0 // loop_body
    %s14 = ssub.s32 %s9, 1
    %s15 = ssub.s32 %s9, 2
    %s22 = sadd.s32 1, %s17
    %p23 = scmp.ge.s32.totalorder %s22, 1
    %s24 = scalar_select %p23, 0, %s22
    %s25 = sadd.s32 1, %s16
    %s26 = scalar_select %p23, %s25, %s16
    %p27 = scmp.ge.s32.totalorder %s26, 2
    %s28 = scalar_select %p27, 0, %s26
    %s29 = ssub.s32 %s16, %s28
    %s30 = ssub.s32 %s17, %s24
    %s31 = sor.u32 %s29, %s30
    %p32 = scmp.eq.s32.totalorder %s31, 0
    %s34 = sadd.s32 %s33, 1
    %s35 = scalar_select %p32, %s33, %s34
    %p38 = pneg %p32
    %p39 = scmp.eq.s32.totalorder %s9, 1
    %p40 = por %p38, %p39
    %p41 = scmp.ne.s32.totalorder %s33, %s36
    %p42 = scmp.eq.s32.totalorder %s9, 0
    %p43 = por %p41, %p42
    %p44 = scmp.ne.s32.totalorder %s33, %s36
    %p45 = scmp.eq.s32.totalorder %s14, 1
    %p46 = por %p44, %p45
    %p47 = scmp.ne.s32.totalorder %s36, %s37
    %p48 = scmp.eq.s32.totalorder %s14, 0
    %p49 = por %p47, %p48
    %p50 = scmp.ne.s32.totalorder %s36, %s37
    %p51 = scmp.eq.s32.totalorder %s15, 1
    %p52 = por %p50, %p51
    %p54 = scmp.ne.s32.totalorder %s37, %s53
    %p55 = scmp.eq.s32.totalorder %s15, 0
    %p56 = por %p54, %p55
    %s57 = ssub.s32 %s17, %s24
    %p58 = scmp.eq.s32.totalorder %s57, 0
    %s60 = sadd.s32 %s59, 1
    %s61 = scalar_select %p58, %s59, %s60
    %p64 = pneg %p58
    %p65 = scmp.eq.s32.totalorder %s9, 1
    %p66 = por %p64, %p65
    %p67 = scmp.ne.s32.totalorder %s59, %s62
    %p68 = scmp.eq.s32.totalorder %s9, 0
    %p69 = por %p67, %p68
    %p70 = scmp.ne.s32.totalorder %s59, %s62
    %p71 = scmp.eq.s32.totalorder %s14, 1
    %p72 = por %p70, %p71
    %p73 = scmp.ne.s32.totalorder %s62, %s63
    %p74 = scmp.eq.s32.totalorder %s14, 0
    %p75 = por %p73, %p74
    %p76 = scmp.ne.s32.totalorder %s62, %s63
    %p77 = scmp.eq.s32.totalorder %s15, 1
    %p78 = por %p76, %p77
    %p80 = scmp.ne.s32.totalorder %s63, %s79
    %p81 = scmp.eq.s32.totalorder %s15, 0
    %p82 = por %p80, %p81
    %s84 = sadd.s32 %s83, 1
    %p87 = scmp.eq.s32.totalorder %s9, 1
    %p88 = scmp.ne.s32.totalorder %s83, %s85
    %p89 = scmp.eq.s32.totalorder %s9, 0
    %p90 = por %p88, %p89
    %p91 = scmp.ne.s32.totalorder %s83, %s85
    %p92 = scmp.eq.s32.totalorder %s14, 1
    %p93 = por %p91, %p92
    %p94 = scmp.ne.s32.totalorder %s85, %s86
    %p95 = scmp.eq.s32.totalorder %s14, 0
    %p96 = por %p94, %p95
    %p97 = scmp.ne.s32.totalorder %s85, %s86
    %p98 = scmp.eq.s32.totalorder %s15, 1
    %p99 = por %p97, %p98
    %p101 = scmp.ne.s32.totalorder %s86, %s100
    %p102 = scmp.eq.s32.totalorder %s15, 0
    %p103 = por %p101, %p102
    %s104 = ssub.s32 %s16, %s28
    %p105 = scmp.eq.s32.totalorder %s104, 0
    %s107 = sadd.s32 %s106, 1
    %s108 = scalar_select %p105, %s106, %s107
    %p111 = pneg %p105
    %p112 = scmp.eq.s32.totalorder %s9, 1
    %p113 = por %p111, %p112
    %p114 = scmp.ne.s32.totalorder %s106, %s109
    %p115 = scmp.eq.s32.totalorder %s9, 0
    %p116 = por %p114, %p115
    %p117 = scmp.ne.s32.totalorder %s106, %s109
    %p118 = scmp.eq.s32.totalorder %s14, 1
    %p119 = por %p117, %p118
    %p120 = scmp.ne.s32.totalorder %s109, %s110
    %p121 = scmp.eq.s32.totalorder %s14, 0
    %p122 = por %p120, %p121
    %p123 = scmp.ne.s32.totalorder %s109, %s110
    %p124 = scmp.eq.s32.totalorder %s15, 1
    %p125 = por %p123, %p124
    %p127 = scmp.ne.s32.totalorder %s110, %s126
    %p128 = scmp.eq.s32.totalorder %s15, 0
    %p129 = por %p127, %p128
    %p130 = scmp.le.s32.totalorder 1, %s9
    %p131 = scmp.lt.s32.totalorder %s9, 3
    %p132 = pnand %p130, %p131
    %p133 = pneg %p132
    // Predicated region
    $region9: #{convgcn_forward.4} parent=5 // pred_check
      _
    $region10: #{convgcn_forward.4} parent=5 // pred_check_branch
      %135 = sbr.rel (%p132) target = $region12
    $region11: #{convgcn_forward.4} parent=5 // pred_region
      %s136 = ssub.s32 %s9, 1
      // Predicated region
      $region13: #{convgcn_forward.4} parent=11 // pred_check
        %p137 = pneg %p75
      $region14: #{convgcn_forward.4} parent=11 // pred_check_branch
        %139 = sbr.rel (%p137) target = $region16
      $region15: #{convgcn_forward.4} parent=11 // pred_region
        %s140 = smul.u32 64, %s19
        %p141 = scmp.lt.s32.totalorder %s140, 63
        %s142 = scalar_select %p141, %s140, 63
        %s143 = smul.addr %s142, 4
        %s144 = scalar_lea.vmem %s1, %s143
        %s145 = smul.u32 64, %s19
      $region16: #{convgcn_forward.4} parent=11 // pred_fallthru
        _
      // Predicated region
      $region17: #{convgcn_forward.4} parent=11 // pred_check
        %p146 = pneg %p96
      $region18: #{convgcn_forward.4} parent=11 // pred_check_branch
        %148 = sbr.rel (%p146) target = $region20
      $region19: #{convgcn_forward.4} parent=11 // pred_region
        _
      $region20: #{convgcn_forward.4} parent=11 // pred_fallthru
        _
    $region12: #{convgcn_forward.4} parent=5 // pred_fallthru
      _
    %p149 = scmp.lt.s32.totalorder %s9, 2
    // Predicated region
    $region21: #{convgcn_forward.4} parent=5 // pred_check
      %p150 = pneg %p149
    $region22: #{convgcn_forward.4} parent=5 // pred_check_branch
      %152 = sbr.rel (%p150) target = $region24
    $region23: #{convgcn_forward.4} parent=5 // pred_region
      // Predicated region
      $region25: #{convgcn_forward.4} parent=23 // pred_check
        %p153 = pneg %p43
      $region26: #{convgcn_forward.4} parent=23 // pred_check_branch
        %155 = sbr.rel (%p153) target = $region28
      $region27: #{convgcn_forward.4} parent=23 // pred_region
        %s156 = smul.u32 32, %s16
        %s157 = smul.u32 4, %s17
        %p158 = scmp.lt.s32.totalorder %s156, 63
        %s159 = scalar_select %p158, %s156, 63
        %p160 = scmp.lt.s32.totalorder %s157, 3
        %s161 = scalar_select %p160, %s157, 3
        %s162 = smul.addr %s159, 4
        %s163 = sadd.s32 %s161, %s162
        %s164 = smul.addr %s163, 4
        %s165 = scalar_lea.vmem %s0, %s164
        %s166 = smul.u32 32, %s16
        %s167 = smul.u32 4, %s17
      $region28: #{convgcn_forward.4} parent=23 // pred_fallthru
        _
    $region24: #{convgcn_forward.4} parent=5 // pred_fallthru
      _
    %p168 = scmp.le.s32.totalorder 1, %s9
    %p169 = scmp.lt.s32.totalorder %s9, 3
    %p170 = pnand %p168, %p169
    %p171 = pneg %p170
    // Predicated region
    $region29: #{convgcn_forward.4} parent=5 // pred_check
      _
    $region30: #{convgcn_forward.4} parent=5 // pred_check_branch
      %173 = sbr.rel (%p170) target = $region32
    $region31: #{convgcn_forward.4} parent=5 // pred_region
      %s174 = ssub.s32 %s9, 1
      %s175 = smul.u32 32, %s18
      %s176 = smul.u32 4, %s19
      %p177 = scmp.lt.s32.totalorder %s175, 63
      %s178 = scalar_select %p177, %s175, 63
      %p179 = scmp.lt.s32.totalorder %s176, 3
      %s180 = scalar_select %p179, %s176, 3
      %s181 = smul.addr %s178, 4
      %s182 = sadd.s32 %s180, %s181
      %s183 = smul.addr %s182, 4
      %s184 = scalar_lea.vmem %s0, %s183
      %p185 = pneg %p49
      %p186 = pneg %p46
      %s187 = smul.u32 64, %s19
      %p188 = scmp.lt.s32.totalorder %s187, 63
      %s189 = scalar_select %p188, %s187, 63
      %s190 = smul.addr %s189, 4
      %s191 = scalar_lea.vmem %s1, %s190
      %p192 = pneg %p75
      %p193 = pneg %p72
      %p194 = pneg %p96
      %p195 = pneg %p93
      %p196 = pneg %p122
      %p197 = pneg %p119
      %s198 = smul.u32 32, %s18
      %p199 = scmp.lt.s32.totalorder %s198, 63
      %s200 = scalar_select %p199, %s198, 63
      %s201 = smul.addr %s200, 4
      %s202 = scalar_lea.vmem %s3, %s201
      %s203 = smul.u32 32, %s18
      %s204 = smul.u32 4, %s19
      %p205 = scmp.lt.s32.totalorder %s203, 63
      %s206 = scalar_select %p205, %s203, 63
      %p207 = scmp.lt.s32.totalorder %s204, 3
      %s208 = scalar_select %p207, %s204, 3
      %s209 = smul.addr %s206, 4
      %s210 = sadd.s32 %s208, %s209
      %s211 = smul.addr %s210, 4
      %s212 = scalar_lea.vmem %s0, %s211
      %s213 = smul.u32 32, %s18
      %s214 = smul.u32 4, %s19
      %s215 = smul.u32 64, %s19
      %p216 = scmp.lt.s32.totalorder %s215, 63
      %s217 = scalar_select %p216, %s215, 63
      %s218 = smul.addr %s217, 4
      %s219 = scalar_lea.vmem %s1, %s218
      %s220 = smul.u32 64, %s19
      %s221 = smul.u32 32, %s18
      %p222 = scmp.lt.s32.totalorder %s221, 63
      %s223 = scalar_select %p222, %s221, 63
      %s224 = smul.addr %s223, 4
      %s225 = scalar_lea.vmem %s3, %s224
      %s226 = smul.u32 32, %s18
      %p228 = scmp.eq.s32.totalorder %s19, 0
      // Predicated region
      $region33: #{convgcn_forward.4} parent=31 // pred_check
        %p229 = pneg %p228
      $region34: #{convgcn_forward.4} parent=31 // pred_check_branch
        %231 = sbr.rel (%p229) target = $region36
      $region35: #{convgcn_forward.4} parent=31 // pred_region
        %vm232 = vcmask 261120
        %233 = vst.msk [vmem:[#allocation2] sm:$0xff] %vm232, 0.0
        %234 = vst.msk [vmem:[#allocation2 + $0x8] sm:$0xff] %vm232, 0.0
        %235 = vst.msk [vmem:[#allocation2 + $0x10] sm:$0xff] %vm232, 0.0
        %236 = vst.msk [vmem:[#allocation2 + $0x18] sm:$0xff] %vm232, 0.0
        %237 = vst.msk [vmem:[#allocation2 + $0x20] sm:$0xff] %vm232, 0.0
        %238 = vst.msk [vmem:[#allocation2 + $0x28] sm:$0xff] %vm232, 0.0
        %239 = vst.msk [vmem:[#allocation2 + $0x30] sm:$0xff] %vm232, 0.0
        %240 = vst.msk [vmem:[#allocation2 + $0x38] sm:$0xff] %vm232, 0.0
        %241 = vst.msk [vmem:[#allocation2 + $0x40] sm:$0xff] %vm232, 0.0
        %242 = vst.msk [vmem:[#allocation2 + $0x48] sm:$0xff] %vm232, 0.0
        %243 = vst.msk [vmem:[#allocation2 + $0x50] sm:$0xff] %vm232, 0.0
        %244 = vst.msk [vmem:[#allocation2 + $0x58] sm:$0xff] %vm232, 0.0
        %245 = vst.msk [vmem:[#allocation2 + $0x60] sm:$0xff] %vm232, 0.0
        %246 = vst.msk [vmem:[#allocation2 + $0x68] sm:$0xff] %vm232, 0.0
        %247 = vst.msk [vmem:[#allocation2 + $0x70] sm:$0xff] %vm232, 0.0
        %248 = vst.msk [vmem:[#allocation2 + $0x78] sm:$0xff] %vm232, 0.0
        %249 = vst.msk [vmem:[#allocation2 + $0x80] sm:$0xff] %vm232, 0.0
        %250 = vst.msk [vmem:[#allocation2 + $0x88] sm:$0xff] %vm232, 0.0
        %251 = vst.msk [vmem:[#allocation2 + $0x90] sm:$0xff] %vm232, 0.0
        %252 = vst.msk [vmem:[#allocation2 + $0x98] sm:$0xff] %vm232, 0.0
        %253 = vst.msk [vmem:[#allocation2 + $0xa0] sm:$0xff] %vm232, 0.0
        %254 = vst.msk [vmem:[#allocation2 + $0xa8] sm:$0xff] %vm232, 0.0
        %255 = vst.msk [vmem:[#allocation2 + $0xb0] sm:$0xff] %vm232, 0.0
        %256 = vst.msk [vmem:[#allocation2 + $0xb8] sm:$0xff] %vm232, 0.0
        %257 = vst.msk [vmem:[#allocation2 + $0xc0] sm:$0xff] %vm232, 0.0
        %258 = vst.msk [vmem:[#allocation2 + $0xc8] sm:$0xff] %vm232, 0.0
        %259 = vst.msk [vmem:[#allocation2 + $0xd0] sm:$0xff] %vm232, 0.0
        %260 = vst.msk [vmem:[#allocation2 + $0xd8] sm:$0xff] %vm232, 0.0
        %261 = vst.msk [vmem:[#allocation2 + $0xe0] sm:$0xff] %vm232, 0.0
        %262 = vst.msk [vmem:[#allocation2 + $0xe8] sm:$0xff] %vm232, 0.0
        %263 = vst.msk [vmem:[#allocation2 + $0xf0] sm:$0xff] %vm232, 0.0
        %264 = vst.msk [vmem:[#allocation2 + $0xf8] sm:$0xff] %vm232, 0.0
      $region36: #{convgcn_forward.4} parent=31 // pred_fallthru
        _
      %v265 = vld [vmem:[#allocation2] sm:$0xff]
      %v266 = vld [vmem:[#allocation2 + $0x8] sm:$0xff]
      %v267 = vld [vmem:[#allocation2 + $0x10] sm:$0xff]
      %v268 = vld [vmem:[#allocation2 + $0x18] sm:$0xff]
      %v269 = vld [vmem:[#allocation2 + $0x20] sm:$0xff]
      %v270 = vld [vmem:[#allocation2 + $0x28] sm:$0xff]
      %v271 = vld [vmem:[#allocation2 + $0x30] sm:$0xff]
      %v272 = vld [vmem:[#allocation2 + $0x38] sm:$0xff]
      %v273 = vld [vmem:[#allocation2 + $0x40] sm:$0xff]
      %v274 = vld [vmem:[#allocation2 + $0x48] sm:$0xff]
      %v275 = vld [vmem:[#allocation2 + $0x50] sm:$0xff]
      %v276 = vld [vmem:[#allocation2 + $0x58] sm:$0xff]
      %v277 = vld [vmem:[#allocation2 + $0x60] sm:$0xff]
      %v278 = vld [vmem:[#allocation2 + $0x68] sm:$0xff]
      %v279 = vld [vmem:[#allocation2 + $0x70] sm:$0xff]
      %v280 = vld [vmem:[#allocation2 + $0x78] sm:$0xff]
      %v281 = vld [vmem:[#allocation2 + $0x80] sm:$0xff]
      %v282 = vld [vmem:[#allocation2 + $0x88] sm:$0xff]
      %v283 = vld [vmem:[#allocation2 + $0x90] sm:$0xff]
      %v284 = vld [vmem:[#allocation2 + $0x98] sm:$0xff]
      %v285 = vld [vmem:[#allocation2 + $0xa0] sm:$0xff]
      %v286 = vld [vmem:[#allocation2 + $0xa8] sm:$0xff]
      %v287 = vld [vmem:[#allocation2 + $0xb0] sm:$0xff]
      %v288 = vld [vmem:[#allocation2 + $0xb8] sm:$0xff]
      %v289 = vld [vmem:[#allocation2 + $0xc0] sm:$0xff]
      %v290 = vld [vmem:[#allocation2 + $0xc8] sm:$0xff]
      %v291 = vld [vmem:[#allocation2 + $0xd0] sm:$0xff]
      %v292 = vld [vmem:[#allocation2 + $0xd8] sm:$0xff]
      %v293 = vld [vmem:[#allocation2 + $0xe0] sm:$0xff]
      %v294 = vld [vmem:[#allocation2 + $0xe8] sm:$0xff]
      %v295 = vld [vmem:[#allocation2 + $0xf0] sm:$0xff]
      %v296 = vld [vmem:[#allocation2 + $0xf8] sm:$0xff]
      %v297 = vld [vmem:[%s212] sm:$0xff]
      %v298 = vld [vmem:[%s212 + $0x8] sm:$0xff]
      %v299 = vld [vmem:[%s212 + $0x10] sm:$0xff]
      %v300 = vld [vmem:[%s212 + $0x18] sm:$0xff]
      %v301 = vld [vmem:[%s212 + $0x20] sm:$0xff]
      %v302 = vld [vmem:[%s212 + $0x28] sm:$0xff]
      %v303 = vld [vmem:[%s212 + $0x30] sm:$0xff]
      %v304 = vld [vmem:[%s212 + $0x38] sm:$0xff]
      %v305 = vld [vmem:[%s212 + $0x40] sm:$0xff]
      %v306 = vld [vmem:[%s212 + $0x48] sm:$0xff]
      %v307 = vld [vmem:[%s212 + $0x50] sm:$0xff]
      %v308 = vld [vmem:[%s212 + $0x58] sm:$0xff]
      %v309 = vld [vmem:[%s212 + $0x60] sm:$0xff]
      %v310 = vld [vmem:[%s212 + $0x68] sm:$0xff]
      %v311 = vld [vmem:[%s212 + $0x70] sm:$0xff]
      %v312 = vld [vmem:[%s212 + $0x78] sm:$0xff]
      %v313 = vld [vmem:[%s212 + $0x80] sm:$0xff]
      %v314 = vld [vmem:[%s212 + $0x88] sm:$0xff]
      %v315 = vld [vmem:[%s212 + $0x90] sm:$0xff]
      %v316 = vld [vmem:[%s212 + $0x98] sm:$0xff]
      %v317 = vld [vmem:[%s212 + $0xa0] sm:$0xff]
      %v318 = vld [vmem:[%s212 + $0xa8] sm:$0xff]
      %v319 = vld [vmem:[%s212 + $0xb0] sm:$0xff]
      %v320 = vld [vmem:[%s212 + $0xb8] sm:$0xff]
      %v321 = vld [vmem:[%s212 + $0xc0] sm:$0xff]
      %v322 = vld [vmem:[%s212 + $0xc8] sm:$0xff]
      %v323 = vld [vmem:[%s212 + $0xd0] sm:$0xff]
      %v324 = vld [vmem:[%s212 + $0xd8] sm:$0xff]
      %v325 = vld [vmem:[%s212 + $0xe0] sm:$0xff]
      %v326 = vld [vmem:[%s212 + $0xe8] sm:$0xff]
      %v327 = vld [vmem:[%s212 + $0xf0] sm:$0xff]
      %v328 = vld [vmem:[%s212 + $0xf8] sm:$0xff]
      %v329 = vld [vmem:[%s212 + $0x100] sm:$0xff]
      %v330 = vld [vmem:[%s212 + $0x108] sm:$0xff]
      %v331 = vld [vmem:[%s212 + $0x110] sm:$0xff]
      %v332 = vld [vmem:[%s212 + $0x118] sm:$0xff]
      %v333 = vld [vmem:[%s212 + $0x120] sm:$0xff]
      %v334 = vld [vmem:[%s212 + $0x128] sm:$0xff]
      %v335 = vld [vmem:[%s212 + $0x130] sm:$0xff]
      %v336 = vld [vmem:[%s212 + $0x138] sm:$0xff]
      %v337 = vld [vmem:[%s212 + $0x140] sm:$0xff]
      %v338 = vld [vmem:[%s212 + $0x148] sm:$0xff]
      %v339 = vld [vmem:[%s212 + $0x150] sm:$0xff]
      %v340 = vld [vmem:[%s212 + $0x158] sm:$0xff]
      %v341 = vld [vmem:[%s212 + $0x160] sm:$0xff]
      %v342 = vld [vmem:[%s212 + $0x168] sm:$0xff]
      %v343 = vld [vmem:[%s212 + $0x170] sm:$0xff]
      %v344 = vld [vmem:[%s212 + $0x178] sm:$0xff]
      %v345 = vld [vmem:[%s212 + $0x180] sm:$0xff]
      %v346 = vld [vmem:[%s212 + $0x188] sm:$0xff]
      %v347 = vld [vmem:[%s212 + $0x190] sm:$0xff]
      %v348 = vld [vmem:[%s212 + $0x198] sm:$0xff]
      %v349 = vld [vmem:[%s212 + $0x1a0] sm:$0xff]
      %v350 = vld [vmem:[%s212 + $0x1a8] sm:$0xff]
      %v351 = vld [vmem:[%s212 + $0x1b0] sm:$0xff]
      %v352 = vld [vmem:[%s212 + $0x1b8] sm:$0xff]
      %v353 = vld [vmem:[%s212 + $0x1c0] sm:$0xff]
      %v354 = vld [vmem:[%s212 + $0x1c8] sm:$0xff]
      %v355 = vld [vmem:[%s212 + $0x1d0] sm:$0xff]
      %v356 = vld [vmem:[%s212 + $0x1d8] sm:$0xff]
      %v357 = vld [vmem:[%s212 + $0x1e0] sm:$0xff]
      %v358 = vld [vmem:[%s212 + $0x1e8] sm:$0xff]
      %v359 = vld [vmem:[%s212 + $0x1f0] sm:$0xff]
      %v360 = vld [vmem:[%s212 + $0x1f8] sm:$0xff]
      %v361 = vld [vmem:[%s219] sm:$0xf]
      %v362 = vld [vmem:[%s219 + $0x4] sm:$0xf]
      %v363 = vld [vmem:[%s219 + $0x8] sm:$0xf]
      %v364 = vld [vmem:[%s219 + $0xc] sm:$0xf]
      %v365 = vld [vmem:[%s219 + $0x10] sm:$0xf]
      %v366 = vld [vmem:[%s219 + $0x14] sm:$0xf]
      %v367 = vld [vmem:[%s219 + $0x18] sm:$0xf]
      %v368 = vld [vmem:[%s219 + $0x1c] sm:$0xf]
      %v369 = vld [vmem:[%s219 + $0x20] sm:$0xf]
      %v370 = vld [vmem:[%s219 + $0x24] sm:$0xf]
      %v371 = vld [vmem:[%s219 + $0x28] sm:$0xf]
      %v372 = vld [vmem:[%s219 + $0x2c] sm:$0xf]
      %v373 = vld [vmem:[%s219 + $0x30] sm:$0xf]
      %v374 = vld [vmem:[%s219 + $0x34] sm:$0xf]
      %v375 = vld [vmem:[%s219 + $0x38] sm:$0xf]
      %v376 = vld [vmem:[%s219 + $0x3c] sm:$0xf]
      %v377 = vld [vmem:[%s219 + $0x40] sm:$0xf]
      %v378 = vld [vmem:[%s219 + $0x44] sm:$0xf]
      %v379 = vld [vmem:[%s219 + $0x48] sm:$0xf]
      %v380 = vld [vmem:[%s219 + $0x4c] sm:$0xf]
      %v381 = vld [vmem:[%s219 + $0x50] sm:$0xf]
      %v382 = vld [vmem:[%s219 + $0x54] sm:$0xf]
      %v383 = vld [vmem:[%s219 + $0x58] sm:$0xf]
      %v384 = vld [vmem:[%s219 + $0x5c] sm:$0xf]
      %v385 = vld [vmem:[%s219 + $0x60] sm:$0xf]
      %v386 = vld [vmem:[%s219 + $0x64] sm:$0xf]
      %v387 = vld [vmem:[%s219 + $0x68] sm:$0xf]
      %v388 = vld [vmem:[%s219 + $0x6c] sm:$0xf]
      %v389 = vld [vmem:[%s219 + $0x70] sm:$0xf]
      %v390 = vld [vmem:[%s219 + $0x74] sm:$0xf]
      %v391 = vld [vmem:[%s219 + $0x78] sm:$0xf]
      %v392 = vld [vmem:[%s219 + $0x7c] sm:$0xf]
      %v393 = vld [vmem:[%s219 + $0x80] sm:$0xf]
      %v394 = vld [vmem:[%s219 + $0x84] sm:$0xf]
      %v395 = vld [vmem:[%s219 + $0x88] sm:$0xf]
      %v396 = vld [vmem:[%s219 + $0x8c] sm:$0xf]
      %v397 = vld [vmem:[%s219 + $0x90] sm:$0xf]
      %v398 = vld [vmem:[%s219 + $0x94] sm:$0xf]
      %v399 = vld [vmem:[%s219 + $0x98] sm:$0xf]
      %v400 = vld [vmem:[%s219 + $0x9c] sm:$0xf]
      %v401 = vld [vmem:[%s219 + $0xa0] sm:$0xf]
      %v402 = vld [vmem:[%s219 + $0xa4] sm:$0xf]
      %v403 = vld [vmem:[%s219 + $0xa8] sm:$0xf]
      %v404 = vld [vmem:[%s219 + $0xac] sm:$0xf]
      %v405 = vld [vmem:[%s219 + $0xb0] sm:$0xf]
      %v406 = vld [vmem:[%s219 + $0xb4] sm:$0xf]
      %v407 = vld [vmem:[%s219 + $0xb8] sm:$0xf]
      %v408 = vld [vmem:[%s219 + $0xbc] sm:$0xf]
      %v409 = vld [vmem:[%s219 + $0xc0] sm:$0xf]
      %v410 = vld [vmem:[%s219 + $0xc4] sm:$0xf]
      %v411 = vld [vmem:[%s219 + $0xc8] sm:$0xf]
      %v412 = vld [vmem:[%s219 + $0xcc] sm:$0xf]
      %v413 = vld [vmem:[%s219 + $0xd0] sm:$0xf]
      %v414 = vld [vmem:[%s219 + $0xd4] sm:$0xf]
      %v415 = vld [vmem:[%s219 + $0xd8] sm:$0xf]
      %v416 = vld [vmem:[%s219 + $0xdc] sm:$0xf]
      %v417 = vld [vmem:[%s219 + $0xe0] sm:$0xf]
      %v418 = vld [vmem:[%s219 + $0xe4] sm:$0xf]
      %v419 = vld [vmem:[%s219 + $0xe8] sm:$0xf]
      %v420 = vld [vmem:[%s219 + $0xec] sm:$0xf]
      %v421 = vld [vmem:[%s219 + $0xf0] sm:$0xf]
      %v422 = vld [vmem:[%s219 + $0xf4] sm:$0xf]
      %v423 = vld [vmem:[%s219 + $0xf8] sm:$0xf]
      %v424 = vld [vmem:[%s219 + $0xfc] sm:$0xf]
      %v489 = vunpack.c.l.b16 %v297
      %v490 = vunpack.c.h.b16 %v297
      %v491 = vunpack.c.l.b16 %v298
      %v492 = vunpack.c.h.b16 %v298
      %v493 = vunpack.c.l.b16 %v299
      %v494 = vunpack.c.h.b16 %v299
      %v495 = vunpack.c.l.b16 %v300
      %v496 = vunpack.c.h.b16 %v300
      %v497 = vunpack.c.l.b16 %v301
      %v498 = vunpack.c.h.b16 %v301
      %v499 = vunpack.c.l.b16 %v302
      %v500 = vunpack.c.h.b16 %v302
      %v501 = vunpack.c.l.b16 %v303
      %v502 = vunpack.c.h.b16 %v303
      %v503 = vunpack.c.l.b16 %v304
      %v504 = vunpack.c.h.b16 %v304
      %v505 = vunpack.c.l.b16 %v305
      %v506 = vunpack.c.h.b16 %v305
      %v507 = vunpack.c.l.b16 %v306
      %v508 = vunpack.c.h.b16 %v306
      %v509 = vunpack.c.l.b16 %v307
      %v510 = vunpack.c.h.b16 %v307
      %v511 = vunpack.c.l.b16 %v308
      %v512 = vunpack.c.h.b16 %v308
      %v513 = vunpack.c.l.b16 %v309
      %v514 = vunpack.c.h.b16 %v309
      %v515 = vunpack.c.l.b16 %v310
      %v516 = vunpack.c.h.b16 %v310
      %v517 = vunpack.c.l.b16 %v311
      %v518 = vunpack.c.h.b16 %v311
      %v519 = vunpack.c.l.b16 %v312
      %v520 = vunpack.c.h.b16 %v312
      %v521 = vunpack.c.l.b16 %v313
      %v522 = vunpack.c.h.b16 %v313
      %v523 = vunpack.c.l.b16 %v314
      %v524 = vunpack.c.h.b16 %v314
      %v525 = vunpack.c.l.b16 %v315
      %v526 = vunpack.c.h.b16 %v315
      %v527 = vunpack.c.l.b16 %v316
      %v528 = vunpack.c.h.b16 %v316
      %v529 = vunpack.c.l.b16 %v317
      %v530 = vunpack.c.h.b16 %v317
      %v531 = vunpack.c.l.b16 %v318
      %v532 = vunpack.c.h.b16 %v318
      %v533 = vunpack.c.l.b16 %v319
      %v534 = vunpack.c.h.b16 %v319
      %v535 = vunpack.c.l.b16 %v320
      %v536 = vunpack.c.h.b16 %v320
      %v537 = vunpack.c.l.b16 %v321
      %v538 = vunpack.c.h.b16 %v321
      %v539 = vunpack.c.l.b16 %v322
      %v540 = vunpack.c.h.b16 %v322
      %v541 = vunpack.c.l.b16 %v323
      %v542 = vunpack.c.h.b16 %v323
      %v543 = vunpack.c.l.b16 %v324
      %v544 = vunpack.c.h.b16 %v324
      %v545 = vunpack.c.l.b16 %v325
      %v546 = vunpack.c.h.b16 %v325
      %v547 = vunpack.c.l.b16 %v326
      %v548 = vunpack.c.h.b16 %v326
      %v549 = vunpack.c.l.b16 %v327
      %v550 = vunpack.c.h.b16 %v327
      %v551 = vunpack.c.l.b16 %v328
      %v552 = vunpack.c.h.b16 %v328
      %v553 = vunpack.c.l.b16 %v329
      %v554 = vunpack.c.h.b16 %v329
      %v555 = vunpack.c.l.b16 %v330
      %v556 = vunpack.c.h.b16 %v330
      %v557 = vunpack.c.l.b16 %v331
      %v558 = vunpack.c.h.b16 %v331
      %v559 = vunpack.c.l.b16 %v332
      %v560 = vunpack.c.h.b16 %v332
      %v561 = vunpack.c.l.b16 %v333
      %v562 = vunpack.c.h.b16 %v333
      %v563 = vunpack.c.l.b16 %v334
      %v564 = vunpack.c.h.b16 %v334
      %v565 = vunpack.c.l.b16 %v335
      %v566 = vunpack.c.h.b16 %v335
      %v567 = vunpack.c.l.b16 %v336
      %v568 = vunpack.c.h.b16 %v336
      %v569 = vunpack.c.l.b16 %v337
      %v570 = vunpack.c.h.b16 %v337
      %v571 = vunpack.c.l.b16 %v338
      %v572 = vunpack.c.h.b16 %v338
      %v573 = vunpack.c.l.b16 %v339
      %v574 = vunpack.c.h.b16 %v339
      %v575 = vunpack.c.l.b16 %v340
      %v576 = vunpack.c.h.b16 %v340
      %v577 = vunpack.c.l.b16 %v341
      %v578 = vunpack.c.h.b16 %v341
      %v579 = vunpack.c.l.b16 %v342
      %v580 = vunpack.c.h.b16 %v342
      %v581 = vunpack.c.l.b16 %v343
      %v582 = vunpack.c.h.b16 %v343
      %v583 = vunpack.c.l.b16 %v344
      %v584 = vunpack.c.h.b16 %v344
      %v585 = vunpack.c.l.b16 %v345
      %v586 = vunpack.c.h.b16 %v345
      %v587 = vunpack.c.l.b16 %v346
      %v588 = vunpack.c.h.b16 %v346
      %v589 = vunpack.c.l.b16 %v347
      %v590 = vunpack.c.h.b16 %v347
      %v591 = vunpack.c.l.b16 %v348
      %v592 = vunpack.c.h.b16 %v348
      %v593 = vunpack.c.l.b16 %v349
      %v594 = vunpack.c.h.b16 %v349
      %v595 = vunpack.c.l.b16 %v350
      %v596 = vunpack.c.h.b16 %v350
      %v597 = vunpack.c.l.b16 %v351
      %v598 = vunpack.c.h.b16 %v351
      %v599 = vunpack.c.l.b16 %v352
      %v600 = vunpack.c.h.b16 %v352
      %v601 = vunpack.c.l.b16 %v353
      %v602 = vunpack.c.h.b16 %v353
      %v603 = vunpack.c.l.b16 %v354
      %v604 = vunpack.c.h.b16 %v354
      %v605 = vunpack.c.l.b16 %v355
      %v606 = vunpack.c.h.b16 %v355
      %v607 = vunpack.c.l.b16 %v356
      %v608 = vunpack.c.h.b16 %v356
      %v609 = vunpack.c.l.b16 %v357
      %v610 = vunpack.c.h.b16 %v357
      %v611 = vunpack.c.l.b16 %v358
      %v612 = vunpack.c.h.b16 %v358
      %v613 = vunpack.c.l.b16 %v359
      %v614 = vunpack.c.h.b16 %v359
      %v615 = vunpack.c.l.b16 %v360
      %v616 = vunpack.c.h.b16 %v360
      %v617 = vpack.c.b16 %v493, %v489
      %v618 = vpack.c.b16 %v494, %v490
      %v619 = vpack.c.b16 %v495, %v491
      %v620 = vpack.c.b16 %v496, %v492
      %v621 = vpack.c.b16 %v501, %v497
      %v622 = vpack.c.b16 %v502, %v498
      %v623 = vpack.c.b16 %v503, %v499
      %v624 = vpack.c.b16 %v504, %v500
      %v625 = vpack.c.b16 %v509, %v505
      %v626 = vpack.c.b16 %v510, %v506
      %v627 = vpack.c.b16 %v511, %v507
      %v628 = vpack.c.b16 %v512, %v508
      %v629 = vpack.c.b16 %v517, %v513
      %v630 = vpack.c.b16 %v518, %v514
      %v631 = vpack.c.b16 %v519, %v515
      %v632 = vpack.c.b16 %v520, %v516
      %v633 = vpack.c.b16 %v525, %v521
      %v634 = vpack.c.b16 %v526, %v522
      %v635 = vpack.c.b16 %v527, %v523
      %v636 = vpack.c.b16 %v528, %v524
      %v637 = vpack.c.b16 %v533, %v529
      %v638 = vpack.c.b16 %v534, %v530
      %v639 = vpack.c.b16 %v535, %v531
      %v640 = vpack.c.b16 %v536, %v532
      %v641 = vpack.c.b16 %v541, %v537
      %v642 = vpack.c.b16 %v542, %v538
      %v643 = vpack.c.b16 %v543, %v539
      %v644 = vpack.c.b16 %v544, %v540
      %v645 = vpack.c.b16 %v549, %v545
      %v646 = vpack.c.b16 %v550, %v546
      %v647 = vpack.c.b16 %v551, %v547
      %v648 = vpack.c.b16 %v552, %v548
      %v649 = vpack.c.b16 %v557, %v553
      %v650 = vpack.c.b16 %v558, %v554
      %v651 = vpack.c.b16 %v559, %v555
      %v652 = vpack.c.b16 %v560, %v556
      %v653 = vpack.c.b16 %v565, %v561
      %v654 = vpack.c.b16 %v566, %v562
      %v655 = vpack.c.b16 %v567, %v563
      %v656 = vpack.c.b16 %v568, %v564
      %v657 = vpack.c.b16 %v573, %v569
      %v658 = vpack.c.b16 %v574, %v570
      %v659 = vpack.c.b16 %v575, %v571
      %v660 = vpack.c.b16 %v576, %v572
      %v661 = vpack.c.b16 %v581, %v577
      %v662 = vpack.c.b16 %v582, %v578
      %v663 = vpack.c.b16 %v583, %v579
      %v664 = vpack.c.b16 %v584, %v580
      %v665 = vpack.c.b16 %v589, %v585
      %v666 = vpack.c.b16 %v590, %v586
      %v667 = vpack.c.b16 %v591, %v587
      %v668 = vpack.c.b16 %v592, %v588
      %v669 = vpack.c.b16 %v597, %v593
      %v670 = vpack.c.b16 %v598, %v594
      %v671 = vpack.c.b16 %v599, %v595
      %v672 = vpack.c.b16 %v600, %v596
      %v673 = vpack.c.b16 %v605, %v601
      %v674 = vpack.c.b16 %v606, %v602
      %v675 = vpack.c.b16 %v607, %v603
      %v676 = vpack.c.b16 %v608, %v604
      %v677 = vpack.c.b16 %v613, %v609
      %v678 = vpack.c.b16 %v614, %v610
      %v679 = vpack.c.b16 %v615, %v611
      %v680 = vpack.c.b16 %v616, %v612
      %v809 = vunpack.c.l.b16 %v361
      %v810 = vunpack.c.l.b16 %v362
      %v811 = vunpack.c.l.b16 %v363
      %v812 = vunpack.c.l.b16 %v364
      %v813 = vunpack.c.l.b16 %v365
      %v814 = vunpack.c.l.b16 %v366
      %v815 = vunpack.c.l.b16 %v367
      %v816 = vunpack.c.l.b16 %v368
      %v817 = vunpack.c.l.b16 %v369
      %v818 = vunpack.c.l.b16 %v370
      %v819 = vunpack.c.l.b16 %v371
      %v820 = vunpack.c.l.b16 %v372
      %v821 = vunpack.c.l.b16 %v373
      %v822 = vunpack.c.l.b16 %v374
      %v823 = vunpack.c.l.b16 %v375
      %v824 = vunpack.c.l.b16 %v376
      %v825 = vunpack.c.l.b16 %v377
      %v826 = vunpack.c.l.b16 %v378
      %v827 = vunpack.c.l.b16 %v379
      %v828 = vunpack.c.l.b16 %v380
      %v829 = vunpack.c.l.b16 %v381
      %v830 = vunpack.c.l.b16 %v382
      %v831 = vunpack.c.l.b16 %v383
      %v832 = vunpack.c.l.b16 %v384
      %v833 = vunpack.c.l.b16 %v385
      %v834 = vunpack.c.l.b16 %v386
      %v835 = vunpack.c.l.b16 %v387
      %v836 = vunpack.c.l.b16 %v388
      %v837 = vunpack.c.l.b16 %v389
      %v838 = vunpack.c.l.b16 %v390
      %v839 = vunpack.c.l.b16 %v391
      %v840 = vunpack.c.l.b16 %v392
      %v841 = vunpack.c.l.b16 %v393
      %v842 = vunpack.c.l.b16 %v394
      %v843 = vunpack.c.l.b16 %v395
      %v844 = vunpack.c.l.b16 %v396
      %v845 = vunpack.c.l.b16 %v397
      %v846 = vunpack.c.l.b16 %v398
      %v847 = vunpack.c.l.b16 %v399
      %v848 = vunpack.c.l.b16 %v400
      %v849 = vunpack.c.l.b16 %v401
      %v850 = vunpack.c.l.b16 %v402
      %v851 = vunpack.c.l.b16 %v403
      %v852 = vunpack.c.l.b16 %v404
      %v853 = vunpack.c.l.b16 %v405
      %v854 = vunpack.c.l.b16 %v406
      %v855 = vunpack.c.l.b16 %v407
      %v856 = vunpack.c.l.b16 %v408
      %v857 = vunpack.c.l.b16 %v409
      %v858 = vunpack.c.l.b16 %v410
      %v859 = vunpack.c.l.b16 %v411
      %v860 = vunpack.c.l.b16 %v412
      %v861 = vunpack.c.l.b16 %v413
      %v862 = vunpack.c.l.b16 %v414
      %v863 = vunpack.c.l.b16 %v415
      %v864 = vunpack.c.l.b16 %v416
      %v865 = vunpack.c.l.b16 %v417
      %v866 = vunpack.c.l.b16 %v418
      %v867 = vunpack.c.l.b16 %v419
      %v868 = vunpack.c.l.b16 %v420
      %v869 = vunpack.c.l.b16 %v421
      %v870 = vunpack.c.l.b16 %v422
      %v871 = vunpack.c.l.b16 %v423
      %v872 = vunpack.c.l.b16 %v424
      %v873 = vpack.c.b16 %v810, %v809
      %v874 = vpack.c.b16 %v812, %v811
      %v875 = vpack.c.b16 %v814, %v813
      %v876 = vpack.c.b16 %v816, %v815
      %v877 = vpack.c.b16 %v818, %v817
      %v878 = vpack.c.b16 %v820, %v819
      %v879 = vpack.c.b16 %v822, %v821
      %v880 = vpack.c.b16 %v824, %v823
      %v881 = vpack.c.b16 %v826, %v825
      %v882 = vpack.c.b16 %v828, %v827
      %v883 = vpack.c.b16 %v830, %v829
      %v884 = vpack.c.b16 %v832, %v831
      %v885 = vpack.c.b16 %v834, %v833
      %v886 = vpack.c.b16 %v836, %v835
      %v887 = vpack.c.b16 %v838, %v837
      %v888 = vpack.c.b16 %v840, %v839
      %v889 = vpack.c.b16 %v842, %v841
      %v890 = vpack.c.b16 %v844, %v843
      %v891 = vpack.c.b16 %v846, %v845
      %v892 = vpack.c.b16 %v848, %v847
      %v893 = vpack.c.b16 %v850, %v849
      %v894 = vpack.c.b16 %v852, %v851
      %v895 = vpack.c.b16 %v854, %v853
      %v896 = vpack.c.b16 %v856, %v855
      %v897 = vpack.c.b16 %v858, %v857
      %v898 = vpack.c.b16 %v860, %v859
      %v899 = vpack.c.b16 %v862, %v861
      %v900 = vpack.c.b16 %v864, %v863
      %v901 = vpack.c.b16 %v866, %v865
      %v902 = vpack.c.b16 %v868, %v867
      %v903 = vpack.c.b16 %v870, %v869
      %v904 = vpack.c.b16 %v872, %v871
      %937 = vmatprep.subr.bf16.mxu0 0
      %938 = vmatpush1.bf16.msra.mxu0 %v880
      %939 = vmatprep.subr.bf16.mxu0 0
      %940 = vmatpush1.bf16.msra.mxu0 %v879
      %941 = vmatprep.subr.bf16.mxu0 0
      %942 = vmatpush1.bf16.msra.mxu0 %v878
      %943 = vmatprep.subr.bf16.mxu0 0
      %944 = vmatpush1.bf16.msra.mxu0 %v877
      %945 = vmatprep.subr.bf16.mxu0 0
      %946 = vmatpush1.bf16.msra.mxu0 %v876
      %947 = vmatprep.subr.bf16.mxu0 0
      %948 = vmatpush1.bf16.msra.mxu0 %v875
      %949 = vmatprep.subr.bf16.mxu0 0
      %950 = vmatpush1.bf16.msra.mxu0 %v874
      %951 = vmatprep.subr.bf16.mxu0 0
      %952 = vmatpush1.bf16.msra.mxu0 %v873
      %953 = vmatprep.subr.bf16.mxu0 0
      %954 = vmatpush2.bf16.msra.mxu0 %v888
      %955 = vmatprep.subr.bf16.mxu0 0
      %956 = vmatpush2.bf16.msra.mxu0 %v887
      %957 = vmatprep.subr.bf16.mxu0 0
      %958 = vmatpush2.bf16.msra.mxu0 %v886
      %959 = vmatprep.subr.bf16.mxu0 0
      %960 = vmatpush2.bf16.msra.mxu0 %v885
      %961 = vmatprep.subr.bf16.mxu0 0
      %962 = vmatpush2.bf16.msra.mxu0 %v884
      %963 = vmatprep.subr.bf16.mxu0 0
      %964 = vmatpush2.bf16.msra.mxu0 %v883
      %965 = vmatprep.subr.bf16.mxu0 0
      %966 = vmatpush2.bf16.msra.mxu0 %v882
      %967 = vmatprep.subr.bf16.mxu0 0
      %968 = vmatpush2.bf16.msra.mxu0 %v881
      %969 = vmatprep.mubr.bf16.mxu0 %v618
      %970 = vmatmul.mubr.bf16.gmra.mxu0 %v617
      %v971 = vpop.f32.mrf.mxu0
      %v972 = vadd.f32 0.0, %v971
      %v973 = vpop.f32.mrf.mxu0
      %v974 = vpop.f32.mrf.mxu0
      %v975 = vadd.f32 0.0, %v974
      %v976 = vpop.f32.mrf.mxu0
      %977 = vmatprep.mubr.bf16.mxu0 %v622
      %978 = vmatmul.mubr.bf16.gmra.mxu0 %v621
      %v979 = vpop.f32.mrf.mxu0
      %v980 = vadd.f32 0.0, %v979
      %v981 = vpop.f32.mrf.mxu0
      %v982 = vpop.f32.mrf.mxu0
      %v983 = vadd.f32 0.0, %v982
      %v984 = vpop.f32.mrf.mxu0
      %985 = vmatprep.mubr.bf16.mxu0 %v626
      %986 = vmatmul.mubr.bf16.gmra.mxu0 %v625
      %v987 = vpop.f32.mrf.mxu0
      %v988 = vadd.f32 0.0, %v987
      %v989 = vpop.f32.mrf.mxu0
      %v990 = vpop.f32.mrf.mxu0
      %v991 = vadd.f32 0.0, %v990
      %v992 = vpop.f32.mrf.mxu0
      %993 = vmatprep.mubr.bf16.mxu0 %v630
      %994 = vmatmul.mubr.bf16.gmra.mxu0 %v629
      %v995 = vpop.f32.mrf.mxu0
      %v996 = vadd.f32 0.0, %v995
      %v997 = vpop.f32.mrf.mxu0
      %v998 = vpop.f32.mrf.mxu0
      %v999 = vadd.f32 0.0, %v998
      %v1000 = vpop.f32.mrf.mxu0
      %1001 = vmatprep.mubr.bf16.mxu0 %v634
      %1002 = vmatmul.mubr.bf16.gmra.mxu0 %v633
      %v1003 = vpop.f32.mrf.mxu0
      %v1004 = vadd.f32 0.0, %v1003
      %v1005 = vpop.f32.mrf.mxu0
      %v1006 = vpop.f32.mrf.mxu0
      %v1007 = vadd.f32 0.0, %v1006
      %v1008 = vpop.f32.mrf.mxu0
      %1009 = vmatprep.mubr.bf16.mxu0 %v638
      %1010 = vmatmul.mubr.bf16.gmra.mxu0 %v637
      %v1011 = vpop.f32.mrf.mxu0
      %v1012 = vadd.f32 0.0, %v1011
      %v1013 = vpop.f32.mrf.mxu0
      %v1014 = vpop.f32.mrf.mxu0
      %v1015 = vadd.f32 0.0, %v1014
      %v1016 = vpop.f32.mrf.mxu0
      %1017 = vmatprep.mubr.bf16.mxu0 %v642
      %1018 = vmatmul.mubr.bf16.gmra.mxu0 %v641
      %v1019 = vpop.f32.mrf.mxu0
      %v1020 = vadd.f32 0.0, %v1019
      %v1021 = vpop.f32.mrf.mxu0
      %v1022 = vpop.f32.mrf.mxu0
      %v1023 = vadd.f32 0.0, %v1022
      %v1024 = vpop.f32.mrf.mxu0
      %1025 = vmatprep.mubr.bf16.mxu0 %v646
      %1026 = vmatmul.mubr.bf16.gmra.mxu0 %v645
      %v1027 = vpop.f32.mrf.mxu0
      %v1028 = vadd.f32 0.0, %v1027
      %v1029 = vpop.f32.mrf.mxu0
      %v1030 = vpop.f32.mrf.mxu0
      %v1031 = vadd.f32 0.0, %v1030
      %v1032 = vpop.f32.mrf.mxu0
      %1033 = vmatprep.mubr.bf16.mxu0 %v650
      %1034 = vmatmul.mubr.bf16.gmra.mxu0 %v649
      %v1035 = vpop.f32.mrf.mxu0
      %v1036 = vadd.f32 0.0, %v1035
      %v1037 = vpop.f32.mrf.mxu0
      %v1038 = vpop.f32.mrf.mxu0
      %v1039 = vadd.f32 0.0, %v1038
      %v1040 = vpop.f32.mrf.mxu0
      %1041 = vmatprep.mubr.bf16.mxu0 %v654
      %1042 = vmatmul.mubr.bf16.gmra.mxu0 %v653
      %v1043 = vpop.f32.mrf.mxu0
      %v1044 = vadd.f32 0.0, %v1043
      %v1045 = vpop.f32.mrf.mxu0
      %v1046 = vpop.f32.mrf.mxu0
      %v1047 = vadd.f32 0.0, %v1046
      %v1048 = vpop.f32.mrf.mxu0
      %1049 = vmatprep.mubr.bf16.mxu0 %v658
      %1050 = vmatmul.mubr.bf16.gmra.mxu0 %v657
      %v1051 = vpop.f32.mrf.mxu0
      %v1052 = vadd.f32 0.0, %v1051
      %v1053 = vpop.f32.mrf.mxu0
      %v1054 = vpop.f32.mrf.mxu0
      %v1055 = vadd.f32 0.0, %v1054
      %v1056 = vpop.f32.mrf.mxu0
      %1057 = vmatprep.mubr.bf16.mxu0 %v662
      %1058 = vmatmul.mubr.bf16.gmra.mxu0 %v661
      %v1059 = vpop.f32.mrf.mxu0
      %v1060 = vadd.f32 0.0, %v1059
      %v1061 = vpop.f32.mrf.mxu0
      %v1062 = vpop.f32.mrf.mxu0
      %v1063 = vadd.f32 0.0, %v1062
      %v1064 = vpop.f32.mrf.mxu0
      %1065 = vmatprep.mubr.bf16.mxu0 %v666
      %1066 = vmatmul.mubr.bf16.gmra.mxu0 %v665
      %v1067 = vpop.f32.mrf.mxu0
      %v1068 = vadd.f32 0.0, %v1067
      %v1069 = vpop.f32.mrf.mxu0
      %v1070 = vpop.f32.mrf.mxu0
      %v1071 = vadd.f32 0.0, %v1070
      %v1072 = vpop.f32.mrf.mxu0
      %1073 = vmatprep.mubr.bf16.mxu0 %v670
      %1074 = vmatmul.mubr.bf16.gmra.mxu0 %v669
      %v1075 = vpop.f32.mrf.mxu0
      %v1076 = vadd.f32 0.0, %v1075
      %v1077 = vpop.f32.mrf.mxu0
      %v1078 = vpop.f32.mrf.mxu0
      %v1079 = vadd.f32 0.0, %v1078
      %v1080 = vpop.f32.mrf.mxu0
      %1081 = vmatprep.mubr.bf16.mxu0 %v674
      %1082 = vmatmul.mubr.bf16.gmra.mxu0 %v673
      %v1083 = vpop.f32.mrf.mxu0
      %v1084 = vadd.f32 0.0, %v1083
      %v1085 = vpop.f32.mrf.mxu0
      %v1086 = vpop.f32.mrf.mxu0
      %v1087 = vadd.f32 0.0, %v1086
      %v1088 = vpop.f32.mrf.mxu0
      %1089 = vmatprep.mubr.bf16.mxu0 %v678
      %1090 = vmatmul.mubr.bf16.gmra.mxu0 %v677
      %v1091 = vpop.f32.mrf.mxu0
      %v1092 = vadd.f32 0.0, %v1091
      %v1093 = vpop.f32.mrf.mxu0
      %v1094 = vpop.f32.mrf.mxu0
      %v1095 = vadd.f32 0.0, %v1094
      %v1096 = vpop.f32.mrf.mxu0
      %1097 = vdwg.mxu0
      %1098 = vmatprep.subr.bf16.mxu0 0
      %1099 = vmatpush1.bf16.msra.mxu0 %v896
      %1100 = vmatprep.subr.bf16.mxu0 0
      %1101 = vmatpush1.bf16.msra.mxu0 %v895
      %1102 = vmatprep.subr.bf16.mxu0 0
      %1103 = vmatpush1.bf16.msra.mxu0 %v894
      %1104 = vmatprep.subr.bf16.mxu0 0
      %1105 = vmatpush1.bf16.msra.mxu0 %v893
      %1106 = vmatprep.subr.bf16.mxu0 0
      %1107 = vmatpush1.bf16.msra.mxu0 %v892
      %1108 = vmatprep.subr.bf16.mxu0 0
      %1109 = vmatpush1.bf16.msra.mxu0 %v891
      %1110 = vmatprep.subr.bf16.mxu0 0
      %1111 = vmatpush1.bf16.msra.mxu0 %v890
      %1112 = vmatprep.subr.bf16.mxu0 0
      %1113 = vmatpush1.bf16.msra.mxu0 %v889
      %1114 = vmatprep.subr.bf16.mxu0 0
      %1115 = vmatpush2.bf16.msra.mxu0 %v904
      %1116 = vmatprep.subr.bf16.mxu0 0
      %1117 = vmatpush2.bf16.msra.mxu0 %v903
      %1118 = vmatprep.subr.bf16.mxu0 0
      %1119 = vmatpush2.bf16.msra.mxu0 %v902
      %1120 = vmatprep.subr.bf16.mxu0 0
      %1121 = vmatpush2.bf16.msra.mxu0 %v901
      %1122 = vmatprep.subr.bf16.mxu0 0
      %1123 = vmatpush2.bf16.msra.mxu0 %v900
      %1124 = vmatprep.subr.bf16.mxu0 0
      %1125 = vmatpush2.bf16.msra.mxu0 %v899
      %1126 = vmatprep.subr.bf16.mxu0 0
      %1127 = vmatpush2.bf16.msra.mxu0 %v898
      %1128 = vmatprep.subr.bf16.mxu0 0
      %1129 = vmatpush2.bf16.msra.mxu0 %v897
      %1130 = vmatprep.mubr.bf16.mxu0 %v620
      %1131 = vmatmul.mubr.bf16.gmra.mxu0 %v619
      %v1132 = vpop.f32.mrf.mxu0
      %v1133 = vadd.f32 %v972, %v1132
      %v1134 = vpop.f32.mrf.mxu0
      %v1135 = vpop.f32.mrf.mxu0
      %v1136 = vadd.f32 %v975, %v1135
      %v1137 = vpop.f32.mrf.mxu0
      %1138 = vmatprep.mubr.bf16.mxu0 %v624
      %1139 = vmatmul.mubr.bf16.gmra.mxu0 %v623
      %v1140 = vpop.f32.mrf.mxu0
      %v1141 = vadd.f32 %v980, %v1140
      %v1142 = vpop.f32.mrf.mxu0
      %v1143 = vpop.f32.mrf.mxu0
      %v1144 = vadd.f32 %v983, %v1143
      %v1145 = vpop.f32.mrf.mxu0
      %1146 = vmatprep.mubr.bf16.mxu0 %v628
      %1147 = vmatmul.mubr.bf16.gmra.mxu0 %v627
      %v1148 = vpop.f32.mrf.mxu0
      %v1149 = vadd.f32 %v988, %v1148
      %v1150 = vpop.f32.mrf.mxu0
      %v1151 = vpop.f32.mrf.mxu0
      %v1152 = vadd.f32 %v991, %v1151
      %v1153 = vpop.f32.mrf.mxu0
      %1154 = vmatprep.mubr.bf16.mxu0 %v632
      %1155 = vmatmul.mubr.bf16.gmra.mxu0 %v631
      %v1156 = vpop.f32.mrf.mxu0
      %v1157 = vadd.f32 %v996, %v1156
      %v1158 = vpop.f32.mrf.mxu0
      %v1159 = vpop.f32.mrf.mxu0
      %v1160 = vadd.f32 %v999, %v1159
      %v1161 = vpop.f32.mrf.mxu0
      %1162 = vmatprep.mubr.bf16.mxu0 %v636
      %1163 = vmatmul.mubr.bf16.gmra.mxu0 %v635
      %v1164 = vpop.f32.mrf.mxu0
      %v1165 = vadd.f32 %v1004, %v1164
      %v1166 = vpop.f32.mrf.mxu0
      %v1167 = vpop.f32.mrf.mxu0
      %v1168 = vadd.f32 %v1007, %v1167
      %v1169 = vpop.f32.mrf.mxu0
      %1170 = vmatprep.mubr.bf16.mxu0 %v640
      %1171 = vmatmul.mubr.bf16.gmra.mxu0 %v639
      %v1172 = vpop.f32.mrf.mxu0
      %v1173 = vadd.f32 %v1012, %v1172
      %v1174 = vpop.f32.mrf.mxu0
      %v1175 = vpop.f32.mrf.mxu0
      %v1176 = vadd.f32 %v1015, %v1175
      %v1177 = vpop.f32.mrf.mxu0
      %1178 = vmatprep.mubr.bf16.mxu0 %v644
      %1179 = vmatmul.mubr.bf16.gmra.mxu0 %v643
      %v1180 = vpop.f32.mrf.mxu0
      %v1181 = vadd.f32 %v1020, %v1180
      %v1182 = vpop.f32.mrf.mxu0
      %v1183 = vpop.f32.mrf.mxu0
      %v1184 = vadd.f32 %v1023, %v1183
      %v1185 = vpop.f32.mrf.mxu0
      %1186 = vmatprep.mubr.bf16.mxu0 %v648
      %1187 = vmatmul.mubr.bf16.gmra.mxu0 %v647
      %v1188 = vpop.f32.mrf.mxu0
      %v1189 = vadd.f32 %v1028, %v1188
      %v1190 = vpop.f32.mrf.mxu0
      %v1191 = vpop.f32.mrf.mxu0
      %v1192 = vadd.f32 %v1031, %v1191
      %v1193 = vpop.f32.mrf.mxu0
      %1194 = vmatprep.mubr.bf16.mxu0 %v652
      %1195 = vmatmul.mubr.bf16.gmra.mxu0 %v651
      %v1196 = vpop.f32.mrf.mxu0
      %v1197 = vadd.f32 %v1036, %v1196
      %v1198 = vpop.f32.mrf.mxu0
      %v1199 = vpop.f32.mrf.mxu0
      %v1200 = vadd.f32 %v1039, %v1199
      %v1201 = vpop.f32.mrf.mxu0
      %1202 = vmatprep.mubr.bf16.mxu0 %v656
      %1203 = vmatmul.mubr.bf16.gmra.mxu0 %v655
      %v1204 = vpop.f32.mrf.mxu0
      %v1205 = vadd.f32 %v1044, %v1204
      %v1206 = vpop.f32.mrf.mxu0
      %v1207 = vpop.f32.mrf.mxu0
      %v1208 = vadd.f32 %v1047, %v1207
      %v1209 = vpop.f32.mrf.mxu0
      %1210 = vmatprep.mubr.bf16.mxu0 %v660
      %1211 = vmatmul.mubr.bf16.gmra.mxu0 %v659
      %v1212 = vpop.f32.mrf.mxu0
      %v1213 = vadd.f32 %v1052, %v1212
      %v1214 = vpop.f32.mrf.mxu0
      %v1215 = vpop.f32.mrf.mxu0
      %v1216 = vadd.f32 %v1055, %v1215
      %v1217 = vpop.f32.mrf.mxu0
      %1218 = vmatprep.mubr.bf16.mxu0 %v664
      %1219 = vmatmul.mubr.bf16.gmra.mxu0 %v663
      %v1220 = vpop.f32.mrf.mxu0
      %v1221 = vadd.f32 %v1060, %v1220
      %v1222 = vpop.f32.mrf.mxu0
      %v1223 = vpop.f32.mrf.mxu0
      %v1224 = vadd.f32 %v1063, %v1223
      %v1225 = vpop.f32.mrf.mxu0
      %1226 = vmatprep.mubr.bf16.mxu0 %v668
      %1227 = vmatmul.mubr.bf16.gmra.mxu0 %v667
      %v1228 = vpop.f32.mrf.mxu0
      %v1229 = vadd.f32 %v1068, %v1228
      %v1230 = vpop.f32.mrf.mxu0
      %v1231 = vpop.f32.mrf.mxu0
      %v1232 = vadd.f32 %v1071, %v1231
      %v1233 = vpop.f32.mrf.mxu0
      %1234 = vmatprep.mubr.bf16.mxu0 %v672
      %1235 = vmatmul.mubr.bf16.gmra.mxu0 %v671
      %v1236 = vpop.f32.mrf.mxu0
      %v1237 = vadd.f32 %v1076, %v1236
      %v1238 = vpop.f32.mrf.mxu0
      %v1239 = vpop.f32.mrf.mxu0
      %v1240 = vadd.f32 %v1079, %v1239
      %v1241 = vpop.f32.mrf.mxu0
      %1242 = vmatprep.mubr.bf16.mxu0 %v676
      %1243 = vmatmul.mubr.bf16.gmra.mxu0 %v675
      %v1244 = vpop.f32.mrf.mxu0
      %v1245 = vadd.f32 %v1084, %v1244
      %v1246 = vpop.f32.mrf.mxu0
      %v1247 = vpop.f32.mrf.mxu0
      %v1248 = vadd.f32 %v1087, %v1247
      %v1249 = vpop.f32.mrf.mxu0
      %1250 = vmatprep.mubr.bf16.mxu0 %v680
      %1251 = vmatmul.mubr.bf16.gmra.mxu0 %v679
      %v1252 = vpop.f32.mrf.mxu0
      %v1253 = vadd.f32 %v1092, %v1252
      %v1254 = vpop.f32.mrf.mxu0
      %v1255 = vpop.f32.mrf.mxu0
      %v1256 = vadd.f32 %v1095, %v1255
      %v1257 = vpop.f32.mrf.mxu0
      %1258 = vdwg.mxu0
      %v1259 = vadd.f32 %v265, %v1133
      %v1260 = vadd.f32 %v266, %v1136
      %v1261 = vadd.f32 %v267, %v1141
      %v1262 = vadd.f32 %v268, %v1144
      %v1263 = vadd.f32 %v269, %v1149
      %v1264 = vadd.f32 %v270, %v1152
      %v1265 = vadd.f32 %v271, %v1157
      %v1266 = vadd.f32 %v272, %v1160
      %v1267 = vadd.f32 %v273, %v1165
      %v1268 = vadd.f32 %v274, %v1168
      %v1269 = vadd.f32 %v275, %v1173
      %v1270 = vadd.f32 %v276, %v1176
      %v1271 = vadd.f32 %v277, %v1181
      %v1272 = vadd.f32 %v278, %v1184
      %v1273 = vadd.f32 %v279, %v1189
      %v1274 = vadd.f32 %v280, %v1192
      %v1275 = vadd.f32 %v281, %v1197
      %v1276 = vadd.f32 %v282, %v1200
      %v1277 = vadd.f32 %v283, %v1205
      %v1278 = vadd.f32 %v284, %v1208
      %v1279 = vadd.f32 %v285, %v1213
      %v1280 = vadd.f32 %v286, %v1216
      %v1281 = vadd.f32 %v287, %v1221
      %v1282 = vadd.f32 %v288, %v1224
      %v1283 = vadd.f32 %v289, %v1229
      %v1284 = vadd.f32 %v290, %v1232
      %v1285 = vadd.f32 %v291, %v1237
      %v1286 = vadd.f32 %v292, %v1240
      %v1287 = vadd.f32 %v293, %v1245
      %v1288 = vadd.f32 %v294, %v1248
      %v1289 = vadd.f32 %v295, %v1253
      %v1290 = vadd.f32 %v296, %v1256
      %vm1291 = vcmask 261120
      %1292 = vst.msk [vmem:[#allocation2] sm:$0xff] %vm1291, %v1259
      %1293 = vst.msk [vmem:[#allocation2 + $0x8] sm:$0xff] %vm1291, %v1260
      %1294 = vst.msk [vmem:[#allocation2 + $0x10] sm:$0xff] %vm1291, %v1261
      %1295 = vst.msk [vmem:[#allocation2 + $0x18] sm:$0xff] %vm1291, %v1262
      %1296 = vst.msk [vmem:[#allocation2 + $0x20] sm:$0xff] %vm1291, %v1263
      %1297 = vst.msk [vmem:[#allocation2 + $0x28] sm:$0xff] %vm1291, %v1264
      %1298 = vst.msk [vmem:[#allocation2 + $0x30] sm:$0xff] %vm1291, %v1265
      %1299 = vst.msk [vmem:[#allocation2 + $0x38] sm:$0xff] %vm1291, %v1266
      %1300 = vst.msk [vmem:[#allocation2 + $0x40] sm:$0xff] %vm1291, %v1267
      %1301 = vst.msk [vmem:[#allocation2 + $0x48] sm:$0xff] %vm1291, %v1268
      %1302 = vst.msk [vmem:[#allocation2 + $0x50] sm:$0xff] %vm1291, %v1269
      %1303 = vst.msk [vmem:[#allocation2 + $0x58] sm:$0xff] %vm1291, %v1270
      %1304 = vst.msk [vmem:[#allocation2 + $0x60] sm:$0xff] %vm1291, %v1271
      %1305 = vst.msk [vmem:[#allocation2 + $0x68] sm:$0xff] %vm1291, %v1272
      %1306 = vst.msk [vmem:[#allocation2 + $0x70] sm:$0xff] %vm1291, %v1273
      %1307 = vst.msk [vmem:[#allocation2 + $0x78] sm:$0xff] %vm1291, %v1274
      %1308 = vst.msk [vmem:[#allocation2 + $0x80] sm:$0xff] %vm1291, %v1275
      %1309 = vst.msk [vmem:[#allocation2 + $0x88] sm:$0xff] %vm1291, %v1276
      %1310 = vst.msk [vmem:[#allocation2 + $0x90] sm:$0xff] %vm1291, %v1277
      %1311 = vst.msk [vmem:[#allocation2 + $0x98] sm:$0xff] %vm1291, %v1278
      %1312 = vst.msk [vmem:[#allocation2 + $0xa0] sm:$0xff] %vm1291, %v1279
      %1313 = vst.msk [vmem:[#allocation2 + $0xa8] sm:$0xff] %vm1291, %v1280
      %1314 = vst.msk [vmem:[#allocation2 + $0xb0] sm:$0xff] %vm1291, %v1281
      %1315 = vst.msk [vmem:[#allocation2 + $0xb8] sm:$0xff] %vm1291, %v1282
      %1316 = vst.msk [vmem:[#allocation2 + $0xc0] sm:$0xff] %vm1291, %v1283
      %1317 = vst.msk [vmem:[#allocation2 + $0xc8] sm:$0xff] %vm1291, %v1284
      %1318 = vst.msk [vmem:[#allocation2 + $0xd0] sm:$0xff] %vm1291, %v1285
      %1319 = vst.msk [vmem:[#allocation2 + $0xd8] sm:$0xff] %vm1291, %v1286
      %1320 = vst.msk [vmem:[#allocation2 + $0xe0] sm:$0xff] %vm1291, %v1287
      %1321 = vst.msk [vmem:[#allocation2 + $0xe8] sm:$0xff] %vm1291, %v1288
      %1322 = vst.msk [vmem:[#allocation2 + $0xf0] sm:$0xff] %vm1291, %v1289
      %1323 = vst.msk [vmem:[#allocation2 + $0xf8] sm:$0xff] %vm1291, %v1290
      // Predicated region
      $region37: #{convgcn_forward.4} parent=31 // pred_check
        %p1324 = pneg %p228
      $region38: #{convgcn_forward.4} parent=31 // pred_check_branch
        %1326 = sbr.rel (%p1324) target = $region40
      $region39: #{convgcn_forward.4} parent=31 // pred_region
        %v1327 = vld [vmem:[#allocation2] sm:$0xff]
        %v1328 = vld [vmem:[#allocation2 + $0x8] sm:$0xff]
        %v1329 = vld [vmem:[#allocation2 + $0x10] sm:$0xff]
        %v1330 = vld [vmem:[#allocation2 + $0x18] sm:$0xff]
        %v1331 = vld [vmem:[#allocation2 + $0x20] sm:$0xff]
        %v1332 = vld [vmem:[#allocation2 + $0x28] sm:$0xff]
        %v1333 = vld [vmem:[#allocation2 + $0x30] sm:$0xff]
        %v1334 = vld [vmem:[#allocation2 + $0x38] sm:$0xff]
        %v1335 = vld [vmem:[#allocation2 + $0x40] sm:$0xff]
        %v1336 = vld [vmem:[#allocation2 + $0x48] sm:$0xff]
        %v1337 = vld [vmem:[#allocation2 + $0x50] sm:$0xff]
        %v1338 = vld [vmem:[#allocation2 + $0x58] sm:$0xff]
        %v1339 = vld [vmem:[#allocation2 + $0x60] sm:$0xff]
        %v1340 = vld [vmem:[#allocation2 + $0x68] sm:$0xff]
        %v1341 = vld [vmem:[#allocation2 + $0x70] sm:$0xff]
        %v1342 = vld [vmem:[#allocation2 + $0x78] sm:$0xff]
        %v1343 = vld [vmem:[#allocation2 + $0x80] sm:$0xff]
        %v1344 = vld [vmem:[#allocation2 + $0x88] sm:$0xff]
        %v1345 = vld [vmem:[#allocation2 + $0x90] sm:$0xff]
        %v1346 = vld [vmem:[#allocation2 + $0x98] sm:$0xff]
        %v1347 = vld [vmem:[#allocation2 + $0xa0] sm:$0xff]
        %v1348 = vld [vmem:[#allocation2 + $0xa8] sm:$0xff]
        %v1349 = vld [vmem:[#allocation2 + $0xb0] sm:$0xff]
        %v1350 = vld [vmem:[#allocation2 + $0xb8] sm:$0xff]
        %v1351 = vld [vmem:[#allocation2 + $0xc0] sm:$0xff]
        %v1352 = vld [vmem:[#allocation2 + $0xc8] sm:$0xff]
        %v1353 = vld [vmem:[#allocation2 + $0xd0] sm:$0xff]
        %v1354 = vld [vmem:[#allocation2 + $0xd8] sm:$0xff]
        %v1355 = vld [vmem:[#allocation2 + $0xe0] sm:$0xff]
        %v1356 = vld [vmem:[#allocation2 + $0xe8] sm:$0xff]
        %v1357 = vld [vmem:[#allocation2 + $0xf0] sm:$0xff]
        %v1358 = vld [vmem:[#allocation2 + $0xf8] sm:$0xff]
        %v1359 = vld [vmem:[%s2] sm:$0x1]
        %v1361 = vlaneseq
        %v1362 = vshrl.u32 %v1361, 7
        %v1363 = vsub.s32 0, %v1362
        %v1364 = vrot.slane %v1359, %v1363
        %v1366 = vadd.f32 %v1327, %v1364
        %v1367 = vadd.f32 %v1328, %v1364
        %v1368 = vadd.f32 %v1329, %v1364
        %v1369 = vadd.f32 %v1330, %v1364
        %v1370 = vadd.f32 %v1331, %v1364
        %v1371 = vadd.f32 %v1332, %v1364
        %v1372 = vadd.f32 %v1333, %v1364
        %v1373 = vadd.f32 %v1334, %v1364
        %v1374 = vadd.f32 %v1335, %v1364
        %v1375 = vadd.f32 %v1336, %v1364
        %v1376 = vadd.f32 %v1337, %v1364
        %v1377 = vadd.f32 %v1338, %v1364
        %v1378 = vadd.f32 %v1339, %v1364
        %v1379 = vadd.f32 %v1340, %v1364
        %v1380 = vadd.f32 %v1341, %v1364
        %v1381 = vadd.f32 %v1342, %v1364
        %v1382 = vadd.f32 %v1343, %v1364
        %v1383 = vadd.f32 %v1344, %v1364
        %v1384 = vadd.f32 %v1345, %v1364
        %v1385 = vadd.f32 %v1346, %v1364
        %v1386 = vadd.f32 %v1347, %v1364
        %v1387 = vadd.f32 %v1348, %v1364
        %v1388 = vadd.f32 %v1349, %v1364
        %v1389 = vadd.f32 %v1350, %v1364
        %v1390 = vadd.f32 %v1351, %v1364
        %v1391 = vadd.f32 %v1352, %v1364
        %v1392 = vadd.f32 %v1353, %v1364
        %v1393 = vadd.f32 %v1354, %v1364
        %v1394 = vadd.f32 %v1355, %v1364
        %v1395 = vadd.f32 %v1356, %v1364
        %v1396 = vadd.f32 %v1357, %v1364
        %v1397 = vadd.f32 %v1358, %v1364
        %v1398 = vmax.f32 %v1366, 0.0
        %v1399 = vmax.f32 %v1367, 0.0
        %v1400 = vmax.f32 %v1368, 0.0
        %v1401 = vmax.f32 %v1369, 0.0
        %v1402 = vmax.f32 %v1370, 0.0
        %v1403 = vmax.f32 %v1371, 0.0
        %v1404 = vmax.f32 %v1372, 0.0
        %v1405 = vmax.f32 %v1373, 0.0
        %v1406 = vmax.f32 %v1374, 0.0
        %v1407 = vmax.f32 %v1375, 0.0
        %v1408 = vmax.f32 %v1376, 0.0
        %v1409 = vmax.f32 %v1377, 0.0
        %v1410 = vmax.f32 %v1378, 0.0
        %v1411 = vmax.f32 %v1379, 0.0
        %v1412 = vmax.f32 %v1380, 0.0
        %v1413 = vmax.f32 %v1381, 0.0
        %v1414 = vmax.f32 %v1382, 0.0
        %v1415 = vmax.f32 %v1383, 0.0
        %v1416 = vmax.f32 %v1384, 0.0
        %v1417 = vmax.f32 %v1385, 0.0
        %v1418 = vmax.f32 %v1386, 0.0
        %v1419 = vmax.f32 %v1387, 0.0
        %v1420 = vmax.f32 %v1388, 0.0
        %v1421 = vmax.f32 %v1389, 0.0
        %v1422 = vmax.f32 %v1390, 0.0
        %v1423 = vmax.f32 %v1391, 0.0
        %v1424 = vmax.f32 %v1392, 0.0
        %v1425 = vmax.f32 %v1393, 0.0
        %v1426 = vmax.f32 %v1394, 0.0
        %v1427 = vmax.f32 %v1395, 0.0
        %v1428 = vmax.f32 %v1396, 0.0
        %v1429 = vmax.f32 %v1397, 0.0
        %v1430 = vpack.c.bf16 %v1399, %v1398
        %v1431 = vpack.c.bf16 %v1401, %v1400
        %v1432 = vpack.c.bf16 %v1403, %v1402
        %v1433 = vpack.c.bf16 %v1405, %v1404
        %v1434 = vpack.c.bf16 %v1407, %v1406
        %v1435 = vpack.c.bf16 %v1409, %v1408
        %v1436 = vpack.c.bf16 %v1411, %v1410
        %v1437 = vpack.c.bf16 %v1413, %v1412
        %v1438 = vpack.c.bf16 %v1415, %v1414
        %v1439 = vpack.c.bf16 %v1417, %v1416
        %v1440 = vpack.c.bf16 %v1419, %v1418
        %v1441 = vpack.c.bf16 %v1421, %v1420
        %v1442 = vpack.c.bf16 %v1423, %v1422
        %v1443 = vpack.c.bf16 %v1425, %v1424
        %v1444 = vpack.c.bf16 %v1427, %v1426
        %v1445 = vpack.c.bf16 %v1429, %v1428
        %v1462 = vunpack.c.l.b16 %v1430
        %v1463 = vunpack.c.h.b16 %v1430
        %v1464 = vunpack.c.l.b16 %v1431
        %v1465 = vunpack.c.h.b16 %v1431
        %v1466 = vunpack.c.l.b16 %v1432
        %v1467 = vunpack.c.h.b16 %v1432
        %v1468 = vunpack.c.l.b16 %v1433
        %v1469 = vunpack.c.h.b16 %v1433
        %v1470 = vunpack.c.l.b16 %v1434
        %v1471 = vunpack.c.h.b16 %v1434
        %v1472 = vunpack.c.l.b16 %v1435
        %v1473 = vunpack.c.h.b16 %v1435
        %v1474 = vunpack.c.l.b16 %v1436
        %v1475 = vunpack.c.h.b16 %v1436
        %v1476 = vunpack.c.l.b16 %v1437
        %v1477 = vunpack.c.h.b16 %v1437
        %v1478 = vunpack.c.l.b16 %v1438
        %v1479 = vunpack.c.h.b16 %v1438
        %v1480 = vunpack.c.l.b16 %v1439
        %v1481 = vunpack.c.h.b16 %v1439
        %v1482 = vunpack.c.l.b16 %v1440
        %v1483 = vunpack.c.h.b16 %v1440
        %v1484 = vunpack.c.l.b16 %v1441
        %v1485 = vunpack.c.h.b16 %v1441
        %v1486 = vunpack.c.l.b16 %v1442
        %v1487 = vunpack.c.h.b16 %v1442
        %v1488 = vunpack.c.l.b16 %v1443
        %v1489 = vunpack.c.h.b16 %v1443
        %v1490 = vunpack.c.l.b16 %v1444
        %v1491 = vunpack.c.h.b16 %v1444
        %v1492 = vunpack.c.l.b16 %v1445
        %v1493 = vunpack.c.h.b16 %v1445
        %v1494 = vpack.c.b16 %v1462, %v1462
        %v1495 = vpack.c.b16 %v1463, %v1463
        %v1496 = vpack.c.b16 %v1464, %v1464
        %v1497 = vpack.c.b16 %v1465, %v1465
        %v1498 = vpack.c.b16 %v1466, %v1466
        %v1499 = vpack.c.b16 %v1467, %v1467
        %v1500 = vpack.c.b16 %v1468, %v1468
        %v1501 = vpack.c.b16 %v1469, %v1469
        %v1502 = vpack.c.b16 %v1470, %v1470
        %v1503 = vpack.c.b16 %v1471, %v1471
        %v1504 = vpack.c.b16 %v1472, %v1472
        %v1505 = vpack.c.b16 %v1473, %v1473
        %v1506 = vpack.c.b16 %v1474, %v1474
        %v1507 = vpack.c.b16 %v1475, %v1475
        %v1508 = vpack.c.b16 %v1476, %v1476
        %v1509 = vpack.c.b16 %v1477, %v1477
        %v1510 = vpack.c.b16 %v1478, %v1478
        %v1511 = vpack.c.b16 %v1479, %v1479
        %v1512 = vpack.c.b16 %v1480, %v1480
        %v1513 = vpack.c.b16 %v1481, %v1481
        %v1514 = vpack.c.b16 %v1482, %v1482
        %v1515 = vpack.c.b16 %v1483, %v1483
        %v1516 = vpack.c.b16 %v1484, %v1484
        %v1517 = vpack.c.b16 %v1485, %v1485
        %v1518 = vpack.c.b16 %v1486, %v1486
        %v1519 = vpack.c.b16 %v1487, %v1487
        %v1520 = vpack.c.b16 %v1488, %v1488
        %v1521 = vpack.c.b16 %v1489, %v1489
        %v1522 = vpack.c.b16 %v1490, %v1490
        %v1523 = vpack.c.b16 %v1491, %v1491
        %v1524 = vpack.c.b16 %v1492, %v1492
        %v1525 = vpack.c.b16 %v1493, %v1493
        %vm1558 = vcmask 257024
        %1559 = vst.msk [vmem:[%s225] sm:$0xf] %vm1558, %v1494
        %1560 = vst.msk [vmem:[%s225 + $0x4] sm:$0xf] %vm1558, %v1495
        %1561 = vst.msk [vmem:[%s225 + $0x8] sm:$0xf] %vm1558, %v1496
        %1562 = vst.msk [vmem:[%s225 + $0xc] sm:$0xf] %vm1558, %v1497
        %1563 = vst.msk [vmem:[%s225 + $0x10] sm:$0xf] %vm1558, %v1498
        %1564 = vst.msk [vmem:[%s225 + $0x14] sm:$0xf] %vm1558, %v1499
        %1565 = vst.msk [vmem:[%s225 + $0x18] sm:$0xf] %vm1558, %v1500
        %1566 = vst.msk [vmem:[%s225 + $0x1c] sm:$0xf] %vm1558, %v1501
        %1567 = vst.msk [vmem:[%s225 + $0x20] sm:$0xf] %vm1558, %v1502
        %1568 = vst.msk [vmem:[%s225 + $0x24] sm:$0xf] %vm1558, %v1503
        %1569 = vst.msk [vmem:[%s225 + $0x28] sm:$0xf] %vm1558, %v1504
        %1570 = vst.msk [vmem:[%s225 + $0x2c] sm:$0xf] %vm1558, %v1505
        %1571 = vst.msk [vmem:[%s225 + $0x30] sm:$0xf] %vm1558, %v1506
        %1572 = vst.msk [vmem:[%s225 + $0x34] sm:$0xf] %vm1558, %v1507
        %1573 = vst.msk [vmem:[%s225 + $0x38] sm:$0xf] %vm1558, %v1508
        %1574 = vst.msk [vmem:[%s225 + $0x3c] sm:$0xf] %vm1558, %v1509
        %1575 = vst.msk [vmem:[%s225 + $0x40] sm:$0xf] %vm1558, %v1510
        %1576 = vst.msk [vmem:[%s225 + $0x44] sm:$0xf] %vm1558, %v1511
        %1577 = vst.msk [vmem:[%s225 + $0x48] sm:$0xf] %vm1558, %v1512
        %1578 = vst.msk [vmem:[%s225 + $0x4c] sm:$0xf] %vm1558, %v1513
        %1579 = vst.msk [vmem:[%s225 + $0x50] sm:$0xf] %vm1558, %v1514
        %1580 = vst.msk [vmem:[%s225 + $0x54] sm:$0xf] %vm1558, %v1515
        %1581 = vst.msk [vmem:[%s225 + $0x58] sm:$0xf] %vm1558, %v1516
        %1582 = vst.msk [vmem:[%s225 + $0x5c] sm:$0xf] %vm1558, %v1517
        %1583 = vst.msk [vmem:[%s225 + $0x60] sm:$0xf] %vm1558, %v1518
        %1584 = vst.msk [vmem:[%s225 + $0x64] sm:$0xf] %vm1558, %v1519
        %1585 = vst.msk [vmem:[%s225 + $0x68] sm:$0xf] %vm1558, %v1520
        %1586 = vst.msk [vmem:[%s225 + $0x6c] sm:$0xf] %vm1558, %v1521
        %1587 = vst.msk [vmem:[%s225 + $0x70] sm:$0xf] %vm1558, %v1522
        %1588 = vst.msk [vmem:[%s225 + $0x74] sm:$0xf] %vm1558, %v1523
        %1589 = vst.msk [vmem:[%s225 + $0x78] sm:$0xf] %vm1558, %v1524
        %1590 = vst.msk [vmem:[%s225 + $0x7c] sm:$0xf] %vm1558, %v1525
      $region40: #{convgcn_forward.4} parent=31 // pred_fallthru
        _
      %s1591 = smul.u32 32, %s18
      %p1592 = scmp.lt.s32.totalorder %s1591, 63
      %s1593 = scalar_select %p1592, %s1591, 63
      %s1594 = smul.addr %s1593, 4
      %s1595 = scalar_lea.vmem %s3, %s1594
      // Predicated region
      $region41: #{convgcn_forward.4} parent=31 // pred_check
        %p1596 = pneg %p119
      $region42: #{convgcn_forward.4} parent=31 // pred_check_branch
        %1598 = sbr.rel (%p1596) target = $region44
      $region43: #{convgcn_forward.4} parent=31 // pred_region
        %s1599 = smul.u32 32, %s18
      $region44: #{convgcn_forward.4} parent=31 // pred_fallthru
        _
    $region32: #{convgcn_forward.4} parent=5 // pred_fallthru
      _
    %p1600 = scmp.le.s32.totalorder 2, %s9
    // Predicated region
    $region45: #{convgcn_forward.4} parent=5 // pred_check
      %p1601 = pneg %p1600
    $region46: #{convgcn_forward.4} parent=5 // pred_check_branch
      %1603 = sbr.rel (%p1601) target = $region48
    $region47: #{convgcn_forward.4} parent=5 // pred_region
      %s1604 = ssub.s32 %s9, 2
      // Predicated region
      $region49: #{convgcn_forward.4} parent=47 // pred_check
        %p1605 = pneg %p125
      $region50: #{convgcn_forward.4} parent=47 // pred_check_branch
        %1607 = sbr.rel (%p1605) target = $region52
      $region51: #{convgcn_forward.4} parent=47 // pred_region
        %s1608 = smul.u32 32, %s20
        %p1609 = scmp.lt.s32.totalorder %s1608, 63
        %s1610 = scalar_select %p1609, %s1608, 63
        %s1611 = smul.addr %s1610, 4
        %s1612 = scalar_lea.vmem %s3, %s1611
      $region52: #{convgcn_forward.4} parent=47 // pred_fallthru
        _
    $region48: #{convgcn_forward.4} parent=5 // pred_fallthru
      _
  $region6: #{convgcn_forward.4} parent=0 // loop_footer
    %s13 = sadd.s32 1, %s9
  $region7: #{convgcn_forward.4} parent=0 // loop_footer_branch
    %8 = sbr.rel target = $region3
  $region8: #{convgcn_forward.4} parent=0 // loop_exit
    _

// kernel: convgcn_forward.5
$region0: #{convgcn_forward.5}
  #allocation0 [shape = 'u32[]', space=smem, size = 0x4, offset = 0x4, fixed_abs, tag = 'smem constant byte address 0x4 - core index']
  #allocation1 [shape = 'u32[144,128]{1,0:T(1,128)}', space=vmem, size = 0x12000, scoped, tag = 'internal scratch']
  #allocation2 [shape = 'f32[256,32]{1,0:T(8,128)}', space=vmem, size = 0x20000, scoped, tag = 'scratch operand']
  %s0 = inlined_call_operand.vmem [shape: bf16[512,512], index: 0, kind: input, shape index: {}]
  %s1 = inlined_call_operand.vmem [shape: bf16[512,32], index: 1, kind: input, shape index: {}]
  %s2 = inlined_call_operand.vmem [shape: bf16[32,128], index: 2, kind: input, shape index: {}]
  %s3 = inlined_call_operand.vmem [shape: f32[1,128], index: 3, kind: input, shape index: {}]
  %s4 = inlined_call_operand.vmem [shape: bf16[512,128], index: 4, kind: output, shape index: {}]
  %s5 = sld [smem:[#allocation0]]
  $region57: #{convgcn_forward.5} parent=0
    _
  %s7 = ssub.s32 1, %s5
  %s8 = scalar_select 0, %s7, %s5
  loop: start=0, step=1, limit=4
  $region2: #{convgcn_forward.5} parent=0 // loop_pre_header
    _
  $region3: #{convgcn_forward.5} parent=0 // loop_header
    %s10 = sphi 0, %s14
    %p11 = scmp.ge.s32.totalorder %s10, 4
    %s17 = sphi 0, %s29
    %s18 = sphi 0, %s25
    %s19 = sphi 0, %s17
    %s20 = sphi 0, %s18
    %s21 = sphi 0, %s19
    %s22 = sphi 0, %s20
    %s34 = sphi 0, %s36
    %s37 = sphi 0, %s34
    %s38 = sphi 0, %s37
    %s54 = sphi 0, %s38
    %s60 = sphi 0, %s62
    %s63 = sphi 0, %s60
    %s64 = sphi 0, %s63
    %s80 = sphi 0, %s64
    %s84 = sphi 0, %s84
    %s86 = sphi 0, %s84
    %s87 = sphi 0, %s86
    %s101 = sphi 0, %s87
    %s105 = sphi 0, %s105
    %s107 = sphi 0, %s105
    %s108 = sphi 0, %s107
    %s122 = sphi 0, %s108
    %s128 = sphi 0, %s130
    %s131 = sphi 0, %s128
    %s132 = sphi 0, %s131
    %s148 = sphi 0, %s132
  $region4: #{convgcn_forward.5} parent=0 // loop_header_branch
    %13 = sbr.rel (%p11) target = $region8
  $region5: #{convgcn_forward.5} parent=0 // loop_body
    %s15 = ssub.s32 %s10, 1
    %s16 = ssub.s32 %s10, 2
    %s23 = sadd.s32 1, %s18
    %p24 = scmp.ge.s32.totalorder %s23, 1
    %s25 = scalar_select %p24, 0, %s23
    %s26 = sadd.s32 1, %s17
    %s27 = scalar_select %p24, %s26, %s17
    %p28 = scmp.ge.s32.totalorder %s27, 2
    %s29 = scalar_select %p28, 0, %s27
    %s30 = ssub.s32 %s17, %s29
    %s31 = ssub.s32 %s18, %s25
    %s32 = sor.u32 %s30, %s31
    %p33 = scmp.eq.s32.totalorder %s32, 0
    %s35 = sadd.s32 %s34, 1
    %s36 = scalar_select %p33, %s34, %s35
    %p39 = pneg %p33
    %p40 = scmp.eq.s32.totalorder %s10, 1
    %p41 = por %p39, %p40
    %p42 = scmp.ne.s32.totalorder %s34, %s37
    %p43 = scmp.eq.s32.totalorder %s10, 0
    %p44 = por %p42, %p43
    %p45 = scmp.ne.s32.totalorder %s34, %s37
    %p46 = scmp.eq.s32.totalorder %s15, 1
    %p47 = por %p45, %p46
    %p48 = scmp.ne.s32.totalorder %s37, %s38
    %p49 = scmp.eq.s32.totalorder %s15, 0
    %p50 = por %p48, %p49
    %p51 = scmp.ne.s32.totalorder %s37, %s38
    %p52 = scmp.eq.s32.totalorder %s16, 1
    %p53 = por %p51, %p52
    %p55 = scmp.ne.s32.totalorder %s38, %s54
    %p56 = scmp.eq.s32.totalorder %s16, 0
    %p57 = por %p55, %p56
    %s58 = ssub.s32 %s18, %s25
    %p59 = scmp.eq.s32.totalorder %s58, 0
    %s61 = sadd.s32 %s60, 1
    %s62 = scalar_select %p59, %s60, %s61
    %p65 = pneg %p59
    %p66 = scmp.eq.s32.totalorder %s10, 1
    %p67 = por %p65, %p66
    %p68 = scmp.ne.s32.totalorder %s60, %s63
    %p69 = scmp.eq.s32.totalorder %s10, 0
    %p70 = por %p68, %p69
    %p71 = scmp.ne.s32.totalorder %s60, %s63
    %p72 = scmp.eq.s32.totalorder %s15, 1
    %p73 = por %p71, %p72
    %p74 = scmp.ne.s32.totalorder %s63, %s64
    %p75 = scmp.eq.s32.totalorder %s15, 0
    %p76 = por %p74, %p75
    %p77 = scmp.ne.s32.totalorder %s63, %s64
    %p78 = scmp.eq.s32.totalorder %s16, 1
    %p79 = por %p77, %p78
    %p81 = scmp.ne.s32.totalorder %s64, %s80
    %p82 = scmp.eq.s32.totalorder %s16, 0
    %p83 = por %p81, %p82
    %s85 = sadd.s32 %s84, 1
    %p88 = scmp.eq.s32.totalorder %s10, 1
    %p89 = scmp.ne.s32.totalorder %s84, %s86
    %p90 = scmp.eq.s32.totalorder %s10, 0
    %p91 = por %p89, %p90
    %p92 = scmp.ne.s32.totalorder %s84, %s86
    %p93 = scmp.eq.s32.totalorder %s15, 1
    %p94 = por %p92, %p93
    %p95 = scmp.ne.s32.totalorder %s86, %s87
    %p96 = scmp.eq.s32.totalorder %s15, 0
    %p97 = por %p95, %p96
    %p98 = scmp.ne.s32.totalorder %s86, %s87
    %p99 = scmp.eq.s32.totalorder %s16, 1
    %p100 = por %p98, %p99
    %p102 = scmp.ne.s32.totalorder %s87, %s101
    %p103 = scmp.eq.s32.totalorder %s16, 0
    %p104 = por %p102, %p103
    %s106 = sadd.s32 %s105, 1
    %p109 = scmp.eq.s32.totalorder %s10, 1
    %p110 = scmp.ne.s32.totalorder %s105, %s107
    %p111 = scmp.eq.s32.totalorder %s10, 0
    %p112 = por %p110, %p111
    %p113 = scmp.ne.s32.totalorder %s105, %s107
    %p114 = scmp.eq.s32.totalorder %s15, 1
    %p115 = por %p113, %p114
    %p116 = scmp.ne.s32.totalorder %s107, %s108
    %p117 = scmp.eq.s32.totalorder %s15, 0
    %p118 = por %p116, %p117
    %p119 = scmp.ne.s32.totalorder %s107, %s108
    %p120 = scmp.eq.s32.totalorder %s16, 1
    %p121 = por %p119, %p120
    %p123 = scmp.ne.s32.totalorder %s108, %s122
    %p124 = scmp.eq.s32.totalorder %s16, 0
    %p125 = por %p123, %p124
    %s126 = ssub.s32 %s17, %s29
    %p127 = scmp.eq.s32.totalorder %s126, 0
    %s129 = sadd.s32 %s128, 1
    %s130 = scalar_select %p127, %s128, %s129
    %p133 = pneg %p127
    %p134 = scmp.eq.s32.totalorder %s10, 1
    %p135 = por %p133, %p134
    %p136 = scmp.ne.s32.totalorder %s128, %s131
    %p137 = scmp.eq.s32.totalorder %s10, 0
    %p138 = por %p136, %p137
    %p139 = scmp.ne.s32.totalorder %s128, %s131
    %p140 = scmp.eq.s32.totalorder %s15, 1
    %p141 = por %p139, %p140
    %p142 = scmp.ne.s32.totalorder %s131, %s132
    %p143 = scmp.eq.s32.totalorder %s15, 0
    %p144 = por %p142, %p143
    %p145 = scmp.ne.s32.totalorder %s131, %s132
    %p146 = scmp.eq.s32.totalorder %s16, 1
    %p147 = por %p145, %p146
    %p149 = scmp.ne.s32.totalorder %s132, %s148
    %p150 = scmp.eq.s32.totalorder %s16, 0
    %p151 = por %p149, %p150
    %p152 = scmp.le.s32.totalorder 1, %s10
    %p153 = scmp.lt.s32.totalorder %s10, 3
    %p154 = pnand %p152, %p153
    %p155 = pneg %p154
    // Predicated region
    $region9: #{convgcn_forward.5} parent=5 // pred_check
      _
    $region10: #{convgcn_forward.5} parent=5 // pred_check_branch
      %157 = sbr.rel (%p154) target = $region12
    $region11: #{convgcn_forward.5} parent=5 // pred_region
      %s158 = ssub.s32 %s10, 1
      // Predicated region
      $region13: #{convgcn_forward.5} parent=11 // pred_check
        %p159 = pneg %p76
      $region14: #{convgcn_forward.5} parent=11 // pred_check_branch
        %161 = sbr.rel (%p159) target = $region16
      $region15: #{convgcn_forward.5} parent=11 // pred_region
        %s162 = smul.u32 64, %s20
        %p163 = scmp.lt.s32.totalorder %s162, 63
        %s164 = scalar_select %p163, %s162, 63
        %s165 = smul.addr %s164, 4
        %s166 = scalar_lea.vmem %s1, %s165
        %s167 = smul.u32 64, %s20
      $region16: #{convgcn_forward.5} parent=11 // pred_fallthru
        _
      // Predicated region
      $region17: #{convgcn_forward.5} parent=11 // pred_check
        %p168 = pneg %p97
      $region18: #{convgcn_forward.5} parent=11 // pred_check_branch
        %170 = sbr.rel (%p168) target = $region20
      $region19: #{convgcn_forward.5} parent=11 // pred_region
        _
      $region20: #{convgcn_forward.5} parent=11 // pred_fallthru
        _
      // Predicated region
      $region21: #{convgcn_forward.5} parent=11 // pred_check
        %p171 = pneg %p118
      $region22: #{convgcn_forward.5} parent=11 // pred_check_branch
        %173 = sbr.rel (%p171) target = $region24
      $region23: #{convgcn_forward.5} parent=11 // pred_region
        _
      $region24: #{convgcn_forward.5} parent=11 // pred_fallthru
        _
    $region12: #{convgcn_forward.5} parent=5 // pred_fallthru
      _
    %p174 = scmp.lt.s32.totalorder %s10, 2
    // Predicated region
    $region25: #{convgcn_forward.5} parent=5 // pred_check
      %p175 = pneg %p174
    $region26: #{convgcn_forward.5} parent=5 // pred_check_branch
      %177 = sbr.rel (%p175) target = $region28
    $region27: #{convgcn_forward.5} parent=5 // pred_region
      // Predicated region
      $region29: #{convgcn_forward.5} parent=27 // pred_check
        %p178 = pneg %p44
      $region30: #{convgcn_forward.5} parent=27 // pred_check_branch
        %180 = sbr.rel (%p178) target = $region32
      $region31: #{convgcn_forward.5} parent=27 // pred_region
        %s181 = smul.u32 32, %s17
        %s182 = smul.u32 4, %s18
        %p183 = scmp.lt.s32.totalorder %s181, 63
        %s184 = scalar_select %p183, %s181, 63
        %p185 = scmp.lt.s32.totalorder %s182, 3
        %s186 = scalar_select %p185, %s182, 3
        %s187 = smul.addr %s184, 4
        %s188 = sadd.s32 %s186, %s187
        %s189 = smul.addr %s188, 4
        %s190 = scalar_lea.vmem %s0, %s189
        %s191 = smul.u32 32, %s17
        %s192 = smul.u32 4, %s18
      $region32: #{convgcn_forward.5} parent=27 // pred_fallthru
        _
    $region28: #{convgcn_forward.5} parent=5 // pred_fallthru
      _
    %p193 = scmp.le.s32.totalorder 1, %s10
    %p194 = scmp.lt.s32.totalorder %s10, 3
    %p195 = pnand %p193, %p194
    %p196 = pneg %p195
    // Predicated region
    $region33: #{convgcn_forward.5} parent=5 // pred_check
      _
    $region34: #{convgcn_forward.5} parent=5 // pred_check_branch
      %198 = sbr.rel (%p195) target = $region36
    $region35: #{convgcn_forward.5} parent=5 // pred_region
      %s199 = ssub.s32 %s10, 1
      %s200 = smul.u32 32, %s19
      %s201 = smul.u32 4, %s20
      %p202 = scmp.lt.s32.totalorder %s200, 63
      %s203 = scalar_select %p202, %s200, 63
      %p204 = scmp.lt.s32.totalorder %s201, 3
      %s205 = scalar_select %p204, %s201, 3
      %s206 = smul.addr %s203, 4
      %s207 = sadd.s32 %s205, %s206
      %s208 = smul.addr %s207, 4
      %s209 = scalar_lea.vmem %s0, %s208
      %p210 = pneg %p50
      %p211 = pneg %p47
      %s212 = smul.u32 64, %s20
      %p213 = scmp.lt.s32.totalorder %s212, 63
      %s214 = scalar_select %p213, %s212, 63
      %s215 = smul.addr %s214, 4
      %s216 = scalar_lea.vmem %s1, %s215
      %p217 = pneg %p76
      %p218 = pneg %p73
      %p219 = pneg %p97
      %p220 = pneg %p94
      %p221 = pneg %p118
      %p222 = pneg %p115
      %p223 = pneg %p144
      %p224 = pneg %p141
      %s225 = smul.u32 32, %s19
      %p226 = scmp.lt.s32.totalorder %s225, 63
      %s227 = scalar_select %p226, %s225, 63
      %s228 = smul.addr %s227, 4
      %s229 = scalar_lea.vmem %s4, %s228
      %s230 = smul.u32 32, %s19
      %s231 = smul.u32 4, %s20
      %p232 = scmp.lt.s32.totalorder %s230, 63
      %s233 = scalar_select %p232, %s230, 63
      %p234 = scmp.lt.s32.totalorder %s231, 3
      %s235 = scalar_select %p234, %s231, 3
      %s236 = smul.addr %s233, 4
      %s237 = sadd.s32 %s235, %s236
      %s238 = smul.addr %s237, 4
      %s239 = scalar_lea.vmem %s0, %s238
      %s240 = smul.u32 32, %s19
      %s241 = smul.u32 4, %s20
      %s242 = smul.u32 64, %s20
      %p243 = scmp.lt.s32.totalorder %s242, 63
      %s244 = scalar_select %p243, %s242, 63
      %s245 = smul.addr %s244, 4
      %s246 = scalar_lea.vmem %s1, %s245
      %s247 = smul.u32 64, %s20
      %s248 = smul.u32 32, %s19
      %p249 = scmp.lt.s32.totalorder %s248, 63
      %s250 = scalar_select %p249, %s248, 63
      %s251 = smul.addr %s250, 4
      %s252 = scalar_lea.vmem %s4, %s251
      %s253 = smul.u32 32, %s19
      %p255 = scmp.eq.s32.totalorder %s20, 0
      // Predicated region
      $region37: #{convgcn_forward.5} parent=35 // pred_check
        %p256 = pneg %p255
      $region38: #{convgcn_forward.5} parent=35 // pred_check_branch
        %258 = sbr.rel (%p256) target = $region40
      $region39: #{convgcn_forward.5} parent=35 // pred_region
        %vm259 = vcmask 261120
        %260 = vst.msk [vmem:[#allocation2] sm:$0xff] %vm259, 0.0
        %261 = vst.msk [vmem:[#allocation2 + $0x8] sm:$0xff] %vm259, 0.0
        %262 = vst.msk [vmem:[#allocation2 + $0x10] sm:$0xff] %vm259, 0.0
        %263 = vst.msk [vmem:[#allocation2 + $0x18] sm:$0xff] %vm259, 0.0
        %264 = vst.msk [vmem:[#allocation2 + $0x20] sm:$0xff] %vm259, 0.0
        %265 = vst.msk [vmem:[#allocation2 + $0x28] sm:$0xff] %vm259, 0.0
        %266 = vst.msk [vmem:[#allocation2 + $0x30] sm:$0xff] %vm259, 0.0
        %267 = vst.msk [vmem:[#allocation2 + $0x38] sm:$0xff] %vm259, 0.0
        %268 = vst.msk [vmem:[#allocation2 + $0x40] sm:$0xff] %vm259, 0.0
        %269 = vst.msk [vmem:[#allocation2 + $0x48] sm:$0xff] %vm259, 0.0
        %270 = vst.msk [vmem:[#allocation2 + $0x50] sm:$0xff] %vm259, 0.0
        %271 = vst.msk [vmem:[#allocation2 + $0x58] sm:$0xff] %vm259, 0.0
        %272 = vst.msk [vmem:[#allocation2 + $0x60] sm:$0xff] %vm259, 0.0
        %273 = vst.msk [vmem:[#allocation2 + $0x68] sm:$0xff] %vm259, 0.0
        %274 = vst.msk [vmem:[#allocation2 + $0x70] sm:$0xff] %vm259, 0.0
        %275 = vst.msk [vmem:[#allocation2 + $0x78] sm:$0xff] %vm259, 0.0
        %276 = vst.msk [vmem:[#allocation2 + $0x80] sm:$0xff] %vm259, 0.0
        %277 = vst.msk [vmem:[#allocation2 + $0x88] sm:$0xff] %vm259, 0.0
        %278 = vst.msk [vmem:[#allocation2 + $0x90] sm:$0xff] %vm259, 0.0
        %279 = vst.msk [vmem:[#allocation2 + $0x98] sm:$0xff] %vm259, 0.0
        %280 = vst.msk [vmem:[#allocation2 + $0xa0] sm:$0xff] %vm259, 0.0
        %281 = vst.msk [vmem:[#allocation2 + $0xa8] sm:$0xff] %vm259, 0.0
        %282 = vst.msk [vmem:[#allocation2 + $0xb0] sm:$0xff] %vm259, 0.0
        %283 = vst.msk [vmem:[#allocation2 + $0xb8] sm:$0xff] %vm259, 0.0
        %284 = vst.msk [vmem:[#allocation2 + $0xc0] sm:$0xff] %vm259, 0.0
        %285 = vst.msk [vmem:[#allocation2 + $0xc8] sm:$0xff] %vm259, 0.0
        %286 = vst.msk [vmem:[#allocation2 + $0xd0] sm:$0xff] %vm259, 0.0
        %287 = vst.msk [vmem:[#allocation2 + $0xd8] sm:$0xff] %vm259, 0.0
        %288 = vst.msk [vmem:[#allocation2 + $0xe0] sm:$0xff] %vm259, 0.0
        %289 = vst.msk [vmem:[#allocation2 + $0xe8] sm:$0xff] %vm259, 0.0
        %290 = vst.msk [vmem:[#allocation2 + $0xf0] sm:$0xff] %vm259, 0.0
        %291 = vst.msk [vmem:[#allocation2 + $0xf8] sm:$0xff] %vm259, 0.0
      $region40: #{convgcn_forward.5} parent=35 // pred_fallthru
        _
      %v292 = vld [vmem:[#allocation2] sm:$0xff]
      %v293 = vld [vmem:[#allocation2 + $0x8] sm:$0xff]
      %v294 = vld [vmem:[#allocation2 + $0x10] sm:$0xff]
      %v295 = vld [vmem:[#allocation2 + $0x18] sm:$0xff]
      %v296 = vld [vmem:[#allocation2 + $0x20] sm:$0xff]
      %v297 = vld [vmem:[#allocation2 + $0x28] sm:$0xff]
      %v298 = vld [vmem:[#allocation2 + $0x30] sm:$0xff]
      %v299 = vld [vmem:[#allocation2 + $0x38] sm:$0xff]
      %v300 = vld [vmem:[#allocation2 + $0x40] sm:$0xff]
      %v301 = vld [vmem:[#allocation2 + $0x48] sm:$0xff]
      %v302 = vld [vmem:[#allocation2 + $0x50] sm:$0xff]
      %v303 = vld [vmem:[#allocation2 + $0x58] sm:$0xff]
      %v304 = vld [vmem:[#allocation2 + $0x60] sm:$0xff]
      %v305 = vld [vmem:[#allocation2 + $0x68] sm:$0xff]
      %v306 = vld [vmem:[#allocation2 + $0x70] sm:$0xff]
      %v307 = vld [vmem:[#allocation2 + $0x78] sm:$0xff]
      %v308 = vld [vmem:[#allocation2 + $0x80] sm:$0xff]
      %v309 = vld [vmem:[#allocation2 + $0x88] sm:$0xff]
      %v310 = vld [vmem:[#allocation2 + $0x90] sm:$0xff]
      %v311 = vld [vmem:[#allocation2 + $0x98] sm:$0xff]
      %v312 = vld [vmem:[#allocation2 + $0xa0] sm:$0xff]
      %v313 = vld [vmem:[#allocation2 + $0xa8] sm:$0xff]
      %v314 = vld [vmem:[#allocation2 + $0xb0] sm:$0xff]
      %v315 = vld [vmem:[#allocation2 + $0xb8] sm:$0xff]
      %v316 = vld [vmem:[#allocation2 + $0xc0] sm:$0xff]
      %v317 = vld [vmem:[#allocation2 + $0xc8] sm:$0xff]
      %v318 = vld [vmem:[#allocation2 + $0xd0] sm:$0xff]
      %v319 = vld [vmem:[#allocation2 + $0xd8] sm:$0xff]
      %v320 = vld [vmem:[#allocation2 + $0xe0] sm:$0xff]
      %v321 = vld [vmem:[#allocation2 + $0xe8] sm:$0xff]
      %v322 = vld [vmem:[#allocation2 + $0xf0] sm:$0xff]
      %v323 = vld [vmem:[#allocation2 + $0xf8] sm:$0xff]
      %v324 = vld [vmem:[%s239] sm:$0xff]
      %v325 = vld [vmem:[%s239 + $0x8] sm:$0xff]
      %v326 = vld [vmem:[%s239 + $0x10] sm:$0xff]
      %v327 = vld [vmem:[%s239 + $0x18] sm:$0xff]
      %v328 = vld [vmem:[%s239 + $0x20] sm:$0xff]
      %v329 = vld [vmem:[%s239 + $0x28] sm:$0xff]
      %v330 = vld [vmem:[%s239 + $0x30] sm:$0xff]
      %v331 = vld [vmem:[%s239 + $0x38] sm:$0xff]
      %v332 = vld [vmem:[%s239 + $0x40] sm:$0xff]
      %v333 = vld [vmem:[%s239 + $0x48] sm:$0xff]
      %v334 = vld [vmem:[%s239 + $0x50] sm:$0xff]
      %v335 = vld [vmem:[%s239 + $0x58] sm:$0xff]
      %v336 = vld [vmem:[%s239 + $0x60] sm:$0xff]
      %v337 = vld [vmem:[%s239 + $0x68] sm:$0xff]
      %v338 = vld [vmem:[%s239 + $0x70] sm:$0xff]
      %v339 = vld [vmem:[%s239 + $0x78] sm:$0xff]
      %v340 = vld [vmem:[%s239 + $0x80] sm:$0xff]
      %v341 = vld [vmem:[%s239 + $0x88] sm:$0xff]
      %v342 = vld [vmem:[%s239 + $0x90] sm:$0xff]
      %v343 = vld [vmem:[%s239 + $0x98] sm:$0xff]
      %v344 = vld [vmem:[%s239 + $0xa0] sm:$0xff]
      %v345 = vld [vmem:[%s239 + $0xa8] sm:$0xff]
      %v346 = vld [vmem:[%s239 + $0xb0] sm:$0xff]
      %v347 = vld [vmem:[%s239 + $0xb8] sm:$0xff]
      %v348 = vld [vmem:[%s239 + $0xc0] sm:$0xff]
      %v349 = vld [vmem:[%s239 + $0xc8] sm:$0xff]
      %v350 = vld [vmem:[%s239 + $0xd0] sm:$0xff]
      %v351 = vld [vmem:[%s239 + $0xd8] sm:$0xff]
      %v352 = vld [vmem:[%s239 + $0xe0] sm:$0xff]
      %v353 = vld [vmem:[%s239 + $0xe8] sm:$0xff]
      %v354 = vld [vmem:[%s239 + $0xf0] sm:$0xff]
      %v355 = vld [vmem:[%s239 + $0xf8] sm:$0xff]
      %v356 = vld [vmem:[%s239 + $0x100] sm:$0xff]
      %v357 = vld [vmem:[%s239 + $0x108] sm:$0xff]
      %v358 = vld [vmem:[%s239 + $0x110] sm:$0xff]
      %v359 = vld [vmem:[%s239 + $0x118] sm:$0xff]
      %v360 = vld [vmem:[%s239 + $0x120] sm:$0xff]
      %v361 = vld [vmem:[%s239 + $0x128] sm:$0xff]
      %v362 = vld [vmem:[%s239 + $0x130] sm:$0xff]
      %v363 = vld [vmem:[%s239 + $0x138] sm:$0xff]
      %v364 = vld [vmem:[%s239 + $0x140] sm:$0xff]
      %v365 = vld [vmem:[%s239 + $0x148] sm:$0xff]
      %v366 = vld [vmem:[%s239 + $0x150] sm:$0xff]
      %v367 = vld [vmem:[%s239 + $0x158] sm:$0xff]
      %v368 = vld [vmem:[%s239 + $0x160] sm:$0xff]
      %v369 = vld [vmem:[%s239 + $0x168] sm:$0xff]
      %v370 = vld [vmem:[%s239 + $0x170] sm:$0xff]
      %v371 = vld [vmem:[%s239 + $0x178] sm:$0xff]
      %v372 = vld [vmem:[%s239 + $0x180] sm:$0xff]
      %v373 = vld [vmem:[%s239 + $0x188] sm:$0xff]
      %v374 = vld [vmem:[%s239 + $0x190] sm:$0xff]
      %v375 = vld [vmem:[%s239 + $0x198] sm:$0xff]
      %v376 = vld [vmem:[%s239 + $0x1a0] sm:$0xff]
      %v377 = vld [vmem:[%s239 + $0x1a8] sm:$0xff]
      %v378 = vld [vmem:[%s239 + $0x1b0] sm:$0xff]
      %v379 = vld [vmem:[%s239 + $0x1b8] sm:$0xff]
      %v380 = vld [vmem:[%s239 + $0x1c0] sm:$0xff]
      %v381 = vld [vmem:[%s239 + $0x1c8] sm:$0xff]
      %v382 = vld [vmem:[%s239 + $0x1d0] sm:$0xff]
      %v383 = vld [vmem:[%s239 + $0x1d8] sm:$0xff]
      %v384 = vld [vmem:[%s239 + $0x1e0] sm:$0xff]
      %v385 = vld [vmem:[%s239 + $0x1e8] sm:$0xff]
      %v386 = vld [vmem:[%s239 + $0x1f0] sm:$0xff]
      %v387 = vld [vmem:[%s239 + $0x1f8] sm:$0xff]
      %v388 = vld [vmem:[%s246] sm:$0xf]
      %v389 = vld [vmem:[%s246 + $0x4] sm:$0xf]
      %v390 = vld [vmem:[%s246 + $0x8] sm:$0xf]
      %v391 = vld [vmem:[%s246 + $0xc] sm:$0xf]
      %v392 = vld [vmem:[%s246 + $0x10] sm:$0xf]
      %v393 = vld [vmem:[%s246 + $0x14] sm:$0xf]
      %v394 = vld [vmem:[%s246 + $0x18] sm:$0xf]
      %v395 = vld [vmem:[%s246 + $0x1c] sm:$0xf]
      %v396 = vld [vmem:[%s246 + $0x20] sm:$0xf]
      %v397 = vld [vmem:[%s246 + $0x24] sm:$0xf]
      %v398 = vld [vmem:[%s246 + $0x28] sm:$0xf]
      %v399 = vld [vmem:[%s246 + $0x2c] sm:$0xf]
      %v400 = vld [vmem:[%s246 + $0x30] sm:$0xf]
      %v401 = vld [vmem:[%s246 + $0x34] sm:$0xf]
      %v402 = vld [vmem:[%s246 + $0x38] sm:$0xf]
      %v403 = vld [vmem:[%s246 + $0x3c] sm:$0xf]
      %v404 = vld [vmem:[%s246 + $0x40] sm:$0xf]
      %v405 = vld [vmem:[%s246 + $0x44] sm:$0xf]
      %v406 = vld [vmem:[%s246 + $0x48] sm:$0xf]
      %v407 = vld [vmem:[%s246 + $0x4c] sm:$0xf]
      %v408 = vld [vmem:[%s246 + $0x50] sm:$0xf]
      %v409 = vld [vmem:[%s246 + $0x54] sm:$0xf]
      %v410 = vld [vmem:[%s246 + $0x58] sm:$0xf]
      %v411 = vld [vmem:[%s246 + $0x5c] sm:$0xf]
      %v412 = vld [vmem:[%s246 + $0x60] sm:$0xf]
      %v413 = vld [vmem:[%s246 + $0x64] sm:$0xf]
      %v414 = vld [vmem:[%s246 + $0x68] sm:$0xf]
      %v415 = vld [vmem:[%s246 + $0x6c] sm:$0xf]
      %v416 = vld [vmem:[%s246 + $0x70] sm:$0xf]
      %v417 = vld [vmem:[%s246 + $0x74] sm:$0xf]
      %v418 = vld [vmem:[%s246 + $0x78] sm:$0xf]
      %v419 = vld [vmem:[%s246 + $0x7c] sm:$0xf]
      %v420 = vld [vmem:[%s246 + $0x80] sm:$0xf]
      %v421 = vld [vmem:[%s246 + $0x84] sm:$0xf]
      %v422 = vld [vmem:[%s246 + $0x88] sm:$0xf]
      %v423 = vld [vmem:[%s246 + $0x8c] sm:$0xf]
      %v424 = vld [vmem:[%s246 + $0x90] sm:$0xf]
      %v425 = vld [vmem:[%s246 + $0x94] sm:$0xf]
      %v426 = vld [vmem:[%s246 + $0x98] sm:$0xf]
      %v427 = vld [vmem:[%s246 + $0x9c] sm:$0xf]
      %v428 = vld [vmem:[%s246 + $0xa0] sm:$0xf]
      %v429 = vld [vmem:[%s246 + $0xa4] sm:$0xf]
      %v430 = vld [vmem:[%s246 + $0xa8] sm:$0xf]
      %v431 = vld [vmem:[%s246 + $0xac] sm:$0xf]
      %v432 = vld [vmem:[%s246 + $0xb0] sm:$0xf]
      %v433 = vld [vmem:[%s246 + $0xb4] sm:$0xf]
      %v434 = vld [vmem:[%s246 + $0xb8] sm:$0xf]
      %v435 = vld [vmem:[%s246 + $0xbc] sm:$0xf]
      %v436 = vld [vmem:[%s246 + $0xc0] sm:$0xf]
      %v437 = vld [vmem:[%s246 + $0xc4] sm:$0xf]
      %v438 = vld [vmem:[%s246 + $0xc8] sm:$0xf]
      %v439 = vld [vmem:[%s246 + $0xcc] sm:$0xf]
      %v440 = vld [vmem:[%s246 + $0xd0] sm:$0xf]
      %v441 = vld [vmem:[%s246 + $0xd4] sm:$0xf]
      %v442 = vld [vmem:[%s246 + $0xd8] sm:$0xf]
      %v443 = vld [vmem:[%s246 + $0xdc] sm:$0xf]
      %v444 = vld [vmem:[%s246 + $0xe0] sm:$0xf]
      %v445 = vld [vmem:[%s246 + $0xe4] sm:$0xf]
      %v446 = vld [vmem:[%s246 + $0xe8] sm:$0xf]
      %v447 = vld [vmem:[%s246 + $0xec] sm:$0xf]
      %v448 = vld [vmem:[%s246 + $0xf0] sm:$0xf]
      %v449 = vld [vmem:[%s246 + $0xf4] sm:$0xf]
      %v450 = vld [vmem:[%s246 + $0xf8] sm:$0xf]
      %v451 = vld [vmem:[%s246 + $0xfc] sm:$0xf]
      %v516 = vunpack.c.l.b16 %v324
      %v517 = vunpack.c.h.b16 %v324
      %v518 = vunpack.c.l.b16 %v325
      %v519 = vunpack.c.h.b16 %v325
      %v520 = vunpack.c.l.b16 %v326
      %v521 = vunpack.c.h.b16 %v326
      %v522 = vunpack.c.l.b16 %v327
      %v523 = vunpack.c.h.b16 %v327
      %v524 = vunpack.c.l.b16 %v328
      %v525 = vunpack.c.h.b16 %v328
      %v526 = vunpack.c.l.b16 %v329
      %v527 = vunpack.c.h.b16 %v329
      %v528 = vunpack.c.l.b16 %v330
      %v529 = vunpack.c.h.b16 %v330
      %v530 = vunpack.c.l.b16 %v331
      %v531 = vunpack.c.h.b16 %v331
      %v532 = vunpack.c.l.b16 %v332
      %v533 = vunpack.c.h.b16 %v332
      %v534 = vunpack.c.l.b16 %v333
      %v535 = vunpack.c.h.b16 %v333
      %v536 = vunpack.c.l.b16 %v334
      %v537 = vunpack.c.h.b16 %v334
      %v538 = vunpack.c.l.b16 %v335
      %v539 = vunpack.c.h.b16 %v335
      %v540 = vunpack.c.l.b16 %v336
      %v541 = vunpack.c.h.b16 %v336
      %v542 = vunpack.c.l.b16 %v337
      %v543 = vunpack.c.h.b16 %v337
      %v544 = vunpack.c.l.b16 %v338
      %v545 = vunpack.c.h.b16 %v338
      %v546 = vunpack.c.l.b16 %v339
      %v547 = vunpack.c.h.b16 %v339
      %v548 = vunpack.c.l.b16 %v340
      %v549 = vunpack.c.h.b16 %v340
      %v550 = vunpack.c.l.b16 %v341
      %v551 = vunpack.c.h.b16 %v341
      %v552 = vunpack.c.l.b16 %v342
      %v553 = vunpack.c.h.b16 %v342
      %v554 = vunpack.c.l.b16 %v343
      %v555 = vunpack.c.h.b16 %v343
      %v556 = vunpack.c.l.b16 %v344
      %v557 = vunpack.c.h.b16 %v344
      %v558 = vunpack.c.l.b16 %v345
      %v559 = vunpack.c.h.b16 %v345
      %v560 = vunpack.c.l.b16 %v346
      %v561 = vunpack.c.h.b16 %v346
      %v562 = vunpack.c.l.b16 %v347
      %v563 = vunpack.c.h.b16 %v347
      %v564 = vunpack.c.l.b16 %v348
      %v565 = vunpack.c.h.b16 %v348
      %v566 = vunpack.c.l.b16 %v349
      %v567 = vunpack.c.h.b16 %v349
      %v568 = vunpack.c.l.b16 %v350
      %v569 = vunpack.c.h.b16 %v350
      %v570 = vunpack.c.l.b16 %v351
      %v571 = vunpack.c.h.b16 %v351
      %v572 = vunpack.c.l.b16 %v352
      %v573 = vunpack.c.h.b16 %v352
      %v574 = vunpack.c.l.b16 %v353
      %v575 = vunpack.c.h.b16 %v353
      %v576 = vunpack.c.l.b16 %v354
      %v577 = vunpack.c.h.b16 %v354
      %v578 = vunpack.c.l.b16 %v355
      %v579 = vunpack.c.h.b16 %v355
      %v580 = vunpack.c.l.b16 %v356
      %v581 = vunpack.c.h.b16 %v356
      %v582 = vunpack.c.l.b16 %v357
      %v583 = vunpack.c.h.b16 %v357
      %v584 = vunpack.c.l.b16 %v358
      %v585 = vunpack.c.h.b16 %v358
      %v586 = vunpack.c.l.b16 %v359
      %v587 = vunpack.c.h.b16 %v359
      %v588 = vunpack.c.l.b16 %v360
      %v589 = vunpack.c.h.b16 %v360
      %v590 = vunpack.c.l.b16 %v361
      %v591 = vunpack.c.h.b16 %v361
      %v592 = vunpack.c.l.b16 %v362
      %v593 = vunpack.c.h.b16 %v362
      %v594 = vunpack.c.l.b16 %v363
      %v595 = vunpack.c.h.b16 %v363
      %v596 = vunpack.c.l.b16 %v364
      %v597 = vunpack.c.h.b16 %v364
      %v598 = vunpack.c.l.b16 %v365
      %v599 = vunpack.c.h.b16 %v365
      %v600 = vunpack.c.l.b16 %v366
      %v601 = vunpack.c.h.b16 %v366
      %v602 = vunpack.c.l.b16 %v367
      %v603 = vunpack.c.h.b16 %v367
      %v604 = vunpack.c.l.b16 %v368
      %v605 = vunpack.c.h.b16 %v368
      %v606 = vunpack.c.l.b16 %v369
      %v607 = vunpack.c.h.b16 %v369
      %v608 = vunpack.c.l.b16 %v370
      %v609 = vunpack.c.h.b16 %v370
      %v610 = vunpack.c.l.b16 %v371
      %v611 = vunpack.c.h.b16 %v371
      %v612 = vunpack.c.l.b16 %v372
      %v613 = vunpack.c.h.b16 %v372
      %v614 = vunpack.c.l.b16 %v373
      %v615 = vunpack.c.h.b16 %v373
      %v616 = vunpack.c.l.b16 %v374
      %v617 = vunpack.c.h.b16 %v374
      %v618 = vunpack.c.l.b16 %v375
      %v619 = vunpack.c.h.b16 %v375
      %v620 = vunpack.c.l.b16 %v376
      %v621 = vunpack.c.h.b16 %v376
      %v622 = vunpack.c.l.b16 %v377
      %v623 = vunpack.c.h.b16 %v377
      %v624 = vunpack.c.l.b16 %v378
      %v625 = vunpack.c.h.b16 %v378
      %v626 = vunpack.c.l.b16 %v379
      %v627 = vunpack.c.h.b16 %v379
      %v628 = vunpack.c.l.b16 %v380
      %v629 = vunpack.c.h.b16 %v380
      %v630 = vunpack.c.l.b16 %v381
      %v631 = vunpack.c.h.b16 %v381
      %v632 = vunpack.c.l.b16 %v382
      %v633 = vunpack.c.h.b16 %v382
      %v634 = vunpack.c.l.b16 %v383
      %v635 = vunpack.c.h.b16 %v383
      %v636 = vunpack.c.l.b16 %v384
      %v637 = vunpack.c.h.b16 %v384
      %v638 = vunpack.c.l.b16 %v385
      %v639 = vunpack.c.h.b16 %v385
      %v640 = vunpack.c.l.b16 %v386
      %v641 = vunpack.c.h.b16 %v386
      %v642 = vunpack.c.l.b16 %v387
      %v643 = vunpack.c.h.b16 %v387
      %v644 = vpack.c.b16 %v520, %v516
      %v645 = vpack.c.b16 %v521, %v517
      %v646 = vpack.c.b16 %v522, %v518
      %v647 = vpack.c.b16 %v523, %v519
      %v648 = vpack.c.b16 %v528, %v524
      %v649 = vpack.c.b16 %v529, %v525
      %v650 = vpack.c.b16 %v530, %v526
      %v651 = vpack.c.b16 %v531, %v527
      %v652 = vpack.c.b16 %v536, %v532
      %v653 = vpack.c.b16 %v537, %v533
      %v654 = vpack.c.b16 %v538, %v534
      %v655 = vpack.c.b16 %v539, %v535
      %v656 = vpack.c.b16 %v544, %v540
      %v657 = vpack.c.b16 %v545, %v541
      %v658 = vpack.c.b16 %v546, %v542
      %v659 = vpack.c.b16 %v547, %v543
      %v660 = vpack.c.b16 %v552, %v548
      %v661 = vpack.c.b16 %v553, %v549
      %v662 = vpack.c.b16 %v554, %v550
      %v663 = vpack.c.b16 %v555, %v551
      %v664 = vpack.c.b16 %v560, %v556
      %v665 = vpack.c.b16 %v561, %v557
      %v666 = vpack.c.b16 %v562, %v558
      %v667 = vpack.c.b16 %v563, %v559
      %v668 = vpack.c.b16 %v568, %v564
      %v669 = vpack.c.b16 %v569, %v565
      %v670 = vpack.c.b16 %v570, %v566
      %v671 = vpack.c.b16 %v571, %v567
      %v672 = vpack.c.b16 %v576, %v572
      %v673 = vpack.c.b16 %v577, %v573
      %v674 = vpack.c.b16 %v578, %v574
      %v675 = vpack.c.b16 %v579, %v575
      %v676 = vpack.c.b16 %v584, %v580
      %v677 = vpack.c.b16 %v585, %v581
      %v678 = vpack.c.b16 %v586, %v582
      %v679 = vpack.c.b16 %v587, %v583
      %v680 = vpack.c.b16 %v592, %v588
      %v681 = vpack.c.b16 %v593, %v589
      %v682 = vpack.c.b16 %v594, %v590
      %v683 = vpack.c.b16 %v595, %v591
      %v684 = vpack.c.b16 %v600, %v596
      %v685 = vpack.c.b16 %v601, %v597
      %v686 = vpack.c.b16 %v602, %v598
      %v687 = vpack.c.b16 %v603, %v599
      %v688 = vpack.c.b16 %v608, %v604
      %v689 = vpack.c.b16 %v609, %v605
      %v690 = vpack.c.b16 %v610, %v606
      %v691 = vpack.c.b16 %v611, %v607
      %v692 = vpack.c.b16 %v616, %v612
      %v693 = vpack.c.b16 %v617, %v613
      %v694 = vpack.c.b16 %v618, %v614
      %v695 = vpack.c.b16 %v619, %v615
      %v696 = vpack.c.b16 %v624, %v620
      %v697 = vpack.c.b16 %v625, %v621
      %v698 = vpack.c.b16 %v626, %v622
      %v699 = vpack.c.b16 %v627, %v623
      %v700 = vpack.c.b16 %v632, %v628
      %v701 = vpack.c.b16 %v633, %v629
      %v702 = vpack.c.b16 %v634, %v630
      %v703 = vpack.c.b16 %v635, %v631
      %v704 = vpack.c.b16 %v640, %v636
      %v705 = vpack.c.b16 %v641, %v637
      %v706 = vpack.c.b16 %v642, %v638
      %v707 = vpack.c.b16 %v643, %v639
      %v836 = vunpack.c.l.b16 %v388
      %v837 = vunpack.c.l.b16 %v389
      %v838 = vunpack.c.l.b16 %v390
      %v839 = vunpack.c.l.b16 %v391
      %v840 = vunpack.c.l.b16 %v392
      %v841 = vunpack.c.l.b16 %v393
      %v842 = vunpack.c.l.b16 %v394
      %v843 = vunpack.c.l.b16 %v395
      %v844 = vunpack.c.l.b16 %v396
      %v845 = vunpack.c.l.b16 %v397
      %v846 = vunpack.c.l.b16 %v398
      %v847 = vunpack.c.l.b16 %v399
      %v848 = vunpack.c.l.b16 %v400
      %v849 = vunpack.c.l.b16 %v401
      %v850 = vunpack.c.l.b16 %v402
      %v851 = vunpack.c.l.b16 %v403
      %v852 = vunpack.c.l.b16 %v404
      %v853 = vunpack.c.l.b16 %v405
      %v854 = vunpack.c.l.b16 %v406
      %v855 = vunpack.c.l.b16 %v407
      %v856 = vunpack.c.l.b16 %v408
      %v857 = vunpack.c.l.b16 %v409
      %v858 = vunpack.c.l.b16 %v410
      %v859 = vunpack.c.l.b16 %v411
      %v860 = vunpack.c.l.b16 %v412
      %v861 = vunpack.c.l.b16 %v413
      %v862 = vunpack.c.l.b16 %v414
      %v863 = vunpack.c.l.b16 %v415
      %v864 = vunpack.c.l.b16 %v416
      %v865 = vunpack.c.l.b16 %v417
      %v866 = vunpack.c.l.b16 %v418
      %v867 = vunpack.c.l.b16 %v419
      %v868 = vunpack.c.l.b16 %v420
      %v869 = vunpack.c.l.b16 %v421
      %v870 = vunpack.c.l.b16 %v422
      %v871 = vunpack.c.l.b16 %v423
      %v872 = vunpack.c.l.b16 %v424
      %v873 = vunpack.c.l.b16 %v425
      %v874 = vunpack.c.l.b16 %v426
      %v875 = vunpack.c.l.b16 %v427
      %v876 = vunpack.c.l.b16 %v428
      %v877 = vunpack.c.l.b16 %v429
      %v878 = vunpack.c.l.b16 %v430
      %v879 = vunpack.c.l.b16 %v431
      %v880 = vunpack.c.l.b16 %v432
      %v881 = vunpack.c.l.b16 %v433
      %v882 = vunpack.c.l.b16 %v434
      %v883 = vunpack.c.l.b16 %v435
      %v884 = vunpack.c.l.b16 %v436
      %v885 = vunpack.c.l.b16 %v437
      %v886 = vunpack.c.l.b16 %v438
      %v887 = vunpack.c.l.b16 %v439
      %v888 = vunpack.c.l.b16 %v440
      %v889 = vunpack.c.l.b16 %v441
      %v890 = vunpack.c.l.b16 %v442
      %v891 = vunpack.c.l.b16 %v443
      %v892 = vunpack.c.l.b16 %v444
      %v893 = vunpack.c.l.b16 %v445
      %v894 = vunpack.c.l.b16 %v446
      %v895 = vunpack.c.l.b16 %v447
      %v896 = vunpack.c.l.b16 %v448
      %v897 = vunpack.c.l.b16 %v449
      %v898 = vunpack.c.l.b16 %v450
      %v899 = vunpack.c.l.b16 %v451
      %v900 = vpack.c.b16 %v837, %v836
      %v901 = vpack.c.b16 %v839, %v838
      %v902 = vpack.c.b16 %v841, %v840
      %v903 = vpack.c.b16 %v843, %v842
      %v904 = vpack.c.b16 %v845, %v844
      %v905 = vpack.c.b16 %v847, %v846
      %v906 = vpack.c.b16 %v849, %v848
      %v907 = vpack.c.b16 %v851, %v850
      %v908 = vpack.c.b16 %v853, %v852
      %v909 = vpack.c.b16 %v855, %v854
      %v910 = vpack.c.b16 %v857, %v856
      %v911 = vpack.c.b16 %v859, %v858
      %v912 = vpack.c.b16 %v861, %v860
      %v913 = vpack.c.b16 %v863, %v862
      %v914 = vpack.c.b16 %v865, %v864
      %v915 = vpack.c.b16 %v867, %v866
      %v916 = vpack.c.b16 %v869, %v868
      %v917 = vpack.c.b16 %v871, %v870
      %v918 = vpack.c.b16 %v873, %v872
      %v919 = vpack.c.b16 %v875, %v874
      %v920 = vpack.c.b16 %v877, %v876
      %v921 = vpack.c.b16 %v879, %v878
      %v922 = vpack.c.b16 %v881, %v880
      %v923 = vpack.c.b16 %v883, %v882
      %v924 = vpack.c.b16 %v885, %v884
      %v925 = vpack.c.b16 %v887, %v886
      %v926 = vpack.c.b16 %v889, %v888
      %v927 = vpack.c.b16 %v891, %v890
      %v928 = vpack.c.b16 %v893, %v892
      %v929 = vpack.c.b16 %v895, %v894
      %v930 = vpack.c.b16 %v897, %v896
      %v931 = vpack.c.b16 %v899, %v898
      %964 = vmatprep.subr.bf16.mxu0 0
      %965 = vmatpush1.bf16.msra.mxu0 %v907
      %966 = vmatprep.subr.bf16.mxu0 0
      %967 = vmatpush1.bf16.msra.mxu0 %v906
      %968 = vmatprep.subr.bf16.mxu0 0
      %969 = vmatpush1.bf16.msra.mxu0 %v905
      %970 = vmatprep.subr.bf16.mxu0 0
      %971 = vmatpush1.bf16.msra.mxu0 %v904
      %972 = vmatprep.subr.bf16.mxu0 0
      %973 = vmatpush1.bf16.msra.mxu0 %v903
      %974 = vmatprep.subr.bf16.mxu0 0
      %975 = vmatpush1.bf16.msra.mxu0 %v902
      %976 = vmatprep.subr.bf16.mxu0 0
      %977 = vmatpush1.bf16.msra.mxu0 %v901
      %978 = vmatprep.subr.bf16.mxu0 0
      %979 = vmatpush1.bf16.msra.mxu0 %v900
      %980 = vmatprep.subr.bf16.mxu0 0
      %981 = vmatpush2.bf16.msra.mxu0 %v915
      %982 = vmatprep.subr.bf16.mxu0 0
      %983 = vmatpush2.bf16.msra.mxu0 %v914
      %984 = vmatprep.subr.bf16.mxu0 0
      %985 = vmatpush2.bf16.msra.mxu0 %v913
      %986 = vmatprep.subr.bf16.mxu0 0
      %987 = vmatpush2.bf16.msra.mxu0 %v912
      %988 = vmatprep.subr.bf16.mxu0 0
      %989 = vmatpush2.bf16.msra.mxu0 %v911
      %990 = vmatprep.subr.bf16.mxu0 0
      %991 = vmatpush2.bf16.msra.mxu0 %v910
      %992 = vmatprep.subr.bf16.mxu0 0
      %993 = vmatpush2.bf16.msra.mxu0 %v909
      %994 = vmatprep.subr.bf16.mxu0 0
      %995 = vmatpush2.bf16.msra.mxu0 %v908
      %996 = vmatprep.mubr.bf16.mxu0 %v645
      %997 = vmatmul.mubr.bf16.gmra.mxu0 %v644
      %v998 = vpop.f32.mrf.mxu0
      %v999 = vadd.f32 0.0, %v998
      %v1000 = vpop.f32.mrf.mxu0
      %v1001 = vpop.f32.mrf.mxu0
      %v1002 = vadd.f32 0.0, %v1001
      %v1003 = vpop.f32.mrf.mxu0
      %1004 = vmatprep.mubr.bf16.mxu0 %v649
      %1005 = vmatmul.mubr.bf16.gmra.mxu0 %v648
      %v1006 = vpop.f32.mrf.mxu0
      %v1007 = vadd.f32 0.0, %v1006
      %v1008 = vpop.f32.mrf.mxu0
      %v1009 = vpop.f32.mrf.mxu0
      %v1010 = vadd.f32 0.0, %v1009
      %v1011 = vpop.f32.mrf.mxu0
      %1012 = vmatprep.mubr.bf16.mxu0 %v653
      %1013 = vmatmul.mubr.bf16.gmra.mxu0 %v652
      %v1014 = vpop.f32.mrf.mxu0
      %v1015 = vadd.f32 0.0, %v1014
      %v1016 = vpop.f32.mrf.mxu0
      %v1017 = vpop.f32.mrf.mxu0
      %v1018 = vadd.f32 0.0, %v1017
      %v1019 = vpop.f32.mrf.mxu0
      %1020 = vmatprep.mubr.bf16.mxu0 %v657
      %1021 = vmatmul.mubr.bf16.gmra.mxu0 %v656
      %v1022 = vpop.f32.mrf.mxu0
      %v1023 = vadd.f32 0.0, %v1022
      %v1024 = vpop.f32.mrf.mxu0
      %v1025 = vpop.f32.mrf.mxu0
      %v1026 = vadd.f32 0.0, %v1025
      %v1027 = vpop.f32.mrf.mxu0
      %1028 = vmatprep.mubr.bf16.mxu0 %v661
      %1029 = vmatmul.mubr.bf16.gmra.mxu0 %v660
      %v1030 = vpop.f32.mrf.mxu0
      %v1031 = vadd.f32 0.0, %v1030
      %v1032 = vpop.f32.mrf.mxu0
      %v1033 = vpop.f32.mrf.mxu0
      %v1034 = vadd.f32 0.0, %v1033
      %v1035 = vpop.f32.mrf.mxu0
      %1036 = vmatprep.mubr.bf16.mxu0 %v665
      %1037 = vmatmul.mubr.bf16.gmra.mxu0 %v664
      %v1038 = vpop.f32.mrf.mxu0
      %v1039 = vadd.f32 0.0, %v1038
      %v1040 = vpop.f32.mrf.mxu0
      %v1041 = vpop.f32.mrf.mxu0
      %v1042 = vadd.f32 0.0, %v1041
      %v1043 = vpop.f32.mrf.mxu0
      %1044 = vmatprep.mubr.bf16.mxu0 %v669
      %1045 = vmatmul.mubr.bf16.gmra.mxu0 %v668
      %v1046 = vpop.f32.mrf.mxu0
      %v1047 = vadd.f32 0.0, %v1046
      %v1048 = vpop.f32.mrf.mxu0
      %v1049 = vpop.f32.mrf.mxu0
      %v1050 = vadd.f32 0.0, %v1049
      %v1051 = vpop.f32.mrf.mxu0
      %1052 = vmatprep.mubr.bf16.mxu0 %v673
      %1053 = vmatmul.mubr.bf16.gmra.mxu0 %v672
      %v1054 = vpop.f32.mrf.mxu0
      %v1055 = vadd.f32 0.0, %v1054
      %v1056 = vpop.f32.mrf.mxu0
      %v1057 = vpop.f32.mrf.mxu0
      %v1058 = vadd.f32 0.0, %v1057
      %v1059 = vpop.f32.mrf.mxu0
      %1060 = vmatprep.mubr.bf16.mxu0 %v677
      %1061 = vmatmul.mubr.bf16.gmra.mxu0 %v676
      %v1062 = vpop.f32.mrf.mxu0
      %v1063 = vadd.f32 0.0, %v1062
      %v1064 = vpop.f32.mrf.mxu0
      %v1065 = vpop.f32.mrf.mxu0
      %v1066 = vadd.f32 0.0, %v1065
      %v1067 = vpop.f32.mrf.mxu0
      %1068 = vmatprep.mubr.bf16.mxu0 %v681
      %1069 = vmatmul.mubr.bf16.gmra.mxu0 %v680
      %v1070 = vpop.f32.mrf.mxu0
      %v1071 = vadd.f32 0.0, %v1070
      %v1072 = vpop.f32.mrf.mxu0
      %v1073 = vpop.f32.mrf.mxu0
      %v1074 = vadd.f32 0.0, %v1073
      %v1075 = vpop.f32.mrf.mxu0
      %1076 = vmatprep.mubr.bf16.mxu0 %v685
      %1077 = vmatmul.mubr.bf16.gmra.mxu0 %v684
      %v1078 = vpop.f32.mrf.mxu0
      %v1079 = vadd.f32 0.0, %v1078
      %v1080 = vpop.f32.mrf.mxu0
      %v1081 = vpop.f32.mrf.mxu0
      %v1082 = vadd.f32 0.0, %v1081
      %v1083 = vpop.f32.mrf.mxu0
      %1084 = vmatprep.mubr.bf16.mxu0 %v689
      %1085 = vmatmul.mubr.bf16.gmra.mxu0 %v688
      %v1086 = vpop.f32.mrf.mxu0
      %v1087 = vadd.f32 0.0, %v1086
      %v1088 = vpop.f32.mrf.mxu0
      %v1089 = vpop.f32.mrf.mxu0
      %v1090 = vadd.f32 0.0, %v1089
      %v1091 = vpop.f32.mrf.mxu0
      %1092 = vmatprep.mubr.bf16.mxu0 %v693
      %1093 = vmatmul.mubr.bf16.gmra.mxu0 %v692
      %v1094 = vpop.f32.mrf.mxu0
      %v1095 = vadd.f32 0.0, %v1094
      %v1096 = vpop.f32.mrf.mxu0
      %v1097 = vpop.f32.mrf.mxu0
      %v1098 = vadd.f32 0.0, %v1097
      %v1099 = vpop.f32.mrf.mxu0
      %1100 = vmatprep.mubr.bf16.mxu0 %v697
      %1101 = vmatmul.mubr.bf16.gmra.mxu0 %v696
      %v1102 = vpop.f32.mrf.mxu0
      %v1103 = vadd.f32 0.0, %v1102
      %v1104 = vpop.f32.mrf.mxu0
      %v1105 = vpop.f32.mrf.mxu0
      %v1106 = vadd.f32 0.0, %v1105
      %v1107 = vpop.f32.mrf.mxu0
      %1108 = vmatprep.mubr.bf16.mxu0 %v701
      %1109 = vmatmul.mubr.bf16.gmra.mxu0 %v700
      %v1110 = vpop.f32.mrf.mxu0
      %v1111 = vadd.f32 0.0, %v1110
      %v1112 = vpop.f32.mrf.mxu0
      %v1113 = vpop.f32.mrf.mxu0
      %v1114 = vadd.f32 0.0, %v1113
      %v1115 = vpop.f32.mrf.mxu0
      %1116 = vmatprep.mubr.bf16.mxu0 %v705
      %1117 = vmatmul.mubr.bf16.gmra.mxu0 %v704
      %v1118 = vpop.f32.mrf.mxu0
      %v1119 = vadd.f32 0.0, %v1118
      %v1120 = vpop.f32.mrf.mxu0
      %v1121 = vpop.f32.mrf.mxu0
      %v1122 = vadd.f32 0.0, %v1121
      %v1123 = vpop.f32.mrf.mxu0
      %1124 = vdwg.mxu0
      %1125 = vmatprep.subr.bf16.mxu0 0
      %1126 = vmatpush1.bf16.msra.mxu0 %v923
      %1127 = vmatprep.subr.bf16.mxu0 0
      %1128 = vmatpush1.bf16.msra.mxu0 %v922
      %1129 = vmatprep.subr.bf16.mxu0 0
      %1130 = vmatpush1.bf16.msra.mxu0 %v921
      %1131 = vmatprep.subr.bf16.mxu0 0
      %1132 = vmatpush1.bf16.msra.mxu0 %v920
      %1133 = vmatprep.subr.bf16.mxu0 0
      %1134 = vmatpush1.bf16.msra.mxu0 %v919
      %1135 = vmatprep.subr.bf16.mxu0 0
      %1136 = vmatpush1.bf16.msra.mxu0 %v918
      %1137 = vmatprep.subr.bf16.mxu0 0
      %1138 = vmatpush1.bf16.msra.mxu0 %v917
      %1139 = vmatprep.subr.bf16.mxu0 0
      %1140 = vmatpush1.bf16.msra.mxu0 %v916
      %1141 = vmatprep.subr.bf16.mxu0 0
      %1142 = vmatpush2.bf16.msra.mxu0 %v931
      %1143 = vmatprep.subr.bf16.mxu0 0
      %1144 = vmatpush2.bf16.msra.mxu0 %v930
      %1145 = vmatprep.subr.bf16.mxu0 0
      %1146 = vmatpush2.bf16.msra.mxu0 %v929
      %1147 = vmatprep.subr.bf16.mxu0 0
      %1148 = vmatpush2.bf16.msra.mxu0 %v928
      %1149 = vmatprep.subr.bf16.mxu0 0
      %1150 = vmatpush2.bf16.msra.mxu0 %v927
      %1151 = vmatprep.subr.bf16.mxu0 0
      %1152 = vmatpush2.bf16.msra.mxu0 %v926
      %1153 = vmatprep.subr.bf16.mxu0 0
      %1154 = vmatpush2.bf16.msra.mxu0 %v925
      %1155 = vmatprep.subr.bf16.mxu0 0
      %1156 = vmatpush2.bf16.msra.mxu0 %v924
      %1157 = vmatprep.mubr.bf16.mxu0 %v647
      %1158 = vmatmul.mubr.bf16.gmra.mxu0 %v646
      %v1159 = vpop.f32.mrf.mxu0
      %v1160 = vadd.f32 %v999, %v1159
      %v1161 = vpop.f32.mrf.mxu0
      %v1162 = vpop.f32.mrf.mxu0
      %v1163 = vadd.f32 %v1002, %v1162
      %v1164 = vpop.f32.mrf.mxu0
      %1165 = vmatprep.mubr.bf16.mxu0 %v651
      %1166 = vmatmul.mubr.bf16.gmra.mxu0 %v650
      %v1167 = vpop.f32.mrf.mxu0
      %v1168 = vadd.f32 %v1007, %v1167
      %v1169 = vpop.f32.mrf.mxu0
      %v1170 = vpop.f32.mrf.mxu0
      %v1171 = vadd.f32 %v1010, %v1170
      %v1172 = vpop.f32.mrf.mxu0
      %1173 = vmatprep.mubr.bf16.mxu0 %v655
      %1174 = vmatmul.mubr.bf16.gmra.mxu0 %v654
      %v1175 = vpop.f32.mrf.mxu0
      %v1176 = vadd.f32 %v1015, %v1175
      %v1177 = vpop.f32.mrf.mxu0
      %v1178 = vpop.f32.mrf.mxu0
      %v1179 = vadd.f32 %v1018, %v1178
      %v1180 = vpop.f32.mrf.mxu0
      %1181 = vmatprep.mubr.bf16.mxu0 %v659
      %1182 = vmatmul.mubr.bf16.gmra.mxu0 %v658
      %v1183 = vpop.f32.mrf.mxu0
      %v1184 = vadd.f32 %v1023, %v1183
      %v1185 = vpop.f32.mrf.mxu0
      %v1186 = vpop.f32.mrf.mxu0
      %v1187 = vadd.f32 %v1026, %v1186
      %v1188 = vpop.f32.mrf.mxu0
      %1189 = vmatprep.mubr.bf16.mxu0 %v663
      %1190 = vmatmul.mubr.bf16.gmra.mxu0 %v662
      %v1191 = vpop.f32.mrf.mxu0
      %v1192 = vadd.f32 %v1031, %v1191
      %v1193 = vpop.f32.mrf.mxu0
      %v1194 = vpop.f32.mrf.mxu0
      %v1195 = vadd.f32 %v1034, %v1194
      %v1196 = vpop.f32.mrf.mxu0
      %1197 = vmatprep.mubr.bf16.mxu0 %v667
      %1198 = vmatmul.mubr.bf16.gmra.mxu0 %v666
      %v1199 = vpop.f32.mrf.mxu0
      %v1200 = vadd.f32 %v1039, %v1199
      %v1201 = vpop.f32.mrf.mxu0
      %v1202 = vpop.f32.mrf.mxu0
      %v1203 = vadd.f32 %v1042, %v1202
      %v1204 = vpop.f32.mrf.mxu0
      %1205 = vmatprep.mubr.bf16.mxu0 %v671
      %1206 = vmatmul.mubr.bf16.gmra.mxu0 %v670
      %v1207 = vpop.f32.mrf.mxu0
      %v1208 = vadd.f32 %v1047, %v1207
      %v1209 = vpop.f32.mrf.mxu0
      %v1210 = vpop.f32.mrf.mxu0
      %v1211 = vadd.f32 %v1050, %v1210
      %v1212 = vpop.f32.mrf.mxu0
      %1213 = vmatprep.mubr.bf16.mxu0 %v675
      %1214 = vmatmul.mubr.bf16.gmra.mxu0 %v674
      %v1215 = vpop.f32.mrf.mxu0
      %v1216 = vadd.f32 %v1055, %v1215
      %v1217 = vpop.f32.mrf.mxu0
      %v1218 = vpop.f32.mrf.mxu0
      %v1219 = vadd.f32 %v1058, %v1218
      %v1220 = vpop.f32.mrf.mxu0
      %1221 = vmatprep.mubr.bf16.mxu0 %v679
      %1222 = vmatmul.mubr.bf16.gmra.mxu0 %v678
      %v1223 = vpop.f32.mrf.mxu0
      %v1224 = vadd.f32 %v1063, %v1223
      %v1225 = vpop.f32.mrf.mxu0
      %v1226 = vpop.f32.mrf.mxu0
      %v1227 = vadd.f32 %v1066, %v1226
      %v1228 = vpop.f32.mrf.mxu0
      %1229 = vmatprep.mubr.bf16.mxu0 %v683
      %1230 = vmatmul.mubr.bf16.gmra.mxu0 %v682
      %v1231 = vpop.f32.mrf.mxu0
      %v1232 = vadd.f32 %v1071, %v1231
      %v1233 = vpop.f32.mrf.mxu0
      %v1234 = vpop.f32.mrf.mxu0
      %v1235 = vadd.f32 %v1074, %v1234
      %v1236 = vpop.f32.mrf.mxu0
      %1237 = vmatprep.mubr.bf16.mxu0 %v687
      %1238 = vmatmul.mubr.bf16.gmra.mxu0 %v686
      %v1239 = vpop.f32.mrf.mxu0
      %v1240 = vadd.f32 %v1079, %v1239
      %v1241 = vpop.f32.mrf.mxu0
      %v1242 = vpop.f32.mrf.mxu0
      %v1243 = vadd.f32 %v1082, %v1242
      %v1244 = vpop.f32.mrf.mxu0
      %1245 = vmatprep.mubr.bf16.mxu0 %v691
      %1246 = vmatmul.mubr.bf16.gmra.mxu0 %v690
      %v1247 = vpop.f32.mrf.mxu0
      %v1248 = vadd.f32 %v1087, %v1247
      %v1249 = vpop.f32.mrf.mxu0
      %v1250 = vpop.f32.mrf.mxu0
      %v1251 = vadd.f32 %v1090, %v1250
      %v1252 = vpop.f32.mrf.mxu0
      %1253 = vmatprep.mubr.bf16.mxu0 %v695
      %1254 = vmatmul.mubr.bf16.gmra.mxu0 %v694
      %v1255 = vpop.f32.mrf.mxu0
      %v1256 = vadd.f32 %v1095, %v1255
      %v1257 = vpop.f32.mrf.mxu0
      %v1258 = vpop.f32.mrf.mxu0
      %v1259 = vadd.f32 %v1098, %v1258
      %v1260 = vpop.f32.mrf.mxu0
      %1261 = vmatprep.mubr.bf16.mxu0 %v699
      %1262 = vmatmul.mubr.bf16.gmra.mxu0 %v698
      %v1263 = vpop.f32.mrf.mxu0
      %v1264 = vadd.f32 %v1103, %v1263
      %v1265 = vpop.f32.mrf.mxu0
      %v1266 = vpop.f32.mrf.mxu0
      %v1267 = vadd.f32 %v1106, %v1266
      %v1268 = vpop.f32.mrf.mxu0
      %1269 = vmatprep.mubr.bf16.mxu0 %v703
      %1270 = vmatmul.mubr.bf16.gmra.mxu0 %v702
      %v1271 = vpop.f32.mrf.mxu0
      %v1272 = vadd.f32 %v1111, %v1271
      %v1273 = vpop.f32.mrf.mxu0
      %v1274 = vpop.f32.mrf.mxu0
      %v1275 = vadd.f32 %v1114, %v1274
      %v1276 = vpop.f32.mrf.mxu0
      %1277 = vmatprep.mubr.bf16.mxu0 %v707
      %1278 = vmatmul.mubr.bf16.gmra.mxu0 %v706
      %v1279 = vpop.f32.mrf.mxu0
      %v1280 = vadd.f32 %v1119, %v1279
      %v1281 = vpop.f32.mrf.mxu0
      %v1282 = vpop.f32.mrf.mxu0
      %v1283 = vadd.f32 %v1122, %v1282
      %v1284 = vpop.f32.mrf.mxu0
      %1285 = vdwg.mxu0
      %v1286 = vadd.f32 %v292, %v1160
      %v1287 = vadd.f32 %v293, %v1163
      %v1288 = vadd.f32 %v294, %v1168
      %v1289 = vadd.f32 %v295, %v1171
      %v1290 = vadd.f32 %v296, %v1176
      %v1291 = vadd.f32 %v297, %v1179
      %v1292 = vadd.f32 %v298, %v1184
      %v1293 = vadd.f32 %v299, %v1187
      %v1294 = vadd.f32 %v300, %v1192
      %v1295 = vadd.f32 %v301, %v1195
      %v1296 = vadd.f32 %v302, %v1200
      %v1297 = vadd.f32 %v303, %v1203
      %v1298 = vadd.f32 %v304, %v1208
      %v1299 = vadd.f32 %v305, %v1211
      %v1300 = vadd.f32 %v306, %v1216
      %v1301 = vadd.f32 %v307, %v1219
      %v1302 = vadd.f32 %v308, %v1224
      %v1303 = vadd.f32 %v309, %v1227
      %v1304 = vadd.f32 %v310, %v1232
      %v1305 = vadd.f32 %v311, %v1235
      %v1306 = vadd.f32 %v312, %v1240
      %v1307 = vadd.f32 %v313, %v1243
      %v1308 = vadd.f32 %v314, %v1248
      %v1309 = vadd.f32 %v315, %v1251
      %v1310 = vadd.f32 %v316, %v1256
      %v1311 = vadd.f32 %v317, %v1259
      %v1312 = vadd.f32 %v318, %v1264
      %v1313 = vadd.f32 %v319, %v1267
      %v1314 = vadd.f32 %v320, %v1272
      %v1315 = vadd.f32 %v321, %v1275
      %v1316 = vadd.f32 %v322, %v1280
      %v1317 = vadd.f32 %v323, %v1283
      %vm1318 = vcmask 261120
      %1319 = vst.msk [vmem:[#allocation2] sm:$0xff] %vm1318, %v1286
      %1320 = vst.msk [vmem:[#allocation2 + $0x8] sm:$0xff] %vm1318, %v1287
      %1321 = vst.msk [vmem:[#allocation2 + $0x10] sm:$0xff] %vm1318, %v1288
      %1322 = vst.msk [vmem:[#allocation2 + $0x18] sm:$0xff] %vm1318, %v1289
      %1323 = vst.msk [vmem:[#allocation2 + $0x20] sm:$0xff] %vm1318, %v1290
      %1324 = vst.msk [vmem:[#allocation2 + $0x28] sm:$0xff] %vm1318, %v1291
      %1325 = vst.msk [vmem:[#allocation2 + $0x30] sm:$0xff] %vm1318, %v1292
      %1326 = vst.msk [vmem:[#allocation2 + $0x38] sm:$0xff] %vm1318, %v1293
      %1327 = vst.msk [vmem:[#allocation2 + $0x40] sm:$0xff] %vm1318, %v1294
      %1328 = vst.msk [vmem:[#allocation2 + $0x48] sm:$0xff] %vm1318, %v1295
      %1329 = vst.msk [vmem:[#allocation2 + $0x50] sm:$0xff] %vm1318, %v1296
      %1330 = vst.msk [vmem:[#allocation2 + $0x58] sm:$0xff] %vm1318, %v1297
      %1331 = vst.msk [vmem:[#allocation2 + $0x60] sm:$0xff] %vm1318, %v1298
      %1332 = vst.msk [vmem:[#allocation2 + $0x68] sm:$0xff] %vm1318, %v1299
      %1333 = vst.msk [vmem:[#allocation2 + $0x70] sm:$0xff] %vm1318, %v1300
      %1334 = vst.msk [vmem:[#allocation2 + $0x78] sm:$0xff] %vm1318, %v1301
      %1335 = vst.msk [vmem:[#allocation2 + $0x80] sm:$0xff] %vm1318, %v1302
      %1336 = vst.msk [vmem:[#allocation2 + $0x88] sm:$0xff] %vm1318, %v1303
      %1337 = vst.msk [vmem:[#allocation2 + $0x90] sm:$0xff] %vm1318, %v1304
      %1338 = vst.msk [vmem:[#allocation2 + $0x98] sm:$0xff] %vm1318, %v1305
      %1339 = vst.msk [vmem:[#allocation2 + $0xa0] sm:$0xff] %vm1318, %v1306
      %1340 = vst.msk [vmem:[#allocation2 + $0xa8] sm:$0xff] %vm1318, %v1307
      %1341 = vst.msk [vmem:[#allocation2 + $0xb0] sm:$0xff] %vm1318, %v1308
      %1342 = vst.msk [vmem:[#allocation2 + $0xb8] sm:$0xff] %vm1318, %v1309
      %1343 = vst.msk [vmem:[#allocation2 + $0xc0] sm:$0xff] %vm1318, %v1310
      %1344 = vst.msk [vmem:[#allocation2 + $0xc8] sm:$0xff] %vm1318, %v1311
      %1345 = vst.msk [vmem:[#allocation2 + $0xd0] sm:$0xff] %vm1318, %v1312
      %1346 = vst.msk [vmem:[#allocation2 + $0xd8] sm:$0xff] %vm1318, %v1313
      %1347 = vst.msk [vmem:[#allocation2 + $0xe0] sm:$0xff] %vm1318, %v1314
      %1348 = vst.msk [vmem:[#allocation2 + $0xe8] sm:$0xff] %vm1318, %v1315
      %1349 = vst.msk [vmem:[#allocation2 + $0xf0] sm:$0xff] %vm1318, %v1316
      %1350 = vst.msk [vmem:[#allocation2 + $0xf8] sm:$0xff] %vm1318, %v1317
      // Predicated region
      $region41: #{convgcn_forward.5} parent=35 // pred_check
        %p1351 = pneg %p255
      $region42: #{convgcn_forward.5} parent=35 // pred_check_branch
        %1353 = sbr.rel (%p1351) target = $region44
      $region43: #{convgcn_forward.5} parent=35 // pred_region
        %v1354 = vld [vmem:[#allocation2] sm:$0xff]
        %v1355 = vld [vmem:[#allocation2 + $0x8] sm:$0xff]
        %v1356 = vld [vmem:[#allocation2 + $0x10] sm:$0xff]
        %v1357 = vld [vmem:[#allocation2 + $0x18] sm:$0xff]
        %v1358 = vld [vmem:[#allocation2 + $0x20] sm:$0xff]
        %v1359 = vld [vmem:[#allocation2 + $0x28] sm:$0xff]
        %v1360 = vld [vmem:[#allocation2 + $0x30] sm:$0xff]
        %v1361 = vld [vmem:[#allocation2 + $0x38] sm:$0xff]
        %v1362 = vld [vmem:[#allocation2 + $0x40] sm:$0xff]
        %v1363 = vld [vmem:[#allocation2 + $0x48] sm:$0xff]
        %v1364 = vld [vmem:[#allocation2 + $0x50] sm:$0xff]
        %v1365 = vld [vmem:[#allocation2 + $0x58] sm:$0xff]
        %v1366 = vld [vmem:[#allocation2 + $0x60] sm:$0xff]
        %v1367 = vld [vmem:[#allocation2 + $0x68] sm:$0xff]
        %v1368 = vld [vmem:[#allocation2 + $0x70] sm:$0xff]
        %v1369 = vld [vmem:[#allocation2 + $0x78] sm:$0xff]
        %v1370 = vld [vmem:[#allocation2 + $0x80] sm:$0xff]
        %v1371 = vld [vmem:[#allocation2 + $0x88] sm:$0xff]
        %v1372 = vld [vmem:[#allocation2 + $0x90] sm:$0xff]
        %v1373 = vld [vmem:[#allocation2 + $0x98] sm:$0xff]
        %v1374 = vld [vmem:[#allocation2 + $0xa0] sm:$0xff]
        %v1375 = vld [vmem:[#allocation2 + $0xa8] sm:$0xff]
        %v1376 = vld [vmem:[#allocation2 + $0xb0] sm:$0xff]
        %v1377 = vld [vmem:[#allocation2 + $0xb8] sm:$0xff]
        %v1378 = vld [vmem:[#allocation2 + $0xc0] sm:$0xff]
        %v1379 = vld [vmem:[#allocation2 + $0xc8] sm:$0xff]
        %v1380 = vld [vmem:[#allocation2 + $0xd0] sm:$0xff]
        %v1381 = vld [vmem:[#allocation2 + $0xd8] sm:$0xff]
        %v1382 = vld [vmem:[#allocation2 + $0xe0] sm:$0xff]
        %v1383 = vld [vmem:[#allocation2 + $0xe8] sm:$0xff]
        %v1384 = vld [vmem:[#allocation2 + $0xf0] sm:$0xff]
        %v1385 = vld [vmem:[#allocation2 + $0xf8] sm:$0xff]
        %v1386 = vpack.c.bf16 %v1355, %v1354
        %v1387 = vpack.c.bf16 %v1357, %v1356
        %v1388 = vpack.c.bf16 %v1359, %v1358
        %v1389 = vpack.c.bf16 %v1361, %v1360
        %v1390 = vpack.c.bf16 %v1363, %v1362
        %v1391 = vpack.c.bf16 %v1365, %v1364
        %v1392 = vpack.c.bf16 %v1367, %v1366
        %v1393 = vpack.c.bf16 %v1369, %v1368
        %v1394 = vpack.c.bf16 %v1371, %v1370
        %v1395 = vpack.c.bf16 %v1373, %v1372
        %v1396 = vpack.c.bf16 %v1375, %v1374
        %v1397 = vpack.c.bf16 %v1377, %v1376
        %v1398 = vpack.c.bf16 %v1379, %v1378
        %v1399 = vpack.c.bf16 %v1381, %v1380
        %v1400 = vpack.c.bf16 %v1383, %v1382
        %v1401 = vpack.c.bf16 %v1385, %v1384
        %v1402 = vld [vmem:[%s2] sm:$0xf]
        %v1403 = vld [vmem:[%s2 + $0x4] sm:$0xf]
        %v1404 = vld [vmem:[%s2 + $0x8] sm:$0xf]
        %v1405 = vld [vmem:[%s2 + $0xc] sm:$0xf]
        %v1406 = vld [vmem:[%s3] sm:$0x1]
        %v1408 = vlaneseq
        %v1409 = vshrl.u32 %v1408, 7
        %v1410 = vsub.s32 0, %v1409
        %v1411 = vrot.slane %v1406, %v1410
        %v1417 = vunpack.c.l.b16 %v1402
        %v1418 = vunpack.c.l.b16 %v1403
        %v1419 = vunpack.c.l.b16 %v1404
        %v1420 = vunpack.c.l.b16 %v1405
        %v1421 = vpack.c.b16 %v1418, %v1417
        %v1422 = vpack.c.b16 %v1420, %v1419
        %v1426 = vsel %vm1318, %v1386, 0
        %v1429 = vsel %vm1318, %v1387, 0
        %v1432 = vsel %vm1318, %v1388, 0
        %v1435 = vsel %vm1318, %v1389, 0
        %v1438 = vsel %vm1318, %v1390, 0
        %v1441 = vsel %vm1318, %v1391, 0
        %v1444 = vsel %vm1318, %v1392, 0
        %v1447 = vsel %vm1318, %v1393, 0
        %v1450 = vsel %vm1318, %v1394, 0
        %v1453 = vsel %vm1318, %v1395, 0
        %v1456 = vsel %vm1318, %v1396, 0
        %v1459 = vsel %vm1318, %v1397, 0
        %v1462 = vsel %vm1318, %v1398, 0
        %v1465 = vsel %vm1318, %v1399, 0
        %v1468 = vsel %vm1318, %v1400, 0
        %v1471 = vsel %vm1318, %v1401, 0
        %1473 = vmatprep.subr.bf16.mxu0 0
        %1474 = vmatpush1.bf16.msra.mxu0 0
        %1475 = vmatprep.subr.bf16.mxu0 0
        %1476 = vmatpush1.bf16.msra.mxu0 0
        %1477 = vmatprep.subr.bf16.mxu0 0
        %1478 = vmatpush1.bf16.msra.mxu0 0
        %1479 = vmatprep.subr.bf16.mxu0 0
        %1480 = vmatpush1.bf16.msra.mxu0 0
        %1481 = vmatprep.subr.bf16.mxu0 0
        %1482 = vmatpush1.bf16.msra.mxu0 0
        %1483 = vmatprep.subr.bf16.mxu0 0
        %1484 = vmatpush1.bf16.msra.mxu0 0
        %1485 = vmatprep.subr.bf16.mxu0 0
        %1486 = vmatpush1.bf16.msra.mxu0 %v1422
        %1487 = vmatprep.subr.bf16.mxu0 0
        %1488 = vmatpush1.bf16.msra.mxu0 %v1421
        %1489 = vmatprep.subr.bf16.mxu0 0
        %1490 = vmatpush2.bf16.msra.mxu0 0
        %1491 = vmatprep.subr.bf16.mxu0 0
        %1492 = vmatpush2.bf16.msra.mxu0 0
        %1493 = vmatprep.subr.bf16.mxu0 0
        %1494 = vmatpush2.bf16.msra.mxu0 0
        %1495 = vmatprep.subr.bf16.mxu0 0
        %1496 = vmatpush2.bf16.msra.mxu0 0
        %1497 = vmatprep.subr.bf16.mxu0 0
        %1498 = vmatpush2.bf16.msra.mxu0 0
        %1499 = vmatprep.subr.bf16.mxu0 0
        %1500 = vmatpush2.bf16.msra.mxu0 0
        %1501 = vmatprep.subr.bf16.mxu0 0
        %1502 = vmatpush2.bf16.msra.mxu0 0
        %1503 = vmatprep.subr.bf16.mxu0 0
        %1504 = vmatpush2.bf16.msra.mxu0 0
        %1505 = vmatprep.mubr.bf16.mxu0 0
        %1506 = vmatmul.mubr.bf16.gmra.mxu0 %v1426
        %v1507 = vpop.f32.mrf.mxu0
        %v1508 = vadd.f32 %v1411, %v1507
        %v1509 = vpop.f32.mrf.mxu0
        %v1510 = vpop.f32.mrf.mxu0
        %v1511 = vadd.f32 %v1411, %v1510
        %v1512 = vpop.f32.mrf.mxu0
        %1513 = vmatprep.mubr.bf16.mxu0 0
        %1514 = vmatmul.mubr.bf16.gmra.mxu0 %v1429
        %v1515 = vpop.f32.mrf.mxu0
        %v1516 = vadd.f32 %v1411, %v1515
        %v1517 = vpop.f32.mrf.mxu0
        %v1518 = vpop.f32.mrf.mxu0
        %v1519 = vadd.f32 %v1411, %v1518
        %v1520 = vpop.f32.mrf.mxu0
        %1521 = vmatprep.mubr.bf16.mxu0 0
        %1522 = vmatmul.mubr.bf16.gmra.mxu0 %v1432
        %v1523 = vpop.f32.mrf.mxu0
        %v1524 = vadd.f32 %v1411, %v1523
        %v1525 = vpop.f32.mrf.mxu0
        %v1526 = vpop.f32.mrf.mxu0
        %v1527 = vadd.f32 %v1411, %v1526
        %v1528 = vpop.f32.mrf.mxu0
        %1529 = vmatprep.mubr.bf16.mxu0 0
        %1530 = vmatmul.mubr.bf16.gmra.mxu0 %v1435
        %v1531 = vpop.f32.mrf.mxu0
        %v1532 = vadd.f32 %v1411, %v1531
        %v1533 = vpop.f32.mrf.mxu0
        %v1534 = vpop.f32.mrf.mxu0
        %v1535 = vadd.f32 %v1411, %v1534
        %v1536 = vpop.f32.mrf.mxu0
        %1537 = vmatprep.mubr.bf16.mxu0 0
        %1538 = vmatmul.mubr.bf16.gmra.mxu0 %v1438
        %v1539 = vpop.f32.mrf.mxu0
        %v1540 = vadd.f32 %v1411, %v1539
        %v1541 = vpop.f32.mrf.mxu0
        %v1542 = vpop.f32.mrf.mxu0
        %v1543 = vadd.f32 %v1411, %v1542
        %v1544 = vpop.f32.mrf.mxu0
        %1545 = vmatprep.mubr.bf16.mxu0 0
        %1546 = vmatmul.mubr.bf16.gmra.mxu0 %v1441
        %v1547 = vpop.f32.mrf.mxu0
        %v1548 = vadd.f32 %v1411, %v1547
        %v1549 = vpop.f32.mrf.mxu0
        %v1550 = vpop.f32.mrf.mxu0
        %v1551 = vadd.f32 %v1411, %v1550
        %v1552 = vpop.f32.mrf.mxu0
        %1553 = vmatprep.mubr.bf16.mxu0 0
        %1554 = vmatmul.mubr.bf16.gmra.mxu0 %v1444
        %v1555 = vpop.f32.mrf.mxu0
        %v1556 = vadd.f32 %v1411, %v1555
        %v1557 = vpop.f32.mrf.mxu0
        %v1558 = vpop.f32.mrf.mxu0
        %v1559 = vadd.f32 %v1411, %v1558
        %v1560 = vpop.f32.mrf.mxu0
        %1561 = vmatprep.mubr.bf16.mxu0 0
        %1562 = vmatmul.mubr.bf16.gmra.mxu0 %v1447
        %v1563 = vpop.f32.mrf.mxu0
        %v1564 = vadd.f32 %v1411, %v1563
        %v1565 = vpop.f32.mrf.mxu0
        %v1566 = vpop.f32.mrf.mxu0
        %v1567 = vadd.f32 %v1411, %v1566
        %v1568 = vpop.f32.mrf.mxu0
        %1569 = vmatprep.mubr.bf16.mxu0 0
        %1570 = vmatmul.mubr.bf16.gmra.mxu0 %v1450
        %v1571 = vpop.f32.mrf.mxu0
        %v1572 = vadd.f32 %v1411, %v1571
        %v1573 = vpop.f32.mrf.mxu0
        %v1574 = vpop.f32.mrf.mxu0
        %v1575 = vadd.f32 %v1411, %v1574
        %v1576 = vpop.f32.mrf.mxu0
        %1577 = vmatprep.mubr.bf16.mxu0 0
        %1578 = vmatmul.mubr.bf16.gmra.mxu0 %v1453
        %v1579 = vpop.f32.mrf.mxu0
        %v1580 = vadd.f32 %v1411, %v1579
        %v1581 = vpop.f32.mrf.mxu0
        %v1582 = vpop.f32.mrf.mxu0
        %v1583 = vadd.f32 %v1411, %v1582
        %v1584 = vpop.f32.mrf.mxu0
        %1585 = vmatprep.mubr.bf16.mxu0 0
        %1586 = vmatmul.mubr.bf16.gmra.mxu0 %v1456
        %v1587 = vpop.f32.mrf.mxu0
        %v1588 = vadd.f32 %v1411, %v1587
        %v1589 = vpop.f32.mrf.mxu0
        %v1590 = vpop.f32.mrf.mxu0
        %v1591 = vadd.f32 %v1411, %v1590
        %v1592 = vpop.f32.mrf.mxu0
        %1593 = vmatprep.mubr.bf16.mxu0 0
        %1594 = vmatmul.mubr.bf16.gmra.mxu0 %v1459
        %v1595 = vpop.f32.mrf.mxu0
        %v1596 = vadd.f32 %v1411, %v1595
        %v1597 = vpop.f32.mrf.mxu0
        %v1598 = vpop.f32.mrf.mxu0
        %v1599 = vadd.f32 %v1411, %v1598
        %v1600 = vpop.f32.mrf.mxu0
        %1601 = vmatprep.mubr.bf16.mxu0 0
        %1602 = vmatmul.mubr.bf16.gmra.mxu0 %v1462
        %v1603 = vpop.f32.mrf.mxu0
        %v1604 = vadd.f32 %v1411, %v1603
        %v1605 = vpop.f32.mrf.mxu0
        %v1606 = vpop.f32.mrf.mxu0
        %v1607 = vadd.f32 %v1411, %v1606
        %v1608 = vpop.f32.mrf.mxu0
        %1609 = vmatprep.mubr.bf16.mxu0 0
        %1610 = vmatmul.mubr.bf16.gmra.mxu0 %v1465
        %v1611 = vpop.f32.mrf.mxu0
        %v1612 = vadd.f32 %v1411, %v1611
        %v1613 = vpop.f32.mrf.mxu0
        %v1614 = vpop.f32.mrf.mxu0
        %v1615 = vadd.f32 %v1411, %v1614
        %v1616 = vpop.f32.mrf.mxu0
        %1617 = vmatprep.mubr.bf16.mxu0 0
        %1618 = vmatmul.mubr.bf16.gmra.mxu0 %v1468
        %v1619 = vpop.f32.mrf.mxu0
        %v1620 = vadd.f32 %v1411, %v1619
        %v1621 = vpop.f32.mrf.mxu0
        %v1622 = vpop.f32.mrf.mxu0
        %v1623 = vadd.f32 %v1411, %v1622
        %v1624 = vpop.f32.mrf.mxu0
        %1625 = vmatprep.mubr.bf16.mxu0 0
        %1626 = vmatmul.mubr.bf16.gmra.mxu0 %v1471
        %v1627 = vpop.f32.mrf.mxu0
        %v1628 = vadd.f32 %v1411, %v1627
        %v1629 = vpop.f32.mrf.mxu0
        %v1630 = vpop.f32.mrf.mxu0
        %v1631 = vadd.f32 %v1411, %v1630
        %v1632 = vpop.f32.mrf.mxu0
        %1633 = vdwg.mxu0
        %v1634 = vpack.c.bf16 %v1511, %v1508
        %v1635 = vpack.c.bf16 %v1519, %v1516
        %v1636 = vpack.c.bf16 %v1527, %v1524
        %v1637 = vpack.c.bf16 %v1535, %v1532
        %v1638 = vpack.c.bf16 %v1543, %v1540
        %v1639 = vpack.c.bf16 %v1551, %v1548
        %v1640 = vpack.c.bf16 %v1559, %v1556
        %v1641 = vpack.c.bf16 %v1567, %v1564
        %v1642 = vpack.c.bf16 %v1575, %v1572
        %v1643 = vpack.c.bf16 %v1583, %v1580
        %v1644 = vpack.c.bf16 %v1591, %v1588
        %v1645 = vpack.c.bf16 %v1599, %v1596
        %v1646 = vpack.c.bf16 %v1607, %v1604
        %v1647 = vpack.c.bf16 %v1615, %v1612
        %v1648 = vpack.c.bf16 %v1623, %v1620
        %v1649 = vpack.c.bf16 %v1631, %v1628
        %v1666 = vunpack.c.l.b16 %v1634
        %v1667 = vunpack.c.h.b16 %v1634
        %v1668 = vunpack.c.l.b16 %v1635
        %v1669 = vunpack.c.h.b16 %v1635
        %v1670 = vunpack.c.l.b16 %v1636
        %v1671 = vunpack.c.h.b16 %v1636
        %v1672 = vunpack.c.l.b16 %v1637
        %v1673 = vunpack.c.h.b16 %v1637
        %v1674 = vunpack.c.l.b16 %v1638
        %v1675 = vunpack.c.h.b16 %v1638
        %v1676 = vunpack.c.l.b16 %v1639
        %v1677 = vunpack.c.h.b16 %v1639
        %v1678 = vunpack.c.l.b16 %v1640
        %v1679 = vunpack.c.h.b16 %v1640
        %v1680 = vunpack.c.l.b16 %v1641
        %v1681 = vunpack.c.h.b16 %v1641
        %v1682 = vunpack.c.l.b16 %v1642
        %v1683 = vunpack.c.h.b16 %v1642
        %v1684 = vunpack.c.l.b16 %v1643
        %v1685 = vunpack.c.h.b16 %v1643
        %v1686 = vunpack.c.l.b16 %v1644
        %v1687 = vunpack.c.h.b16 %v1644
        %v1688 = vunpack.c.l.b16 %v1645
        %v1689 = vunpack.c.h.b16 %v1645
        %v1690 = vunpack.c.l.b16 %v1646
        %v1691 = vunpack.c.h.b16 %v1646
        %v1692 = vunpack.c.l.b16 %v1647
        %v1693 = vunpack.c.h.b16 %v1647
        %v1694 = vunpack.c.l.b16 %v1648
        %v1695 = vunpack.c.h.b16 %v1648
        %v1696 = vunpack.c.l.b16 %v1649
        %v1697 = vunpack.c.h.b16 %v1649
        %v1698 = vpack.c.b16 %v1666, %v1666
        %v1699 = vpack.c.b16 %v1667, %v1667
        %v1700 = vpack.c.b16 %v1668, %v1668
        %v1701 = vpack.c.b16 %v1669, %v1669
        %v1702 = vpack.c.b16 %v1670, %v1670
        %v1703 = vpack.c.b16 %v1671, %v1671
        %v1704 = vpack.c.b16 %v1672, %v1672
        %v1705 = vpack.c.b16 %v1673, %v1673
        %v1706 = vpack.c.b16 %v1674, %v1674
        %v1707 = vpack.c.b16 %v1675, %v1675
        %v1708 = vpack.c.b16 %v1676, %v1676
        %v1709 = vpack.c.b16 %v1677, %v1677
        %v1710 = vpack.c.b16 %v1678, %v1678
        %v1711 = vpack.c.b16 %v1679, %v1679
        %v1712 = vpack.c.b16 %v1680, %v1680
        %v1713 = vpack.c.b16 %v1681, %v1681
        %v1714 = vpack.c.b16 %v1682, %v1682
        %v1715 = vpack.c.b16 %v1683, %v1683
        %v1716 = vpack.c.b16 %v1684, %v1684
        %v1717 = vpack.c.b16 %v1685, %v1685
        %v1718 = vpack.c.b16 %v1686, %v1686
        %v1719 = vpack.c.b16 %v1687, %v1687
        %v1720 = vpack.c.b16 %v1688, %v1688
        %v1721 = vpack.c.b16 %v1689, %v1689
        %v1722 = vpack.c.b16 %v1690, %v1690
        %v1723 = vpack.c.b16 %v1691, %v1691
        %v1724 = vpack.c.b16 %v1692, %v1692
        %v1725 = vpack.c.b16 %v1693, %v1693
        %v1726 = vpack.c.b16 %v1694, %v1694
        %v1727 = vpack.c.b16 %v1695, %v1695
        %v1728 = vpack.c.b16 %v1696, %v1696
        %v1729 = vpack.c.b16 %v1697, %v1697
        %1762 = vst [vmem:[%s252] sm:$0xf] %v1698
        %1763 = vst [vmem:[%s252 + $0x4] sm:$0xf] %v1699
        %1764 = vst [vmem:[%s252 + $0x8] sm:$0xf] %v1700
        %1765 = vst [vmem:[%s252 + $0xc] sm:$0xf] %v1701
        %1766 = vst [vmem:[%s252 + $0x10] sm:$0xf] %v1702
        %1767 = vst [vmem:[%s252 + $0x14] sm:$0xf] %v1703
        %1768 = vst [vmem:[%s252 + $0x18] sm:$0xf] %v1704
        %1769 = vst [vmem:[%s252 + $0x1c] sm:$0xf] %v1705
        %1770 = vst [vmem:[%s252 + $0x20] sm:$0xf] %v1706
        %1771 = vst [vmem:[%s252 + $0x24] sm:$0xf] %v1707
        %1772 = vst [vmem:[%s252 + $0x28] sm:$0xf] %v1708
        %1773 = vst [vmem:[%s252 + $0x2c] sm:$0xf] %v1709
        %1774 = vst [vmem:[%s252 + $0x30] sm:$0xf] %v1710
        %1775 = vst [vmem:[%s252 + $0x34] sm:$0xf] %v1711
        %1776 = vst [vmem:[%s252 + $0x38] sm:$0xf] %v1712
        %1777 = vst [vmem:[%s252 + $0x3c] sm:$0xf] %v1713
        %1778 = vst [vmem:[%s252 + $0x40] sm:$0xf] %v1714
        %1779 = vst [vmem:[%s252 + $0x44] sm:$0xf] %v1715
        %1780 = vst [vmem:[%s252 + $0x48] sm:$0xf] %v1716
        %1781 = vst [vmem:[%s252 + $0x4c] sm:$0xf] %v1717
        %1782 = vst [vmem:[%s252 + $0x50] sm:$0xf] %v1718
        %1783 = vst [vmem:[%s252 + $0x54] sm:$0xf] %v1719
        %1784 = vst [vmem:[%s252 + $0x58] sm:$0xf] %v1720
        %1785 = vst [vmem:[%s252 + $0x5c] sm:$0xf] %v1721
        %1786 = vst [vmem:[%s252 + $0x60] sm:$0xf] %v1722
        %1787 = vst [vmem:[%s252 + $0x64] sm:$0xf] %v1723
        %1788 = vst [vmem:[%s252 + $0x68] sm:$0xf] %v1724
        %1789 = vst [vmem:[%s252 + $0x6c] sm:$0xf] %v1725
        %1790 = vst [vmem:[%s252 + $0x70] sm:$0xf] %v1726
        %1791 = vst [vmem:[%s252 + $0x74] sm:$0xf] %v1727
        %1792 = vst [vmem:[%s252 + $0x78] sm:$0xf] %v1728
        %1793 = vst [vmem:[%s252 + $0x7c] sm:$0xf] %v1729
      $region44: #{convgcn_forward.5} parent=35 // pred_fallthru
        _
      %s1794 = smul.u32 32, %s19
      %p1795 = scmp.lt.s32.totalorder %s1794, 63
      %s1796 = scalar_select %p1795, %s1794, 63
      %s1797 = smul.addr %s1796, 4
      %s1798 = scalar_lea.vmem %s4, %s1797
      // Predicated region
      $region45: #{convgcn_forward.5} parent=35 // pred_check
        %p1799 = pneg %p141
      $region46: #{convgcn_forward.5} parent=35 // pred_check_branch
        %1801 = sbr.rel (%p1799) target = $region48
      $region47: #{convgcn_forward.5} parent=35 // pred_region
        %s1802 = smul.u32 32, %s19
      $region48: #{convgcn_forward.5} parent=35 // pred_fallthru
        _
    $region36: #{convgcn_forward.5} parent=5 // pred_fallthru
      _
    %p1803 = scmp.le.s32.totalorder 2, %s10
    // Predicated region
    $region49: #{convgcn_forward.5} parent=5 // pred_check
      %p1804 = pneg %p1803
    $region50: #{convgcn_forward.5} parent=5 // pred_check_branch
      %1806 = sbr.rel (%p1804) target = $region52
    $region51: #{convgcn_forward.5} parent=5 // pred_region
      %s1807 = ssub.s32 %s10, 2
      // Predicated region
      $region53: #{convgcn_forward.5} parent=51 // pred_check
        %p1808 = pneg %p147
      $region54: #{convgcn_forward.5} parent=51 // pred_check_branch
        %1810 = sbr.rel (%p1808) target = $region56
      $region55: #{convgcn_forward.5} parent=51 // pred_region
        %s1811 = smul.u32 32, %s21
        %p1812 = scmp.lt.s32.totalorder %s1811, 63
        %s1813 = scalar_select %p1812, %s1811, 63
        %s1814 = smul.addr %s1813, 4
        %s1815 = scalar_lea.vmem %s4, %s1814
      $region56: #{convgcn_forward.5} parent=51 // pred_fallthru
        _
    $region52: #{convgcn_forward.5} parent=5 // pred_fallthru
      _
  $region6: #{convgcn_forward.5} parent=0 // loop_footer
    %s14 = sadd.s32 1, %s10
  $region7: #{convgcn_forward.5} parent=0 // loop_footer_branch
    %9 = sbr.rel target = $region3
  $region8: #{convgcn_forward.5} parent=0 // loop_exit
    _

</llo_original>
